<compile_context>
chip_gen: v7x
topology: tpu7x:2x2x1
jax: 0.10.0
libtpu: 0.0.40
codegen_flags: <defaults>
</compile_context>

<pallas_src>
import functools

import jax
import jax.numpy as jnp
import numpy as np
from jax import lax
from jax.experimental import pallas as pl
from jax.experimental.pallas import tpu as pltpu


def _log_lstm_kernel(
    x_ref,       # (T*B, D_in)  bf16, time-major, flattened over (T, B)
    w_ih0_ref,   # (D_in, 4H)   bf16, gate order [i, f, o, g]
    w_hh0_ref,   # (H, 4H)      bf16, gate order [i, f, o, g]
    b0_ref,      # (1, 4H)      f32,  b_ih0 + b_hh0, gate order [i, f, o, g]
    w_ih1_ref,   # (H, 4H)      bf16
    w_hh1_ref,   # (H, 4H)      bf16
    b1_ref,      # (1, 4H)      f32,  b_ih1 + b_hh1
    w_out_ref,   # (H, D_in)    bf16
    b_out_ref,   # (1, D_in)    f32
    out_ref,     # (B, D_in)    f32, final prediction
    xp0_ref,     # VMEM scratch (T*B, 4H) f32: precomputed layer-0 input proj
    *, seq_len: int, batch: int, hidden: int,
):
    T, B, H = seq_len, batch, hidden
    f32 = jnp.float32

    # Prologue: one big MXU matmul for the non-recurrent layer-0 projection
    # over all timesteps; bias folded in here (outside the time loop).
    xp0_ref[...] = (
        jnp.dot(x_ref[...], w_ih0_ref[...], preferred_element_type=f32)
        + b0_ref[...]
    )

    # Hoist weight loads and the layer-1 bias broadcast out of the loop
    # (JAX does not CSE broadcast_in_dim).
    w_hh0 = w_hh0_ref[...]
    w_ih1 = w_ih1_ref[...]
    w_hh1 = w_hh1_ref[...]
    b1_b = jnp.broadcast_to(b1_ref[...], (B, 4 * H))

    def bf16(v):
        return v.astype(jnp.bfloat16)

    def gates_to_hc(gates, c_prev):
        # Gate columns were permuted host-side to [i, f, o, g]:
        # one EUP sigmoid over 3H lanes + one tanh over H lanes.
        s = jax.nn.sigmoid(gates[:, : 3 * H])
        i_g = s[:, 0 * H:1 * H]
        f_g = s[:, 1 * H:2 * H]
        o_g = s[:, 2 * H:3 * H]
        g_g = jnp.tanh(gates[:, 3 * H:4 * H])
        c_new = f_g * c_prev + i_g * g_g
        h_new = o_g * jnp.tanh(c_new)
        return h_new, c_new

    # ---- Peeled step 0: h/c are zero, so both recurrent matmuls vanish.
    zeros = jnp.zeros((B, H), f32)
    g0 = xp0_ref[pl.ds(0, B), :]                       # bias already folded in
    h0, c0 = gates_to_hc(g0, zeros)
    g1 = jnp.dot(bf16(h0), w_ih1, preferred_element_type=f32) + b1_b
    h1, c1 = gates_to_hc(g1, zeros)

    # ---- Steps 1 .. T-1, fully unrolled.
    def step(t, carry):
        h0, c0, h1, c1 = carry
        # Layer-1 recurrent partial depends only on the PREVIOUS step's h1, so
        # the scheduler can overlap this matmul with layer-0's work below.
        g1_rec = jnp.dot(bf16(h1), w_hh1, preferred_element_type=f32) + b1_b
        # Layer 0: precomputed input projection + recurrent term.
        row = pl.multiple_of(t * B, B)
        g0 = xp0_ref[pl.ds(row, B), :] + jnp.dot(
            bf16(h0), w_hh0, preferred_element_type=f32)
        h0, c0 = gates_to_hc(g0, c0)
        # Layer 1, un-fused (no concatenate): input half + pipelined rec half.
        g1 = jnp.dot(bf16(h0), w_ih1, preferred_element_type=f32) + g1_rec
        h1, c1 = gates_to_hc(g1, c1)
        return h0, c0, h1, c1

    _, _, h1, _ = lax.fori_loop(1, T, step, (h0, c0, h1, c1), unroll=True)

    # Output head on the last timestep's layer-1 hidden state: Linear + sigmoid.
    logits = (jnp.dot(bf16(h1), w_out_ref[...], preferred_element_type=f32)
              + b_out_ref[...])
    out_ref[...] = jax.nn.sigmoid(logits)              # (B, 128): full-lane vst


def _permute_gates_ifog(a, hidden):
    """Reorder last-dim gate blocks from PyTorch [i, f, g, o] to [i, f, o, g]."""
    H = hidden
    i, f, g, o = (a[..., k * H:(k + 1) * H] for k in range(4))
    return jnp.concatenate([i, f, o, g], axis=-1)


def prepare_kernel_params(params):
    """Host-side weight prep: gate permutation + bf16 cast of matmul operands."""
    H = params["w_hh0"].shape[0]
    perm = lambda a: _permute_gates_ifog(a, H)
    return {
        "w_ih0": perm(params["w_ih0"]).astype(jnp.bfloat16),
        "w_hh0": perm(params["w_hh0"]).astype(jnp.bfloat16),
        "b0": perm(params["b0"]).astype(jnp.float32),
        "w_ih1": perm(params["w_ih1"]).astype(jnp.bfloat16),
        "w_hh1": perm(params["w_hh1"]).astype(jnp.bfloat16),
        "b1": perm(params["b1"]).astype(jnp.float32),
        "w_out": params["w_out"].astype(jnp.bfloat16),
        "b_out": params["b_out"].astype(jnp.float32),
    }


def log_lstm_forward(x, params):
    """x: (B, T, D_in) float32, batch_first like the PyTorch module."""
    B, T, D_in = x.shape
    H = params["w_hh0"].shape[0]
    kp = prepare_kernel_params(params)

    # Time-major, flattened: row t*B + b is timestep t, batch element b.
    x_flat = (jnp.transpose(x, (1, 0, 2))
              .reshape(T * B, D_in).astype(jnp.bfloat16))

    kernel = functools.partial(_log_lstm_kernel, seq_len=T, batch=B, hidden=H)
    vmem_spec = pl.BlockSpec(memory_space=pltpu.MemorySpace.VMEM)

    return pl.pallas_call(
        kernel,
        out_shape=jax.ShapeDtypeStruct((B, D_in), jnp.float32),
        in_specs=[vmem_spec] * 9,
        out_specs=vmem_spec,
        scratch_shapes=[pltpu.VMEM((T * B, 4 * H), jnp.float32)],
    )(
        x_flat,
        kp["w_ih0"], kp["w_hh0"], kp["b0"],
        kp["w_ih1"], kp["w_hh1"], kp["b1"],
        kp["w_out"], kp["b_out"],
    )


def init_params(key, input_dim, hidden_dim):
    """Deterministic init matching PyTorch shapes (weights stored transposed,
    gate order [i, f, g, o], biases pre-summed)."""
    H = hidden_dim
    k = 1.0 / np.sqrt(H)
    keys = jax.random.split(key, 10)
    u = lambda kk, shape: jax.random.uniform(kk, shape, jnp.float32, -k, k)
    w_ih0 = u(keys[0], (4 * H, input_dim))
    w_hh0 = u(keys[1], (4 * H, H))
    b_ih0 = u(keys[2], (4 * H,))
    b_hh0 = u(keys[3], (4 * H,))
    w_ih1 = u(keys[4], (4 * H, H))
    w_hh1 = u(keys[5], (4 * H, H))
    b_ih1 = u(keys[6], (4 * H,))
    b_hh1 = u(keys[7], (4 * H,))
    w_out = jax.random.uniform(keys[8], (input_dim, H), jnp.float32, -k, k)
    b_out = jax.random.uniform(keys[9], (input_dim,), jnp.float32, -k, k)
    return {
        "w_ih0": w_ih0.T, "w_hh0": w_hh0.T, "b0": (b_ih0 + b_hh0)[None, :],
        "w_ih1": w_ih1.T, "w_hh1": w_hh1.T, "b1": (b_ih1 + b_hh1)[None, :],
        "w_out": w_out.T, "b_out": b_out[None, :],
    }


def reference_forward(x, params, *, match_kernel_dtypes=False):
    """Pure-JAX reference of the PyTorch forward (eval mode).

    match_kernel_dtypes=True mirrors the kernel's bf16 matmul operands
    (f32 accumulation, f32 c-state) for a tight numerical comparison.
    """
    B, T, D_in = x.shape
    H = params["w_hh0"].shape[0]
    cast = ((lambda v: v.astype(jnp.bfloat16)) if match_kernel_dtypes
            else (lambda v: v))

    def cell(x_t, h, c, w_ih, w_hh, b):
        gates = (jnp.dot(cast(x_t), cast(w_ih), preferred_element_type=jnp.float32)
                 + jnp.dot(cast(h), cast(w_hh), preferred_element_type=jnp.float32)
                 + b)
        i = jax.nn.sigmoid(gates[:, 0 * H:1 * H])
        f = jax.nn.sigmoid(gates[:, 1 * H:2 * H])
        g = jnp.tanh(gates[:, 2 * H:3 * H])
        o = jax.nn.sigmoid(gates[:, 3 * H:4 * H])
        c = f * c + i * g
        h = o * jnp.tanh(c)
        return h, c

    h0 = c0 = h1 = c1 = jnp.zeros((B, H), jnp.float32)
    for t in range(T):
        x_t = x[:, t, :]
        h0, c0 = cell(x_t, h0, c0, params["w_ih0"], params["w_hh0"], params["b0"])
        h1, c1 = cell(h0, h1, c1, params["w_ih1"], params["w_hh1"], params["b1"])
    logits = (jnp.dot(cast(h1), cast(params["w_out"]),
                      preferred_element_type=jnp.float32) + params["b_out"])
    return jax.nn.sigmoid(logits)


if __name__ == "__main__":
    # Small, vreg-aligned shapes consistent with the module's forward:
    # (batch, seq, input_dim) with hidden = 128.
    B, T, D_in, H = 8, 8, 128, 128

    key = jax.random.PRNGKey(0)
    kx, kp = jax.random.split(key)
    x = jax.random.normal(kx, (B, T, D_in), jnp.float32)
    params = init_params(kp, D_in, H)

    out = jax.block_until_ready(log_lstm_forward(x, params))
    assert out.shape == (B, D_in)

    # Tight check against a reference that mirrors the kernel's bf16 operands.
    ref_bf16 = reference_forward(x, params, match_kernel_dtypes=True)
    np.testing.assert_allclose(np.asarray(out), np.asarray(ref_bf16),
                               rtol=1e-3, atol=1e-3)
    # Loose check against the full-f32 module semantics.
    ref_f32 = reference_forward(x, params, match_kernel_dtypes=False)
    np.testing.assert_allclose(np.asarray(out), np.asarray(ref_f32),
                               rtol=5e-2, atol=2e-2)

    print("KERNEL_OK")
</pallas_src>

<mosaic_0001>
module attributes {stable_mosaic.version = 11 : i64} {
  func.func @_log_lstm_kernel(%arg0: memref<64x128xbf16, #tpu.memory_space<vmem>>, %arg1: memref<128x512xbf16, #tpu.memory_space<vmem>>, %arg2: memref<128x512xbf16, #tpu.memory_space<vmem>>, %arg3: memref<1x512xf32, #tpu.memory_space<vmem>>, %arg4: memref<128x512xbf16, #tpu.memory_space<vmem>>, %arg5: memref<128x512xbf16, #tpu.memory_space<vmem>>, %arg6: memref<1x512xf32, #tpu.memory_space<vmem>>, %arg7: memref<128x128xbf16, #tpu.memory_space<vmem>>, %arg8: memref<1x128xf32, #tpu.memory_space<vmem>>, %arg9: memref<8x128xf32, #tpu.memory_space<vmem>>, %arg10: memref<64x512xf32, #tpu.memory_space<vmem>>) attributes {dimension_semantics = [], scalar_prefetch = 0 : i64, scratch_operands = 1 : i64, tpu.core_type = #tpu.core_type<tc>} {
    %c0 = arith.constant 0 : index
    %c0_0 = arith.constant 0 : index
    %0 = vector.load %arg0[%c0, %c0_0] : memref<64x128xbf16, #tpu.memory_space<vmem>>, vector<64x128xbf16>
    %c0_1 = arith.constant 0 : index
    %c0_2 = arith.constant 0 : index
    %1 = vector.load %arg1[%c0_1, %c0_2] : memref<128x512xbf16, #tpu.memory_space<vmem>>, vector<128x512xbf16>
    %cst = arith.constant dense<0.000000e+00> : vector<64x512xf32>
    %2 = tpu.matmul %0, %1, %cst {dimension_numbers = #tpu.dot_dimension_numbers<[1], [0], [0], [1], [0, 0, 1, 1], [], []>} : vector<64x128xbf16>, vector<128x512xbf16>, vector<64x512xf32> -> vector<64x512xf32>
    %c0_3 = arith.constant 0 : index
    %c0_4 = arith.constant 0 : index
    %3 = vector.load %arg3[%c0_3, %c0_4] : memref<1x512xf32, #tpu.memory_space<vmem>>, vector<1x512xf32>
    %4 = vector.broadcast %3 : vector<1x512xf32> to vector<64x512xf32>
    %5 = arith.addf %2, %4 : vector<64x512xf32>
    %c0_5 = arith.constant 0 : index
    %c0_6 = arith.constant 0 : index
    %6 = vector.load %arg10[%c0_5, %c0_6] : memref<64x512xf32, #tpu.memory_space<vmem>>, vector<64x512xf32>
    tpu.vector_store %arg10[%c0_5, %c0_6], %5 {strides = array<i32>} : memref<64x512xf32, #tpu.memory_space<vmem>>, vector<64x512xf32>,
    %c0_7 = arith.constant 0 : index
    %c0_8 = arith.constant 0 : index
    %7 = vector.load %arg2[%c0_7, %c0_8] : memref<128x512xbf16, #tpu.memory_space<vmem>>, vector<128x512xbf16>
    %c0_9 = arith.constant 0 : index
    %c0_10 = arith.constant 0 : index
    %8 = vector.load %arg4[%c0_9, %c0_10] : memref<128x512xbf16, #tpu.memory_space<vmem>>, vector<128x512xbf16>
    %c0_11 = arith.constant 0 : index
    %c0_12 = arith.constant 0 : index
    %9 = vector.load %arg5[%c0_11, %c0_12] : memref<128x512xbf16, #tpu.memory_space<vmem>>, vector<128x512xbf16>
    %c0_13 = arith.constant 0 : index
    %c0_14 = arith.constant 0 : index
    %10 = vector.load %arg6[%c0_13, %c0_14] : memref<1x512xf32, #tpu.memory_space<vmem>>, vector<1x512xf32>
    %11 = vector.shape_cast %10 : vector<1x512xf32> to vector<1x512xf32>
    %12 = vector.broadcast %11 : vector<1x512xf32> to vector<8x512xf32>
    %cst_15 = arith.constant 0.000000e+00 : f32
    %13 = vector.broadcast %cst_15 : f32 to vector<8x128xf32>
    %c0_16 = arith.constant 0 : index
    %c0_17 = arith.constant 0 : index
    %14 = vector.load %arg10[%c0_16, %c0_17] : memref<64x512xf32, #tpu.memory_space<vmem>>, vector<8x512xf32>
    %15 = vector.extract_strided_slice %14 {offsets = [0, 0], sizes = [8, 384], strides = [1, 1]} : vector<8x512xf32> to vector<8x384xf32>
    %16 = arith.negf %15 : vector<8x384xf32>
    %17 = math.exp %16 : vector<8x384xf32>
    %cst_18 = arith.constant 1.000000e+00 : f32
    %18 = vector.broadcast %cst_18 : f32 to vector<8x384xf32>
    %19 = arith.addf %18, %17 : vector<8x384xf32>
    %20 = arith.divf %18, %19 : vector<8x384xf32>
    %21 = vector.extract_strided_slice %20 {offsets = [0, 0], sizes = [8, 128], strides = [1, 1]} : vector<8x384xf32> to vector<8x128xf32>
    %22 = vector.extract_strided_slice %20 {offsets = [0, 128], sizes = [8, 128], strides = [1, 1]} : vector<8x384xf32> to vector<8x128xf32>
    %23 = vector.extract_strided_slice %20 {offsets = [0, 256], sizes = [8, 128], strides = [1, 1]} : vector<8x384xf32> to vector<8x128xf32>
    %24 = vector.extract_strided_slice %14 {offsets = [0, 384], sizes = [8, 128], strides = [1, 1]} : vector<8x512xf32> to vector<8x128xf32>
    %25 = math.tanh %24 : vector<8x128xf32>
    %26 = arith.mulf %22, %13 : vector<8x128xf32>
    %27 = arith.mulf %21, %25 : vector<8x128xf32>
    %28 = arith.addf %26, %27 : vector<8x128xf32>
    %29 = math.tanh %28 : vector<8x128xf32>
    %30 = arith.mulf %23, %29 : vector<8x128xf32>
    %31 = arith.truncf %30 : vector<8x128xf32> to vector<8x128xbf16>
    %cst_19 = arith.constant dense<0.000000e+00> : vector<8x512xf32>
    %32 = tpu.matmul %31, %8, %cst_19 {dimension_numbers = #tpu.dot_dimension_numbers<[1], [0], [0], [1], [0, 0, 1, 1], [], []>} : vector<8x128xbf16>, vector<128x512xbf16>, vector<8x512xf32> -> vector<8x512xf32>
    %33 = arith.addf %32, %12 : vector<8x512xf32>
    %34 = vector.extract_strided_slice %33 {offsets = [0, 0], sizes = [8, 384], strides = [1, 1]} : vector<8x512xf32> to vector<8x384xf32>
    %35 = arith.negf %34 : vector<8x384xf32>
    %36 = math.exp %35 : vector<8x384xf32>
    %cst_20 = arith.constant 1.000000e+00 : f32
    %37 = vector.broadcast %cst_20 : f32 to vector<8x384xf32>
    %38 = arith.addf %37, %36 : vector<8x384xf32>
    %39 = arith.divf %37, %38 : vector<8x384xf32>
    %40 = vector.extract_strided_slice %39 {offsets = [0, 0], sizes = [8, 128], strides = [1, 1]} : vector<8x384xf32> to vector<8x128xf32>
    %41 = vector.extract_strided_slice %39 {offsets = [0, 128], sizes = [8, 128], strides = [1, 1]} : vector<8x384xf32> to vector<8x128xf32>
    %42 = vector.extract_strided_slice %39 {offsets = [0, 256], sizes = [8, 128], strides = [1, 1]} : vector<8x384xf32> to vector<8x128xf32>
    %43 = vector.extract_strided_slice %33 {offsets = [0, 384], sizes = [8, 128], strides = [1, 1]} : vector<8x512xf32> to vector<8x128xf32>
    %44 = math.tanh %43 : vector<8x128xf32>
    %45 = arith.mulf %41, %13 : vector<8x128xf32>
    %46 = arith.mulf %40, %44 : vector<8x128xf32>
    %47 = arith.addf %45, %46 : vector<8x128xf32>
    %48 = math.tanh %47 : vector<8x128xf32>
    %49 = arith.mulf %42, %48 : vector<8x128xf32>
    %c1_i32 = arith.constant 1 : i32
    %50 = arith.truncf %49 : vector<8x128xf32> to vector<8x128xbf16>
    %cst_21 = arith.constant dense<0.000000e+00> : vector<8x512xf32>
    %51 = tpu.matmul %50, %9, %cst_21 {dimension_numbers = #tpu.dot_dimension_numbers<[1], [0], [0], [1], [0, 0, 1, 1], [], []>} : vector<8x128xbf16>, vector<128x512xbf16>, vector<8x512xf32> -> vector<8x512xf32>
    %52 = arith.addf %51, %12 : vector<8x512xf32>
    %c8_i32 = arith.constant 8 : i32
    %53 = arith.muli %c1_i32, %c8_i32 : i32
    %54 = tpu.assume_multiple %53, 8 : i32
    %55 = arith.index_cast %54 : i32 to index
    %c0_22 = arith.constant 0 : index
    %56 = vector.load %arg10[%55, %c0_22] : memref<64x512xf32, #tpu.memory_space<vmem>>, vector<8x512xf32>
    %57 = arith.truncf %30 : vector<8x128xf32> to vector<8x128xbf16>
    %cst_23 = arith.constant dense<0.000000e+00> : vector<8x512xf32>
    %58 = tpu.matmul %57, %7, %cst_23 {dimension_numbers = #tpu.dot_dimension_numbers<[1], [0], [0], [1], [0, 0, 1, 1], [], []>} : vector<8x128xbf16>, vector<128x512xbf16>, vector<8x512xf32> -> vector<8x512xf32>
    %59 = arith.addf %56, %58 : vector<8x512xf32>
    %60 = vector.extract_strided_slice %59 {offsets = [0, 0], sizes = [8, 384], strides = [1, 1]} : vector<8x512xf32> to vector<8x384xf32>
    %61 = arith.negf %60 : vector<8x384xf32>
    %62 = math.exp %61 : vector<8x384xf32>
    %cst_24 = arith.constant 1.000000e+00 : f32
    %63 = vector.broadcast %cst_24 : f32 to vector<8x384xf32>
    %64 = arith.addf %63, %62 : vector<8x384xf32>
    %65 = arith.divf %63, %64 : vector<8x384xf32>
    %66 = vector.extract_strided_slice %65 {offsets = [0, 0], sizes = [8, 128], strides = [1, 1]} : vector<8x384xf32> to vector<8x128xf32>
    %67 = vector.extract_strided_slice %65 {offsets = [0, 128], sizes = [8, 128], strides = [1, 1]} : vector<8x384xf32> to vector<8x128xf32>
    %68 = vector.extract_strided_slice %65 {offsets = [0, 256], sizes = [8, 128], strides = [1, 1]} : vector<8x384xf32> to vector<8x128xf32>
    %69 = vector.extract_strided_slice %59 {offsets = [0, 384], sizes = [8, 128], strides = [1, 1]} : vector<8x512xf32> to vector<8x128xf32>
    %70 = math.tanh %69 : vector<8x128xf32>
    %71 = arith.mulf %67, %28 : vector<8x128xf32>
    %72 = arith.mulf %66, %70 : vector<8x128xf32>
    %73 = arith.addf %71, %72 : vector<8x128xf32>
    %74 = math.tanh %73 : vector<8x128xf32>
    %75 = arith.mulf %68, %74 : vector<8x128xf32>
    %76 = arith.truncf %75 : vector<8x128xf32> to vector<8x128xbf16>
    %cst_25 = arith.constant dense<0.000000e+00> : vector<8x512xf32>
    %77 = tpu.matmul %76, %8, %cst_25 {dimension_numbers = #tpu.dot_dimension_numbers<[1], [0], [0], [1], [0, 0, 1, 1], [], []>} : vector<8x128xbf16>, vector<128x512xbf16>, vector<8x512xf32> -> vector<8x512xf32>
    %78 = arith.addf %77, %52 : vector<8x512xf32>
    %79 = vector.extract_strided_slice %78 {offsets = [0, 0], sizes = [8, 384], strides = [1, 1]} : vector<8x512xf32> to vector<8x384xf32>
    %80 = arith.negf %79 : vector<8x384xf32>
    %81 = math.exp %80 : vector<8x384xf32>
    %cst_26 = arith.constant 1.000000e+00 : f32
    %82 = vector.broadcast %cst_26 : f32 to vector<8x384xf32>
    %83 = arith.addf %82, %81 : vector<8x384xf32>
    %84 = arith.divf %82, %83 : vector<8x384xf32>
    %85 = vector.extract_strided_slice %84 {offsets = [0, 0], sizes = [8, 128], strides = [1, 1]} : vector<8x384xf32> to vector<8x128xf32>
    %86 = vector.extract_strided_slice %84 {offsets = [0, 128], sizes = [8, 128], strides = [1, 1]} : vector<8x384xf32> to vector<8x128xf32>
    %87 = vector.extract_strided_slice %84 {offsets = [0, 256], sizes = [8, 128], strides = [1, 1]} : vector<8x384xf32> to vector<8x128xf32>
    %88 = vector.extract_strided_slice %78 {offsets = [0, 384], sizes = [8, 128], strides = [1, 1]} : vector<8x512xf32> to vector<8x128xf32>
    %89 = math.tanh %88 : vector<8x128xf32>
    %90 = arith.mulf %86, %47 : vector<8x128xf32>
    %91 = arith.mulf %85, %89 : vector<8x128xf32>
    %92 = arith.addf %90, %91 : vector<8x128xf32>
    %93 = math.tanh %92 : vector<8x128xf32>
    %94 = arith.mulf %87, %93 : vector<8x128xf32>
    %c2_i32 = arith.constant 2 : i32
    %95 = arith.truncf %94 : vector<8x128xf32> to vector<8x128xbf16>
    %cst_27 = arith.constant dense<0.000000e+00> : vector<8x512xf32>
    %96 = tpu.matmul %95, %9, %cst_27 {dimension_numbers = #tpu.dot_dimension_numbers<[1], [0], [0], [1], [0, 0, 1, 1], [], []>} : vector<8x128xbf16>, vector<128x512xbf16>, vector<8x512xf32> -> vector<8x512xf32>
    %97 = arith.addf %96, %12 : vector<8x512xf32>
    %c8_i32_28 = arith.constant 8 : i32
    %98 = arith.muli %c2_i32, %c8_i32_28 : i32
    %99 = tpu.assume_multiple %98, 8 : i32
    %100 = arith.index_cast %99 : i32 to index
    %c0_29 = arith.constant 0 : index
    %101 = vector.load %arg10[%100, %c0_29] : memref<64x512xf32, #tpu.memory_space<vmem>>, vector<8x512xf32>
    %102 = arith.truncf %75 : vector<8x128xf32> to vector<8x128xbf16>
    %cst_30 = arith.constant dense<0.000000e+00> : vector<8x512xf32>
    %103 = tpu.matmul %102, %7, %cst_30 {dimension_numbers = #tpu.dot_dimension_numbers<[1], [0], [0], [1], [0, 0, 1, 1], [], []>} : vector<8x128xbf16>, vector<128x512xbf16>, vector<8x512xf32> -> vector<8x512xf32>
    %104 = arith.addf %101, %103 : vector<8x512xf32>
    %105 = vector.extract_strided_slice %104 {offsets = [0, 0], sizes = [8, 384], strides = [1, 1]} : vector<8x512xf32> to vector<8x384xf32>
    %106 = arith.negf %105 : vector<8x384xf32>
    %107 = math.exp %106 : vector<8x384xf32>
    %cst_31 = arith.constant 1.000000e+00 : f32
    %108 = vector.broadcast %cst_31 : f32 to vector<8x384xf32>
    %109 = arith.addf %108, %107 : vector<8x384xf32>
    %110 = arith.divf %108, %109 : vector<8x384xf32>
    %111 = vector.extract_strided_slice %110 {offsets = [0, 0], sizes = [8, 128], strides = [1, 1]} : vector<8x384xf32> to vector<8x128xf32>
    %112 = vector.extract_strided_slice %110 {offsets = [0, 128], sizes = [8, 128], strides = [1, 1]} : vector<8x384xf32> to vector<8x128xf32>
    %113 = vector.extract_strided_slice %110 {offsets = [0, 256], sizes = [8, 128], strides = [1, 1]} : vector<8x384xf32> to vector<8x128xf32>
    %114 = vector.extract_strided_slice %104 {offsets = [0, 384], sizes = [8, 128], strides = [1, 1]} : vector<8x512xf32> to vector<8x128xf32>
    %115 = math.tanh %114 : vector<8x128xf32>
    %116 = arith.mulf %112, %73 : vector<8x128xf32>
    %117 = arith.mulf %111, %115 : vector<8x128xf32>
    %118 = arith.addf %116, %117 : vector<8x128xf32>
    %119 = math.tanh %118 : vector<8x128xf32>
    %120 = arith.mulf %113, %119 : vector<8x128xf32>
    %121 = arith.truncf %120 : vector<8x128xf32> to vector<8x128xbf16>
    %cst_32 = arith.constant dense<0.000000e+00> : vector<8x512xf32>
    %122 = tpu.matmul %121, %8, %cst_32 {dimension_numbers = #tpu.dot_dimension_numbers<[1], [0], [0], [1], [0, 0, 1, 1], [], []>} : vector<8x128xbf16>, vector<128x512xbf16>, vector<8x512xf32> -> vector<8x512xf32>
    %123 = arith.addf %122, %97 : vector<8x512xf32>
    %124 = vector.extract_strided_slice %123 {offsets = [0, 0], sizes = [8, 384], strides = [1, 1]} : vector<8x512xf32> to vector<8x384xf32>
    %125 = arith.negf %124 : vector<8x384xf32>
    %126 = math.exp %125 : vector<8x384xf32>
    %cst_33 = arith.constant 1.000000e+00 : f32
    %127 = vector.broadcast %cst_33 : f32 to vector<8x384xf32>
    %128 = arith.addf %127, %126 : vector<8x384xf32>
    %129 = arith.divf %127, %128 : vector<8x384xf32>
    %130 = vector.extract_strided_slice %129 {offsets = [0, 0], sizes = [8, 128], strides = [1, 1]} : vector<8x384xf32> to vector<8x128xf32>
    %131 = vector.extract_strided_slice %129 {offsets = [0, 128], sizes = [8, 128], strides = [1, 1]} : vector<8x384xf32> to vector<8x128xf32>
    %132 = vector.extract_strided_slice %129 {offsets = [0, 256], sizes = [8, 128], strides = [1, 1]} : vector<8x384xf32> to vector<8x128xf32>
    %133 = vector.extract_strided_slice %123 {offsets = [0, 384], sizes = [8, 128], strides = [1, 1]} : vector<8x512xf32> to vector<8x128xf32>
    %134 = math.tanh %133 : vector<8x128xf32>
    %135 = arith.mulf %131, %92 : vector<8x128xf32>
    %136 = arith.mulf %130, %134 : vector<8x128xf32>
    %137 = arith.addf %135, %136 : vector<8x128xf32>
    %138 = math.tanh %137 : vector<8x128xf32>
    %139 = arith.mulf %132, %138 : vector<8x128xf32>
    %c3_i32 = arith.constant 3 : i32
    %140 = arith.truncf %139 : vector<8x128xf32> to vector<8x128xbf16>
    %cst_34 = arith.constant dense<0.000000e+00> : vector<8x512xf32>
    %141 = tpu.matmul %140, %9, %cst_34 {dimension_numbers = #tpu.dot_dimension_numbers<[1], [0], [0], [1], [0, 0, 1, 1], [], []>} : vector<8x128xbf16>, vector<128x512xbf16>, vector<8x512xf32> -> vector<8x512xf32>
    %142 = arith.addf %141, %12 : vector<8x512xf32>
    %c8_i32_35 = arith.constant 8 : i32
    %143 = arith.muli %c3_i32, %c8_i32_35 : i32
    %144 = tpu.assume_multiple %143, 8 : i32
    %145 = arith.index_cast %144 : i32 to index
    %c0_36 = arith.constant 0 : index
    %146 = vector.load %arg10[%145, %c0_36] : memref<64x512xf32, #tpu.memory_space<vmem>>, vector<8x512xf32>
    %147 = arith.truncf %120 : vector<8x128xf32> to vector<8x128xbf16>
    %cst_37 = arith.constant dense<0.000000e+00> : vector<8x512xf32>
    %148 = tpu.matmul %147, %7, %cst_37 {dimension_numbers = #tpu.dot_dimension_numbers<[1], [0], [0], [1], [0, 0, 1, 1], [], []>} : vector<8x128xbf16>, vector<128x512xbf16>, vector<8x512xf32> -> vector<8x512xf32>
    %149 = arith.addf %146, %148 : vector<8x512xf32>
    %150 = vector.extract_strided_slice %149 {offsets = [0, 0], sizes = [8, 384], strides = [1, 1]} : vector<8x512xf32> to vector<8x384xf32>
    %151 = arith.negf %150 : vector<8x384xf32>
    %152 = math.exp %151 : vector<8x384xf32>
    %cst_38 = arith.constant 1.000000e+00 : f32
    %153 = vector.broadcast %cst_38 : f32 to vector<8x384xf32>
    %154 = arith.addf %153, %152 : vector<8x384xf32>
    %155 = arith.divf %153, %154 : vector<8x384xf32>
    %156 = vector.extract_strided_slice %155 {offsets = [0, 0], sizes = [8, 128], strides = [1, 1]} : vector<8x384xf32> to vector<8x128xf32>
    %157 = vector.extract_strided_slice %155 {offsets = [0, 128], sizes = [8, 128], strides = [1, 1]} : vector<8x384xf32> to vector<8x128xf32>
    %158 = vector.extract_strided_slice %155 {offsets = [0, 256], sizes = [8, 128], strides = [1, 1]} : vector<8x384xf32> to vector<8x128xf32>
    %159 = vector.extract_strided_slice %149 {offsets = [0, 384], sizes = [8, 128], strides = [1, 1]} : vector<8x512xf32> to vector<8x128xf32>
    %160 = math.tanh %159 : vector<8x128xf32>
    %161 = arith.mulf %157, %118 : vector<8x128xf32>
    %162 = arith.mulf %156, %160 : vector<8x128xf32>
    %163 = arith.addf %161, %162 : vector<8x128xf32>
    %164 = math.tanh %163 : vector<8x128xf32>
    %165 = arith.mulf %158, %164 : vector<8x128xf32>
    %166 = arith.truncf %165 : vector<8x128xf32> to vector<8x128xbf16>
    %cst_39 = arith.constant dense<0.000000e+00> : vector<8x512xf32>
    %167 = tpu.matmul %166, %8, %cst_39 {dimension_numbers = #tpu.dot_dimension_numbers<[1], [0], [0], [1], [0, 0, 1, 1], [], []>} : vector<8x128xbf16>, vector<128x512xbf16>, vector<8x512xf32> -> vector<8x512xf32>
    %168 = arith.addf %167, %142 : vector<8x512xf32>
    %169 = vector.extract_strided_slice %168 {offsets = [0, 0], sizes = [8, 384], strides = [1, 1]} : vector<8x512xf32> to vector<8x384xf32>
    %170 = arith.negf %169 : vector<8x384xf32>
    %171 = math.exp %170 : vector<8x384xf32>
    %cst_40 = arith.constant 1.000000e+00 : f32
    %172 = vector.broadcast %cst_40 : f32 to vector<8x384xf32>
    %173 = arith.addf %172, %171 : vector<8x384xf32>
    %174 = arith.divf %172, %173 : vector<8x384xf32>
    %175 = vector.extract_strided_slice %174 {offsets = [0, 0], sizes = [8, 128], strides = [1, 1]} : vector<8x384xf32> to vector<8x128xf32>
    %176 = vector.extract_strided_slice %174 {offsets = [0, 128], sizes = [8, 128], strides = [1, 1]} : vector<8x384xf32> to vector<8x128xf32>
    %177 = vector.extract_strided_slice %174 {offsets = [0, 256], sizes = [8, 128], strides = [1, 1]} : vector<8x384xf32> to vector<8x128xf32>
    %178 = vector.extract_strided_slice %168 {offsets = [0, 384], sizes = [8, 128], strides = [1, 1]} : vector<8x512xf32> to vector<8x128xf32>
    %179 = math.tanh %178 : vector<8x128xf32>
    %180 = arith.mulf %176, %137 : vector<8x128xf32>
    %181 = arith.mulf %175, %179 : vector<8x128xf32>
    %182 = arith.addf %180, %181 : vector<8x128xf32>
    %183 = math.tanh %182 : vector<8x128xf32>
    %184 = arith.mulf %177, %183 : vector<8x128xf32>
    %c4_i32 = arith.constant 4 : i32
    %185 = arith.truncf %184 : vector<8x128xf32> to vector<8x128xbf16>
    %cst_41 = arith.constant dense<0.000000e+00> : vector<8x512xf32>
    %186 = tpu.matmul %185, %9, %cst_41 {dimension_numbers = #tpu.dot_dimension_numbers<[1], [0], [0], [1], [0, 0, 1, 1], [], []>} : vector<8x128xbf16>, vector<128x512xbf16>, vector<8x512xf32> -> vector<8x512xf32>
    %187 = arith.addf %186, %12 : vector<8x512xf32>
    %c8_i32_42 = arith.constant 8 : i32
    %188 = arith.muli %c4_i32, %c8_i32_42 : i32
    %189 = tpu.assume_multiple %188, 8 : i32
    %190 = arith.index_cast %189 : i32 to index
    %c0_43 = arith.constant 0 : index
    %191 = vector.load %arg10[%190, %c0_43] : memref<64x512xf32, #tpu.memory_space<vmem>>, vector<8x512xf32>
    %192 = arith.truncf %165 : vector<8x128xf32> to vector<8x128xbf16>
    %cst_44 = arith.constant dense<0.000000e+00> : vector<8x512xf32>
    %193 = tpu.matmul %192, %7, %cst_44 {dimension_numbers = #tpu.dot_dimension_numbers<[1], [0], [0], [1], [0, 0, 1, 1], [], []>} : vector<8x128xbf16>, vector<128x512xbf16>, vector<8x512xf32> -> vector<8x512xf32>
    %194 = arith.addf %191, %193 : vector<8x512xf32>
    %195 = vector.extract_strided_slice %194 {offsets = [0, 0], sizes = [8, 384], strides = [1, 1]} : vector<8x512xf32> to vector<8x384xf32>
    %196 = arith.negf %195 : vector<8x384xf32>
    %197 = math.exp %196 : vector<8x384xf32>
    %cst_45 = arith.constant 1.000000e+00 : f32
    %198 = vector.broadcast %cst_45 : f32 to vector<8x384xf32>
    %199 = arith.addf %198, %197 : vector<8x384xf32>
    %200 = arith.divf %198, %199 : vector<8x384xf32>
    %201 = vector.extract_strided_slice %200 {offsets = [0, 0], sizes = [8, 128], strides = [1, 1]} : vector<8x384xf32> to vector<8x128xf32>
    %202 = vector.extract_strided_slice %200 {offsets = [0, 128], sizes = [8, 128], strides = [1, 1]} : vector<8x384xf32> to vector<8x128xf32>
    %203 = vector.extract_strided_slice %200 {offsets = [0, 256], sizes = [8, 128], strides = [1, 1]} : vector<8x384xf32> to vector<8x128xf32>
    %204 = vector.extract_strided_slice %194 {offsets = [0, 384], sizes = [8, 128], strides = [1, 1]} : vector<8x512xf32> to vector<8x128xf32>
    %205 = math.tanh %204 : vector<8x128xf32>
    %206 = arith.mulf %202, %163 : vector<8x128xf32>
    %207 = arith.mulf %201, %205 : vector<8x128xf32>
    %208 = arith.addf %206, %207 : vector<8x128xf32>
    %209 = math.tanh %208 : vector<8x128xf32>
    %210 = arith.mulf %203, %209 : vector<8x128xf32>
    %211 = arith.truncf %210 : vector<8x128xf32> to vector<8x128xbf16>
    %cst_46 = arith.constant dense<0.000000e+00> : vector<8x512xf32>
    %212 = tpu.matmul %211, %8, %cst_46 {dimension_numbers = #tpu.dot_dimension_numbers<[1], [0], [0], [1], [0, 0, 1, 1], [], []>} : vector<8x128xbf16>, vector<128x512xbf16>, vector<8x512xf32> -> vector<8x512xf32>
    %213 = arith.addf %212, %187 : vector<8x512xf32>
    %214 = vector.extract_strided_slice %213 {offsets = [0, 0], sizes = [8, 384], strides = [1, 1]} : vector<8x512xf32> to vector<8x384xf32>
    %215 = arith.negf %214 : vector<8x384xf32>
    %216 = math.exp %215 : vector<8x384xf32>
    %cst_47 = arith.constant 1.000000e+00 : f32
    %217 = vector.broadcast %cst_47 : f32 to vector<8x384xf32>
    %218 = arith.addf %217, %216 : vector<8x384xf32>
    %219 = arith.divf %217, %218 : vector<8x384xf32>
    %220 = vector.extract_strided_slice %219 {offsets = [0, 0], sizes = [8, 128], strides = [1, 1]} : vector<8x384xf32> to vector<8x128xf32>
    %221 = vector.extract_strided_slice %219 {offsets = [0, 128], sizes = [8, 128], strides = [1, 1]} : vector<8x384xf32> to vector<8x128xf32>
    %222 = vector.extract_strided_slice %219 {offsets = [0, 256], sizes = [8, 128], strides = [1, 1]} : vector<8x384xf32> to vector<8x128xf32>
    %223 = vector.extract_strided_slice %213 {offsets = [0, 384], sizes = [8, 128], strides = [1, 1]} : vector<8x512xf32> to vector<8x128xf32>
    %224 = math.tanh %223 : vector<8x128xf32>
    %225 = arith.mulf %221, %182 : vector<8x128xf32>
    %226 = arith.mulf %220, %224 : vector<8x128xf32>
    %227 = arith.addf %225, %226 : vector<8x128xf32>
    %228 = math.tanh %227 : vector<8x128xf32>
    %229 = arith.mulf %222, %228 : vector<8x128xf32>
    %c5_i32 = arith.constant 5 : i32
    %230 = arith.truncf %229 : vector<8x128xf32> to vector<8x128xbf16>
    %cst_48 = arith.constant dense<0.000000e+00> : vector<8x512xf32>
    %231 = tpu.matmul %230, %9, %cst_48 {dimension_numbers = #tpu.dot_dimension_numbers<[1], [0], [0], [1], [0, 0, 1, 1], [], []>} : vector<8x128xbf16>, vector<128x512xbf16>, vector<8x512xf32> -> vector<8x512xf32>
    %232 = arith.addf %231, %12 : vector<8x512xf32>
    %c8_i32_49 = arith.constant 8 : i32
    %233 = arith.muli %c5_i32, %c8_i32_49 : i32
    %234 = tpu.assume_multiple %233, 8 : i32
    %235 = arith.index_cast %234 : i32 to index
    %c0_50 = arith.constant 0 : index
    %236 = vector.load %arg10[%235, %c0_50] : memref<64x512xf32, #tpu.memory_space<vmem>>, vector<8x512xf32>
    %237 = arith.truncf %210 : vector<8x128xf32> to vector<8x128xbf16>
    %cst_51 = arith.constant dense<0.000000e+00> : vector<8x512xf32>
    %238 = tpu.matmul %237, %7, %cst_51 {dimension_numbers = #tpu.dot_dimension_numbers<[1], [0], [0], [1], [0, 0, 1, 1], [], []>} : vector<8x128xbf16>, vector<128x512xbf16>, vector<8x512xf32> -> vector<8x512xf32>
    %239 = arith.addf %236, %238 : vector<8x512xf32>
    %240 = vector.extract_strided_slice %239 {offsets = [0, 0], sizes = [8, 384], strides = [1, 1]} : vector<8x512xf32> to vector<8x384xf32>
    %241 = arith.negf %240 : vector<8x384xf32>
    %242 = math.exp %241 : vector<8x384xf32>
    %cst_52 = arith.constant 1.000000e+00 : f32
    %243 = vector.broadcast %cst_52 : f32 to vector<8x384xf32>
    %244 = arith.addf %243, %242 : vector<8x384xf32>
    %245 = arith.divf %243, %244 : vector<8x384xf32>
    %246 = vector.extract_strided_slice %245 {offsets = [0, 0], sizes = [8, 128], strides = [1, 1]} : vector<8x384xf32> to vector<8x128xf32>
    %247 = vector.extract_strided_slice %245 {offsets = [0, 128], sizes = [8, 128], strides = [1, 1]} : vector<8x384xf32> to vector<8x128xf32>
    %248 = vector.extract_strided_slice %245 {offsets = [0, 256], sizes = [8, 128], strides = [1, 1]} : vector<8x384xf32> to vector<8x128xf32>
    %249 = vector.extract_strided_slice %239 {offsets = [0, 384], sizes = [8, 128], strides = [1, 1]} : vector<8x512xf32> to vector<8x128xf32>
    %250 = math.tanh %249 : vector<8x128xf32>
    %251 = arith.mulf %247, %208 : vector<8x128xf32>
    %252 = arith.mulf %246, %250 : vector<8x128xf32>
    %253 = arith.addf %251, %252 : vector<8x128xf32>
    %254 = math.tanh %253 : vector<8x128xf32>
    %255 = arith.mulf %248, %254 : vector<8x128xf32>
    %256 = arith.truncf %255 : vector<8x128xf32> to vector<8x128xbf16>
    %cst_53 = arith.constant dense<0.000000e+00> : vector<8x512xf32>
    %257 = tpu.matmul %256, %8, %cst_53 {dimension_numbers = #tpu.dot_dimension_numbers<[1], [0], [0], [1], [0, 0, 1, 1], [], []>} : vector<8x128xbf16>, vector<128x512xbf16>, vector<8x512xf32> -> vector<8x512xf32>
    %258 = arith.addf %257, %232 : vector<8x512xf32>
    %259 = vector.extract_strided_slice %258 {offsets = [0, 0], sizes = [8, 384], strides = [1, 1]} : vector<8x512xf32> to vector<8x384xf32>
    %260 = arith.negf %259 : vector<8x384xf32>
    %261 = math.exp %260 : vector<8x384xf32>
    %cst_54 = arith.constant 1.000000e+00 : f32
    %262 = vector.broadcast %cst_54 : f32 to vector<8x384xf32>
    %263 = arith.addf %262, %261 : vector<8x384xf32>
    %264 = arith.divf %262, %263 : vector<8x384xf32>
    %265 = vector.extract_strided_slice %264 {offsets = [0, 0], sizes = [8, 128], strides = [1, 1]} : vector<8x384xf32> to vector<8x128xf32>
    %266 = vector.extract_strided_slice %264 {offsets = [0, 128], sizes = [8, 128], strides = [1, 1]} : vector<8x384xf32> to vector<8x128xf32>
    %267 = vector.extract_strided_slice %264 {offsets = [0, 256], sizes = [8, 128], strides = [1, 1]} : vector<8x384xf32> to vector<8x128xf32>
    %268 = vector.extract_strided_slice %258 {offsets = [0, 384], sizes = [8, 128], strides = [1, 1]} : vector<8x512xf32> to vector<8x128xf32>
    %269 = math.tanh %268 : vector<8x128xf32>
    %270 = arith.mulf %266, %227 : vector<8x128xf32>
    %271 = arith.mulf %265, %269 : vector<8x128xf32>
    %272 = arith.addf %270, %271 : vector<8x128xf32>
    %273 = math.tanh %272 : vector<8x128xf32>
    %274 = arith.mulf %267, %273 : vector<8x128xf32>
    %c6_i32 = arith.constant 6 : i32
    %275 = arith.truncf %274 : vector<8x128xf32> to vector<8x128xbf16>
    %cst_55 = arith.constant dense<0.000000e+00> : vector<8x512xf32>
    %276 = tpu.matmul %275, %9, %cst_55 {dimension_numbers = #tpu.dot_dimension_numbers<[1], [0], [0], [1], [0, 0, 1, 1], [], []>} : vector<8x128xbf16>, vector<128x512xbf16>, vector<8x512xf32> -> vector<8x512xf32>
    %277 = arith.addf %276, %12 : vector<8x512xf32>
    %c8_i32_56 = arith.constant 8 : i32
    %278 = arith.muli %c6_i32, %c8_i32_56 : i32
    %279 = tpu.assume_multiple %278, 8 : i32
    %280 = arith.index_cast %279 : i32 to index
    %c0_57 = arith.constant 0 : index
    %281 = vector.load %arg10[%280, %c0_57] : memref<64x512xf32, #tpu.memory_space<vmem>>, vector<8x512xf32>
    %282 = arith.truncf %255 : vector<8x128xf32> to vector<8x128xbf16>
    %cst_58 = arith.constant dense<0.000000e+00> : vector<8x512xf32>
    %283 = tpu.matmul %282, %7, %cst_58 {dimension_numbers = #tpu.dot_dimension_numbers<[1], [0], [0], [1], [0, 0, 1, 1], [], []>} : vector<8x128xbf16>, vector<128x512xbf16>, vector<8x512xf32> -> vector<8x512xf32>
    %284 = arith.addf %281, %283 : vector<8x512xf32>
    %285 = vector.extract_strided_slice %284 {offsets = [0, 0], sizes = [8, 384], strides = [1, 1]} : vector<8x512xf32> to vector<8x384xf32>
    %286 = arith.negf %285 : vector<8x384xf32>
    %287 = math.exp %286 : vector<8x384xf32>
    %cst_59 = arith.constant 1.000000e+00 : f32
    %288 = vector.broadcast %cst_59 : f32 to vector<8x384xf32>
    %289 = arith.addf %288, %287 : vector<8x384xf32>
    %290 = arith.divf %288, %289 : vector<8x384xf32>
    %291 = vector.extract_strided_slice %290 {offsets = [0, 0], sizes = [8, 128], strides = [1, 1]} : vector<8x384xf32> to vector<8x128xf32>
    %292 = vector.extract_strided_slice %290 {offsets = [0, 128], sizes = [8, 128], strides = [1, 1]} : vector<8x384xf32> to vector<8x128xf32>
    %293 = vector.extract_strided_slice %290 {offsets = [0, 256], sizes = [8, 128], strides = [1, 1]} : vector<8x384xf32> to vector<8x128xf32>
    %294 = vector.extract_strided_slice %284 {offsets = [0, 384], sizes = [8, 128], strides = [1, 1]} : vector<8x512xf32> to vector<8x128xf32>
    %295 = math.tanh %294 : vector<8x128xf32>
    %296 = arith.mulf %292, %253 : vector<8x128xf32>
    %297 = arith.mulf %291, %295 : vector<8x128xf32>
    %298 = arith.addf %296, %297 : vector<8x128xf32>
    %299 = math.tanh %298 : vector<8x128xf32>
    %300 = arith.mulf %293, %299 : vector<8x128xf32>
    %301 = arith.truncf %300 : vector<8x128xf32> to vector<8x128xbf16>
    %cst_60 = arith.constant dense<0.000000e+00> : vector<8x512xf32>
    %302 = tpu.matmul %301, %8, %cst_60 {dimension_numbers = #tpu.dot_dimension_numbers<[1], [0], [0], [1], [0, 0, 1, 1], [], []>} : vector<8x128xbf16>, vector<128x512xbf16>, vector<8x512xf32> -> vector<8x512xf32>
    %303 = arith.addf %302, %277 : vector<8x512xf32>
    %304 = vector.extract_strided_slice %303 {offsets = [0, 0], sizes = [8, 384], strides = [1, 1]} : vector<8x512xf32> to vector<8x384xf32>
    %305 = arith.negf %304 : vector<8x384xf32>
    %306 = math.exp %305 : vector<8x384xf32>
    %cst_61 = arith.constant 1.000000e+00 : f32
    %307 = vector.broadcast %cst_61 : f32 to vector<8x384xf32>
    %308 = arith.addf %307, %306 : vector<8x384xf32>
    %309 = arith.divf %307, %308 : vector<8x384xf32>
    %310 = vector.extract_strided_slice %309 {offsets = [0, 0], sizes = [8, 128], strides = [1, 1]} : vector<8x384xf32> to vector<8x128xf32>
    %311 = vector.extract_strided_slice %309 {offsets = [0, 128], sizes = [8, 128], strides = [1, 1]} : vector<8x384xf32> to vector<8x128xf32>
    %312 = vector.extract_strided_slice %309 {offsets = [0, 256], sizes = [8, 128], strides = [1, 1]} : vector<8x384xf32> to vector<8x128xf32>
    %313 = vector.extract_strided_slice %303 {offsets = [0, 384], sizes = [8, 128], strides = [1, 1]} : vector<8x512xf32> to vector<8x128xf32>
    %314 = math.tanh %313 : vector<8x128xf32>
    %315 = arith.mulf %311, %272 : vector<8x128xf32>
    %316 = arith.mulf %310, %314 : vector<8x128xf32>
    %317 = arith.addf %315, %316 : vector<8x128xf32>
    %318 = math.tanh %317 : vector<8x128xf32>
    %319 = arith.mulf %312, %318 : vector<8x128xf32>
    %c7_i32 = arith.constant 7 : i32
    %320 = arith.truncf %319 : vector<8x128xf32> to vector<8x128xbf16>
    %cst_62 = arith.constant dense<0.000000e+00> : vector<8x512xf32>
    %321 = tpu.matmul %320, %9, %cst_62 {dimension_numbers = #tpu.dot_dimension_numbers<[1], [0], [0], [1], [0, 0, 1, 1], [], []>} : vector<8x128xbf16>, vector<128x512xbf16>, vector<8x512xf32> -> vector<8x512xf32>
    %322 = arith.addf %321, %12 : vector<8x512xf32>
    %c8_i32_63 = arith.constant 8 : i32
    %323 = arith.muli %c7_i32, %c8_i32_63 : i32
    %324 = tpu.assume_multiple %323, 8 : i32
    %325 = arith.index_cast %324 : i32 to index
    %c0_64 = arith.constant 0 : index
    %326 = vector.load %arg10[%325, %c0_64] : memref<64x512xf32, #tpu.memory_space<vmem>>, vector<8x512xf32>
    %327 = arith.truncf %300 : vector<8x128xf32> to vector<8x128xbf16>
    %cst_65 = arith.constant dense<0.000000e+00> : vector<8x512xf32>
    %328 = tpu.matmul %327, %7, %cst_65 {dimension_numbers = #tpu.dot_dimension_numbers<[1], [0], [0], [1], [0, 0, 1, 1], [], []>} : vector<8x128xbf16>, vector<128x512xbf16>, vector<8x512xf32> -> vector<8x512xf32>
    %329 = arith.addf %326, %328 : vector<8x512xf32>
    %330 = vector.extract_strided_slice %329 {offsets = [0, 0], sizes = [8, 384], strides = [1, 1]} : vector<8x512xf32> to vector<8x384xf32>
    %331 = arith.negf %330 : vector<8x384xf32>
    %332 = math.exp %331 : vector<8x384xf32>
    %cst_66 = arith.constant 1.000000e+00 : f32
    %333 = vector.broadcast %cst_66 : f32 to vector<8x384xf32>
    %334 = arith.addf %333, %332 : vector<8x384xf32>
    %335 = arith.divf %333, %334 : vector<8x384xf32>
    %336 = vector.extract_strided_slice %335 {offsets = [0, 0], sizes = [8, 128], strides = [1, 1]} : vector<8x384xf32> to vector<8x128xf32>
    %337 = vector.extract_strided_slice %335 {offsets = [0, 128], sizes = [8, 128], strides = [1, 1]} : vector<8x384xf32> to vector<8x128xf32>
    %338 = vector.extract_strided_slice %335 {offsets = [0, 256], sizes = [8, 128], strides = [1, 1]} : vector<8x384xf32> to vector<8x128xf32>
    %339 = vector.extract_strided_slice %329 {offsets = [0, 384], sizes = [8, 128], strides = [1, 1]} : vector<8x512xf32> to vector<8x128xf32>
    %340 = math.tanh %339 : vector<8x128xf32>
    %341 = arith.mulf %337, %298 : vector<8x128xf32>
    %342 = arith.mulf %336, %340 : vector<8x128xf32>
    %343 = arith.addf %341, %342 : vector<8x128xf32>
    %344 = math.tanh %343 : vector<8x128xf32>
    %345 = arith.mulf %338, %344 : vector<8x128xf32>
    %346 = arith.truncf %345 : vector<8x128xf32> to vector<8x128xbf16>
    %cst_67 = arith.constant dense<0.000000e+00> : vector<8x512xf32>
    %347 = tpu.matmul %346, %8, %cst_67 {dimension_numbers = #tpu.dot_dimension_numbers<[1], [0], [0], [1], [0, 0, 1, 1], [], []>} : vector<8x128xbf16>, vector<128x512xbf16>, vector<8x512xf32> -> vector<8x512xf32>
    %348 = arith.addf %347, %322 : vector<8x512xf32>
    %349 = vector.extract_strided_slice %348 {offsets = [0, 0], sizes = [8, 384], strides = [1, 1]} : vector<8x512xf32> to vector<8x384xf32>
    %350 = arith.negf %349 : vector<8x384xf32>
    %351 = math.exp %350 : vector<8x384xf32>
    %cst_68 = arith.constant 1.000000e+00 : f32
    %352 = vector.broadcast %cst_68 : f32 to vector<8x384xf32>
    %353 = arith.addf %352, %351 : vector<8x384xf32>
    %354 = arith.divf %352, %353 : vector<8x384xf32>
    %355 = vector.extract_strided_slice %354 {offsets = [0, 0], sizes = [8, 128], strides = [1, 1]} : vector<8x384xf32> to vector<8x128xf32>
    %356 = vector.extract_strided_slice %354 {offsets = [0, 128], sizes = [8, 128], strides = [1, 1]} : vector<8x384xf32> to vector<8x128xf32>
    %357 = vector.extract_strided_slice %354 {offsets = [0, 256], sizes = [8, 128], strides = [1, 1]} : vector<8x384xf32> to vector<8x128xf32>
    %358 = vector.extract_strided_slice %348 {offsets = [0, 384], sizes = [8, 128], strides = [1, 1]} : vector<8x512xf32> to vector<8x128xf32>
    %359 = math.tanh %358 : vector<8x128xf32>
    %360 = arith.mulf %356, %317 : vector<8x128xf32>
    %361 = arith.mulf %355, %359 : vector<8x128xf32>
    %362 = arith.addf %360, %361 : vector<8x128xf32>
    %363 = math.tanh %362 : vector<8x128xf32>
    %364 = arith.mulf %357, %363 : vector<8x128xf32>
    %c7_i32_69 = arith.constant 7 : i32
    %365 = arith.truncf %364 : vector<8x128xf32> to vector<8x128xbf16>
    %c0_70 = arith.constant 0 : index
    %c0_71 = arith.constant 0 : index
    %366 = vector.load %arg7[%c0_70, %c0_71] : memref<128x128xbf16, #tpu.memory_space<vmem>>, vector<128x128xbf16>
    %cst_72 = arith.constant dense<0.000000e+00> : vector<8x128xf32>
    %367 = tpu.matmul %365, %366, %cst_72 {dimension_numbers = #tpu.dot_dimension_numbers<[1], [0], [0], [1], [0, 0, 1, 1], [], []>} : vector<8x128xbf16>, vector<128x128xbf16>, vector<8x128xf32> -> vector<8x128xf32>
    %c0_73 = arith.constant 0 : index
    %c0_74 = arith.constant 0 : index
    %368 = vector.load %arg8[%c0_73, %c0_74] : memref<1x128xf32, #tpu.memory_space<vmem>>, vector<1x128xf32>
    %369 = vector.broadcast %368 : vector<1x128xf32> to vector<8x128xf32>
    %370 = arith.addf %367, %369 : vector<8x128xf32>
    %371 = arith.negf %370 : vector<8x128xf32>
    %372 = math.exp %371 : vector<8x128xf32>
    %cst_75 = arith.constant 1.000000e+00 : f32
    %373 = vector.broadcast %cst_75 : f32 to vector<8x128xf32>
    %374 = arith.addf %373, %372 : vector<8x128xf32>
    %375 = arith.divf %373, %374 : vector<8x128xf32>
    %c0_76 = arith.constant 0 : index
    %c0_77 = arith.constant 0 : index
    %376 = vector.load %arg9[%c0_76, %c0_77] : memref<8x128xf32, #tpu.memory_space<vmem>>, vector<8x128xf32>
    tpu.vector_store %arg9[%c0_76, %c0_77], %375 {strides = array<i32>} : memref<8x128xf32, #tpu.memory_space<vmem>>, vector<8x128xf32>,
    return
  }
}

</mosaic_0001>

<llo_original>
// kernel: tpu_custom_call.1
$region0: #{tpu_custom_call.1}
  #allocation0 [shape = 'u32[]', space=smem, size = 0x4, offset = 0x4, fixed_abs, tag = 'smem constant byte address 0x4 - core index']
  #allocation1 [shape = 'u32[144,128]{1,0:T(1,128)}', space=vmem, size = 0x12000, scoped, tag = 'internal scratch']
  #allocation2 [shape = 'f32[64,512]{1,0:T(8,128)}', space=vmem, size = 0x20000, scoped, tag = 'scratch operand']
  %s0 = inlined_call_operand.hbm [shape: bf16[64,128], index: 0, kind: input, shape index: {}]
  %s1 = inlined_call_operand.hbm [shape: bf16[128,512], index: 1, kind: input, shape index: {}]
  %s2 = inlined_call_operand.hbm [shape: bf16[128,512], index: 2, kind: input, shape index: {}]
  %s3 = inlined_call_operand.vmem [shape: f32[1,512], index: 3, kind: input, shape index: {}]
  %s4 = inlined_call_operand.hbm [shape: bf16[128,512], index: 4, kind: input, shape index: {}]
  %s5 = inlined_call_operand.hbm [shape: bf16[128,512], index: 5, kind: input, shape index: {}]
  %s6 = inlined_call_operand.vmem [shape: f32[1,512], index: 6, kind: input, shape index: {}]
  %s7 = inlined_call_operand.hbm [shape: bf16[128,128], index: 7, kind: input, shape index: {}]
  %s8 = inlined_call_operand.vmem [shape: f32[1,128], index: 8, kind: input, shape index: {}]
  %s9 = inlined_call_operand.hbm [shape: f32[8,128], index: 9, kind: output, shape index: {}]
  %s10 = sld [smem:[#allocation0]]
  $region70: #{tpu_custom_call.1} parent=0
    _
  %s12 = ssub.s32 1, %s10
  %s13 = scalar_select 0, %s12, %s10
  $region1: #{tpu_custom_call.1} parent=0
    #allocation3 [shape = 'u8[16384]{0}', space=vmem, size = 0x4000, scoped, tag = 'input window, operand 0, single buffered']
    #allocation4 [shape = 's32[1]{0}', space=sflag, size = 0x4, scoped, tag = 'scoped memory for tpu_custom_call.1']
    #allocation5 [shape = 's32[1]{0}', space=sflag, size = 0x4, scoped, tag = 'scoped memory for tpu_custom_call.1']
    #allocation6 [shape = 'u8[131072]{0}', space=vmem, size = 0x20000, scoped, tag = 'input window, operand 1, single buffered']
    #allocation7 [shape = 's32[1]{0}', space=sflag, size = 0x4, scoped, tag = 'scoped memory for tpu_custom_call.1']
    #allocation8 [shape = 'u8[131072]{0}', space=vmem, size = 0x20000, scoped, tag = 'input window, operand 2, single buffered']
    #allocation9 [shape = 'u8[131072]{0}', space=vmem, size = 0x20000, scoped, tag = 'input window, operand 4, single buffered']
    #allocation10 [shape = 's32[1]{0}', space=sflag, size = 0x4, scoped, tag = 'scoped memory for tpu_custom_call.1']
    #allocation11 [shape = 'u8[131072]{0}', space=vmem, size = 0x20000, scoped, tag = 'input window, operand 5, single buffered']
    #allocation12 [shape = 'u8[32768]{0}', space=vmem, size = 0x8000, scoped, tag = 'input window, operand 7, single buffered']
    #allocation13 [shape = 's32[1]{0}', space=sflag, size = 0x4, scoped, tag = 'scoped memory for tpu_custom_call.1']
    #allocation14 [shape = 'u8[4096]{0}', space=vmem, size = 0x1000, scoped, tag = 'output window, operand 0, single buffered']
    %14 = vsyncpa [#allocation4], 0
    %15 = vsyncpa [#allocation7], 0
    %16 = vsyncpa [#allocation10], 0
    %17 = vsyncpa [#allocation13], 0
    %18 = vsyncpa [#allocation5], 0
    // Predicated region
    $region2: #{tpu_custom_call.1} parent=1 // pred_check
      _
    $region3: #{tpu_custom_call.1} parent=1 // pred_check_branch
      %20 = sbr.rel (0) target = $region5
    $region4: #{tpu_custom_call.1} parent=1 // pred_region
      %s22 = ssub.s32 512, 512
      %23 = vsyncadd [#allocation4], %s22
      %s24 = sshll.u32 [#allocation3], 4
      %s25 = int_to_ptr.vmem [resolvable:$true] %s24
      %30 = dma.hbm_to_vmem [thread:$0]  %s0, 512, %s25, [#allocation4], 64, 64, 4
    $region5: #{tpu_custom_call.1} parent=1 // pred_fallthru
      _
    // Predicated region
    $region6: #{tpu_custom_call.1} parent=1 // pred_check
      _
    $region7: #{tpu_custom_call.1} parent=1 // pred_check_branch
      %32 = sbr.rel (0) target = $region9
    $region8: #{tpu_custom_call.1} parent=1 // pred_region
      %s34 = ssub.s32 4096, 4096
      %35 = vsyncadd [#allocation7], %s34
      %s36 = sshll.u32 [#allocation6], 4
      %s37 = int_to_ptr.vmem [resolvable:$true] %s36
      %42 = dma.hbm_to_vmem [thread:$0]  %s1, 4096, %s37, [#allocation7], 256, 256, 16
    $region9: #{tpu_custom_call.1} parent=1 // pred_fallthru
      _
    // Predicated region
    $region10: #{tpu_custom_call.1} parent=1 // pred_check
      _
    $region11: #{tpu_custom_call.1} parent=1 // pred_check_branch
      %44 = sbr.rel (0) target = $region13
    $region12: #{tpu_custom_call.1} parent=1 // pred_region
      %s46 = ssub.s32 4096, 4096
      %47 = vsyncadd [#allocation7], %s46
      %s48 = sshll.u32 [#allocation8], 4
      %s49 = int_to_ptr.vmem [resolvable:$true] %s48
      %54 = dma.hbm_to_vmem [thread:$0]  %s2, 4096, %s49, [#allocation7], 256, 256, 16
    $region13: #{tpu_custom_call.1} parent=1 // pred_fallthru
      _
    // Predicated region
    $region14: #{tpu_custom_call.1} parent=1 // pred_check
      _
    $region15: #{tpu_custom_call.1} parent=1 // pred_check_branch
      %56 = sbr.rel (0) target = $region17
    $region16: #{tpu_custom_call.1} parent=1 // pred_region
      _
    $region17: #{tpu_custom_call.1} parent=1 // pred_fallthru
      _
    // Predicated region
    $region18: #{tpu_custom_call.1} parent=1 // pred_check
      _
    $region19: #{tpu_custom_call.1} parent=1 // pred_check_branch
      %58 = sbr.rel (0) target = $region21
    $region20: #{tpu_custom_call.1} parent=1 // pred_region
      %s60 = ssub.s32 4096, 4096
      %61 = vsyncadd [#allocation10], %s60
      %s62 = sshll.u32 [#allocation9], 4
      %s63 = int_to_ptr.vmem [resolvable:$true] %s62
      %68 = dma.hbm_to_vmem [thread:$0]  %s4, 4096, %s63, [#allocation10], 256, 256, 16
    $region21: #{tpu_custom_call.1} parent=1 // pred_fallthru
      _
    // Predicated region
    $region22: #{tpu_custom_call.1} parent=1 // pred_check
      _
    $region23: #{tpu_custom_call.1} parent=1 // pred_check_branch
      %70 = sbr.rel (0) target = $region25
    $region24: #{tpu_custom_call.1} parent=1 // pred_region
      %s72 = ssub.s32 4096, 4096
      %73 = vsyncadd [#allocation10], %s72
      %s74 = sshll.u32 [#allocation11], 4
      %s75 = int_to_ptr.vmem [resolvable:$true] %s74
      %80 = dma.hbm_to_vmem [thread:$0]  %s5, 4096, %s75, [#allocation10], 256, 256, 16
    $region25: #{tpu_custom_call.1} parent=1 // pred_fallthru
      _
    // Predicated region
    $region26: #{tpu_custom_call.1} parent=1 // pred_check
      _
    $region27: #{tpu_custom_call.1} parent=1 // pred_check_branch
      %82 = sbr.rel (0) target = $region29
    $region28: #{tpu_custom_call.1} parent=1 // pred_region
      _
    $region29: #{tpu_custom_call.1} parent=1 // pred_fallthru
      _
    // Predicated region
    $region30: #{tpu_custom_call.1} parent=1 // pred_check
      _
    $region31: #{tpu_custom_call.1} parent=1 // pred_check_branch
      %84 = sbr.rel (0) target = $region33
    $region32: #{tpu_custom_call.1} parent=1 // pred_region
      %s86 = ssub.s32 1024, 1024
      %87 = vsyncadd [#allocation13], %s86
      %s88 = sshll.u32 [#allocation12], 4
      %s89 = int_to_ptr.vmem [resolvable:$true] %s88
      %94 = dma.hbm_to_vmem [thread:$0]  %s7, 1024, %s89, [#allocation13], 64, 64, 4
    $region33: #{tpu_custom_call.1} parent=1 // pred_fallthru
      _
    // Predicated region
    $region34: #{tpu_custom_call.1} parent=1 // pred_check
      _
    $region35: #{tpu_custom_call.1} parent=1 // pred_check_branch
      %96 = sbr.rel (0) target = $region37
    $region36: #{tpu_custom_call.1} parent=1 // pred_region
      _
    $region37: #{tpu_custom_call.1} parent=1 // pred_fallthru
      _
    // Predicated region
    $region38: #{tpu_custom_call.1} parent=1 // pred_check
      _
    $region39: #{tpu_custom_call.1} parent=1 // pred_check_branch
      %98 = sbr.rel (0) target = $region41
    $region40: #{tpu_custom_call.1} parent=1 // pred_region
      %99 = dma.done [#allocation4], 512
    $region41: #{tpu_custom_call.1} parent=1 // pred_fallthru
      _
    // Predicated region
    $region42: #{tpu_custom_call.1} parent=1 // pred_check
      _
    $region43: #{tpu_custom_call.1} parent=1 // pred_check_branch
      %101 = sbr.rel (0) target = $region45
    $region44: #{tpu_custom_call.1} parent=1 // pred_region
      %102 = dma.done [#allocation7], 4096
    $region45: #{tpu_custom_call.1} parent=1 // pred_fallthru
      _
    // Predicated region
    $region46: #{tpu_custom_call.1} parent=1 // pred_check
      _
    $region47: #{tpu_custom_call.1} parent=1 // pred_check_branch
      %104 = sbr.rel (0) target = $region49
    $region48: #{tpu_custom_call.1} parent=1 // pred_region
      %105 = dma.done [#allocation7], 4096
    $region49: #{tpu_custom_call.1} parent=1 // pred_fallthru
      _
    // Predicated region
    $region50: #{tpu_custom_call.1} parent=1 // pred_check
      _
    $region51: #{tpu_custom_call.1} parent=1 // pred_check_branch
      %107 = sbr.rel (0) target = $region53
    $region52: #{tpu_custom_call.1} parent=1 // pred_region
      %108 = dma.done [#allocation10], 4096
    $region53: #{tpu_custom_call.1} parent=1 // pred_fallthru
      _
    // Predicated region
    $region54: #{tpu_custom_call.1} parent=1 // pred_check
      _
    $region55: #{tpu_custom_call.1} parent=1 // pred_check_branch
      %110 = sbr.rel (0) target = $region57
    $region56: #{tpu_custom_call.1} parent=1 // pred_region
      %111 = dma.done [#allocation10], 4096
    $region57: #{tpu_custom_call.1} parent=1 // pred_fallthru
      _
    // Predicated region
    $region58: #{tpu_custom_call.1} parent=1 // pred_check
      _
    $region59: #{tpu_custom_call.1} parent=1 // pred_check_branch
      %113 = sbr.rel (0) target = $region61
    $region60: #{tpu_custom_call.1} parent=1 // pred_region
      %114 = dma.done [#allocation13], 1024
    $region61: #{tpu_custom_call.1} parent=1 // pred_fallthru
      _
    %v116 = vld [vmem:[#allocation3] sm:$0xf]
    %v117 = vld [vmem:[#allocation3 + $0x4] sm:$0xf]
    %v118 = vld [vmem:[#allocation3 + $0x8] sm:$0xf]
    %v119 = vld [vmem:[#allocation3 + $0xc] sm:$0xf]
    %v120 = vld [vmem:[#allocation3 + $0x10] sm:$0xf]
    %v121 = vld [vmem:[#allocation3 + $0x14] sm:$0xf]
    %v122 = vld [vmem:[#allocation3 + $0x18] sm:$0xf]
    %v123 = vld [vmem:[#allocation3 + $0x1c] sm:$0xf]
    %v124 = vld [vmem:[#allocation6] sm:$0xff]
    %v125 = vld [vmem:[#allocation6 + $0x8] sm:$0xff]
    %v126 = vld [vmem:[#allocation6 + $0x10] sm:$0xff]
    %v127 = vld [vmem:[#allocation6 + $0x18] sm:$0xff]
    %v128 = vld [vmem:[#allocation6 + $0x20] sm:$0xff]
    %v129 = vld [vmem:[#allocation6 + $0x28] sm:$0xff]
    %v130 = vld [vmem:[#allocation6 + $0x30] sm:$0xff]
    %v131 = vld [vmem:[#allocation6 + $0x38] sm:$0xff]
    %v132 = vld [vmem:[#allocation6 + $0x40] sm:$0xff]
    %v133 = vld [vmem:[#allocation6 + $0x48] sm:$0xff]
    %v134 = vld [vmem:[#allocation6 + $0x50] sm:$0xff]
    %v135 = vld [vmem:[#allocation6 + $0x58] sm:$0xff]
    %v136 = vld [vmem:[#allocation6 + $0x60] sm:$0xff]
    %v137 = vld [vmem:[#allocation6 + $0x68] sm:$0xff]
    %v138 = vld [vmem:[#allocation6 + $0x70] sm:$0xff]
    %v139 = vld [vmem:[#allocation6 + $0x78] sm:$0xff]
    %v140 = vld [vmem:[#allocation6 + $0x80] sm:$0xff]
    %v141 = vld [vmem:[#allocation6 + $0x88] sm:$0xff]
    %v142 = vld [vmem:[#allocation6 + $0x90] sm:$0xff]
    %v143 = vld [vmem:[#allocation6 + $0x98] sm:$0xff]
    %v144 = vld [vmem:[#allocation6 + $0xa0] sm:$0xff]
    %v145 = vld [vmem:[#allocation6 + $0xa8] sm:$0xff]
    %v146 = vld [vmem:[#allocation6 + $0xb0] sm:$0xff]
    %v147 = vld [vmem:[#allocation6 + $0xb8] sm:$0xff]
    %v148 = vld [vmem:[#allocation6 + $0xc0] sm:$0xff]
    %v149 = vld [vmem:[#allocation6 + $0xc8] sm:$0xff]
    %v150 = vld [vmem:[#allocation6 + $0xd0] sm:$0xff]
    %v151 = vld [vmem:[#allocation6 + $0xd8] sm:$0xff]
    %v152 = vld [vmem:[#allocation6 + $0xe0] sm:$0xff]
    %v153 = vld [vmem:[#allocation6 + $0xe8] sm:$0xff]
    %v154 = vld [vmem:[#allocation6 + $0xf0] sm:$0xff]
    %v155 = vld [vmem:[#allocation6 + $0xf8] sm:$0xff]
    %v156 = vld [vmem:[%s3] sm:$0xf]
    %v158 = vlaneseq
    %v159 = vshrl.u32 %v158, 7
    %v160 = vsub.s32 0, %v159
    %v161 = vrot.slane %v156, %v160
    %v162 = vlaneseq
    %v163 = vshrl.u32 %v162, 7
    %v164 = vsub.s32 1, %v163
    %v165 = vrot.slane %v156, %v164
    %v166 = vlaneseq
    %v167 = vshrl.u32 %v166, 7
    %v168 = vsub.s32 2, %v167
    %v169 = vrot.slane %v156, %v168
    %v170 = vlaneseq
    %v171 = vshrl.u32 %v170, 7
    %v172 = vsub.s32 3, %v171
    %v173 = vrot.slane %v156, %v172
    %v186 = vunpack.c.l.b16 %v116
    %v187 = vunpack.c.l.b16 %v117
    %v188 = vunpack.c.l.b16 %v118
    %v189 = vunpack.c.l.b16 %v119
    %v190 = vunpack.c.l.b16 %v120
    %v191 = vunpack.c.l.b16 %v121
    %v192 = vunpack.c.l.b16 %v122
    %v193 = vunpack.c.l.b16 %v123
    %v194 = vpack.c.b16 %v187, %v186
    %v195 = vpack.c.b16 %v189, %v188
    %v196 = vpack.c.b16 %v191, %v190
    %v197 = vpack.c.b16 %v193, %v192
    %v234 = vunpack.c.l.b16 %v124
    %v235 = vunpack.c.h.b16 %v124
    %v236 = vunpack.c.l.b16 %v125
    %v237 = vunpack.c.h.b16 %v125
    %v238 = vunpack.c.l.b16 %v126
    %v239 = vunpack.c.h.b16 %v126
    %v240 = vunpack.c.l.b16 %v127
    %v241 = vunpack.c.h.b16 %v127
    %v242 = vunpack.c.l.b16 %v128
    %v243 = vunpack.c.h.b16 %v128
    %v244 = vunpack.c.l.b16 %v129
    %v245 = vunpack.c.h.b16 %v129
    %v246 = vunpack.c.l.b16 %v130
    %v247 = vunpack.c.h.b16 %v130
    %v248 = vunpack.c.l.b16 %v131
    %v249 = vunpack.c.h.b16 %v131
    %v250 = vunpack.c.l.b16 %v132
    %v251 = vunpack.c.h.b16 %v132
    %v252 = vunpack.c.l.b16 %v133
    %v253 = vunpack.c.h.b16 %v133
    %v254 = vunpack.c.l.b16 %v134
    %v255 = vunpack.c.h.b16 %v134
    %v256 = vunpack.c.l.b16 %v135
    %v257 = vunpack.c.h.b16 %v135
    %v258 = vunpack.c.l.b16 %v136
    %v259 = vunpack.c.h.b16 %v136
    %v260 = vunpack.c.l.b16 %v137
    %v261 = vunpack.c.h.b16 %v137
    %v262 = vunpack.c.l.b16 %v138
    %v263 = vunpack.c.h.b16 %v138
    %v264 = vunpack.c.l.b16 %v139
    %v265 = vunpack.c.h.b16 %v139
    %v266 = vunpack.c.l.b16 %v140
    %v267 = vunpack.c.h.b16 %v140
    %v268 = vunpack.c.l.b16 %v141
    %v269 = vunpack.c.h.b16 %v141
    %v270 = vunpack.c.l.b16 %v142
    %v271 = vunpack.c.h.b16 %v142
    %v272 = vunpack.c.l.b16 %v143
    %v273 = vunpack.c.h.b16 %v143
    %v274 = vunpack.c.l.b16 %v144
    %v275 = vunpack.c.h.b16 %v144
    %v276 = vunpack.c.l.b16 %v145
    %v277 = vunpack.c.h.b16 %v145
    %v278 = vunpack.c.l.b16 %v146
    %v279 = vunpack.c.h.b16 %v146
    %v280 = vunpack.c.l.b16 %v147
    %v281 = vunpack.c.h.b16 %v147
    %v282 = vunpack.c.l.b16 %v148
    %v283 = vunpack.c.h.b16 %v148
    %v284 = vunpack.c.l.b16 %v149
    %v285 = vunpack.c.h.b16 %v149
    %v286 = vunpack.c.l.b16 %v150
    %v287 = vunpack.c.h.b16 %v150
    %v288 = vunpack.c.l.b16 %v151
    %v289 = vunpack.c.h.b16 %v151
    %v290 = vunpack.c.l.b16 %v152
    %v291 = vunpack.c.h.b16 %v152
    %v292 = vunpack.c.l.b16 %v153
    %v293 = vunpack.c.h.b16 %v153
    %v294 = vunpack.c.l.b16 %v154
    %v295 = vunpack.c.h.b16 %v154
    %v296 = vunpack.c.l.b16 %v155
    %v297 = vunpack.c.h.b16 %v155
    %v298 = vpack.c.b16 %v238, %v234
    %v299 = vpack.c.b16 %v239, %v235
    %v300 = vpack.c.b16 %v240, %v236
    %v301 = vpack.c.b16 %v241, %v237
    %v302 = vpack.c.b16 %v246, %v242
    %v303 = vpack.c.b16 %v247, %v243
    %v304 = vpack.c.b16 %v248, %v244
    %v305 = vpack.c.b16 %v249, %v245
    %v306 = vpack.c.b16 %v254, %v250
    %v307 = vpack.c.b16 %v255, %v251
    %v308 = vpack.c.b16 %v256, %v252
    %v309 = vpack.c.b16 %v257, %v253
    %v310 = vpack.c.b16 %v262, %v258
    %v311 = vpack.c.b16 %v263, %v259
    %v312 = vpack.c.b16 %v264, %v260
    %v313 = vpack.c.b16 %v265, %v261
    %v314 = vpack.c.b16 %v270, %v266
    %v315 = vpack.c.b16 %v271, %v267
    %v316 = vpack.c.b16 %v272, %v268
    %v317 = vpack.c.b16 %v273, %v269
    %v318 = vpack.c.b16 %v278, %v274
    %v319 = vpack.c.b16 %v279, %v275
    %v320 = vpack.c.b16 %v280, %v276
    %v321 = vpack.c.b16 %v281, %v277
    %v322 = vpack.c.b16 %v286, %v282
    %v323 = vpack.c.b16 %v287, %v283
    %v324 = vpack.c.b16 %v288, %v284
    %v325 = vpack.c.b16 %v289, %v285
    %v326 = vpack.c.b16 %v294, %v290
    %v327 = vpack.c.b16 %v295, %v291
    %v328 = vpack.c.b16 %v296, %v292
    %v329 = vpack.c.b16 %v297, %v293
    %362 = vmatprep.subr.bf16.mxu0 %v299
    %363 = vmatpush1.bf16.msra.mxu0 %v298
    %364 = vmatprep.subr.bf16.mxu0 %v303
    %365 = vmatpush1.bf16.msra.mxu0 %v302
    %366 = vmatprep.subr.bf16.mxu0 %v307
    %367 = vmatpush1.bf16.msra.mxu0 %v306
    %368 = vmatprep.subr.bf16.mxu0 %v311
    %369 = vmatpush1.bf16.msra.mxu0 %v310
    %370 = vmatprep.subr.bf16.mxu0 %v315
    %371 = vmatpush1.bf16.msra.mxu0 %v314
    %372 = vmatprep.subr.bf16.mxu0 %v319
    %373 = vmatpush1.bf16.msra.mxu0 %v318
    %374 = vmatprep.subr.bf16.mxu0 %v323
    %375 = vmatpush1.bf16.msra.mxu0 %v322
    %376 = vmatprep.subr.bf16.mxu0 %v327
    %377 = vmatpush1.bf16.msra.mxu0 %v326
    %378 = vmatprep.subr.bf16.mxu0 0
    %379 = vmatpush1.bf16.msra.mxu0 0
    %380 = vmatprep.subr.bf16.mxu0 0
    %381 = vmatpush1.bf16.msra.mxu0 0
    %382 = vmatprep.subr.bf16.mxu0 0
    %383 = vmatpush1.bf16.msra.mxu0 0
    %384 = vmatprep.subr.bf16.mxu0 0
    %385 = vmatpush1.bf16.msra.mxu0 0
    %386 = vmatprep.subr.bf16.mxu0 0
    %387 = vmatpush1.bf16.msra.mxu0 0
    %388 = vmatprep.subr.bf16.mxu0 0
    %389 = vmatpush1.bf16.msra.mxu0 0
    %390 = vmatprep.subr.bf16.mxu0 0
    %391 = vmatpush1.bf16.msra.mxu0 0
    %392 = vmatprep.subr.bf16.mxu0 0
    %393 = vmatpush1.bf16.msra.mxu0 0
    %394 = vmatprep.mubr.bf16.mxu0 0
    %395 = vmatmul.mubr.bf16.gmra.mrb[0].mxu0 %v194
    %v396 = vpop.f32.mrb[0].mxu0
    %v397 = vadd.f32 %v161, %v396
    %v398 = vpop.f32.mrb[0].mxu0
    %v399 = vadd.f32 %v165, %v398
    %v400 = vpop.f32.mrb[0].mxu0
    %v401 = vadd.f32 %v161, %v400
    %v402 = vpop.f32.mrb[0].mxu0
    %v403 = vadd.f32 %v165, %v402
    %404 = vmatprep.mubr.bf16.mxu0 0
    %405 = vmatmul.mubr.bf16.gmra.mrb[0].mxu0 %v195
    %v406 = vpop.f32.mrb[0].mxu0
    %v407 = vadd.f32 %v161, %v406
    %v408 = vpop.f32.mrb[0].mxu0
    %v409 = vadd.f32 %v165, %v408
    %v410 = vpop.f32.mrb[0].mxu0
    %v411 = vadd.f32 %v161, %v410
    %v412 = vpop.f32.mrb[0].mxu0
    %v413 = vadd.f32 %v165, %v412
    %414 = vmatprep.mubr.bf16.mxu0 0
    %415 = vmatmul.mubr.bf16.gmra.mrb[0].mxu0 %v196
    %v416 = vpop.f32.mrb[0].mxu0
    %v417 = vadd.f32 %v161, %v416
    %v418 = vpop.f32.mrb[0].mxu0
    %v419 = vadd.f32 %v165, %v418
    %v420 = vpop.f32.mrb[0].mxu0
    %v421 = vadd.f32 %v161, %v420
    %v422 = vpop.f32.mrb[0].mxu0
    %v423 = vadd.f32 %v165, %v422
    %424 = vmatprep.mubr.bf16.mxu0 0
    %425 = vmatmul.mubr.bf16.gmra.mrb[0].mxu0 %v197
    %v426 = vpop.f32.mrb[0].mxu0
    %v427 = vadd.f32 %v161, %v426
    %v428 = vpop.f32.mrb[0].mxu0
    %v429 = vadd.f32 %v165, %v428
    %v430 = vpop.f32.mrb[0].mxu0
    %v431 = vadd.f32 %v161, %v430
    %v432 = vpop.f32.mrb[0].mxu0
    %v433 = vadd.f32 %v165, %v432
    %434 = vdwg.mxu0
    %435 = vmatprep.subr.bf16.mxu0 %v301
    %436 = vmatpush1.bf16.msra.mxu0 %v300
    %437 = vmatprep.subr.bf16.mxu0 %v305
    %438 = vmatpush1.bf16.msra.mxu0 %v304
    %439 = vmatprep.subr.bf16.mxu0 %v309
    %440 = vmatpush1.bf16.msra.mxu0 %v308
    %441 = vmatprep.subr.bf16.mxu0 %v313
    %442 = vmatpush1.bf16.msra.mxu0 %v312
    %443 = vmatprep.subr.bf16.mxu0 %v317
    %444 = vmatpush1.bf16.msra.mxu0 %v316
    %445 = vmatprep.subr.bf16.mxu0 %v321
    %446 = vmatpush1.bf16.msra.mxu0 %v320
    %447 = vmatprep.subr.bf16.mxu0 %v325
    %448 = vmatpush1.bf16.msra.mxu0 %v324
    %449 = vmatprep.subr.bf16.mxu0 %v329
    %450 = vmatpush1.bf16.msra.mxu0 %v328
    %451 = vmatprep.subr.bf16.mxu0 0
    %452 = vmatpush1.bf16.msra.mxu0 0
    %453 = vmatprep.subr.bf16.mxu0 0
    %454 = vmatpush1.bf16.msra.mxu0 0
    %455 = vmatprep.subr.bf16.mxu0 0
    %456 = vmatpush1.bf16.msra.mxu0 0
    %457 = vmatprep.subr.bf16.mxu0 0
    %458 = vmatpush1.bf16.msra.mxu0 0
    %459 = vmatprep.subr.bf16.mxu0 0
    %460 = vmatpush1.bf16.msra.mxu0 0
    %461 = vmatprep.subr.bf16.mxu0 0
    %462 = vmatpush1.bf16.msra.mxu0 0
    %463 = vmatprep.subr.bf16.mxu0 0
    %464 = vmatpush1.bf16.msra.mxu0 0
    %465 = vmatprep.subr.bf16.mxu0 0
    %466 = vmatpush1.bf16.msra.mxu0 0
    %467 = vmatprep.mubr.bf16.mxu0 0
    %468 = vmatmul.mubr.bf16.gmra.mrb[0].mxu0 %v194
    %v469 = vpop.f32.mrb[0].mxu0
    %v470 = vadd.f32 %v169, %v469
    %v471 = vpop.f32.mrb[0].mxu0
    %v472 = vadd.f32 %v173, %v471
    %v473 = vpop.f32.mrb[0].mxu0
    %v474 = vadd.f32 %v169, %v473
    %v475 = vpop.f32.mrb[0].mxu0
    %v476 = vadd.f32 %v173, %v475
    %477 = vmatprep.mubr.bf16.mxu0 0
    %478 = vmatmul.mubr.bf16.gmra.mrb[0].mxu0 %v195
    %v479 = vpop.f32.mrb[0].mxu0
    %v480 = vadd.f32 %v169, %v479
    %v481 = vpop.f32.mrb[0].mxu0
    %v482 = vadd.f32 %v173, %v481
    %v483 = vpop.f32.mrb[0].mxu0
    %v484 = vadd.f32 %v169, %v483
    %v485 = vpop.f32.mrb[0].mxu0
    %v486 = vadd.f32 %v173, %v485
    %487 = vmatprep.mubr.bf16.mxu0 0
    %488 = vmatmul.mubr.bf16.gmra.mrb[0].mxu0 %v196
    %v489 = vpop.f32.mrb[0].mxu0
    %v490 = vadd.f32 %v169, %v489
    %v491 = vpop.f32.mrb[0].mxu0
    %v492 = vadd.f32 %v173, %v491
    %v493 = vpop.f32.mrb[0].mxu0
    %v494 = vadd.f32 %v169, %v493
    %v495 = vpop.f32.mrb[0].mxu0
    %v496 = vadd.f32 %v173, %v495
    %497 = vmatprep.mubr.bf16.mxu0 0
    %498 = vmatmul.mubr.bf16.gmra.mrb[0].mxu0 %v197
    %v499 = vpop.f32.mrb[0].mxu0
    %v500 = vadd.f32 %v169, %v499
    %v501 = vpop.f32.mrb[0].mxu0
    %v502 = vadd.f32 %v173, %v501
    %v503 = vpop.f32.mrb[0].mxu0
    %v504 = vadd.f32 %v169, %v503
    %v505 = vpop.f32.mrb[0].mxu0
    %v506 = vadd.f32 %v173, %v505
    %507 = vdwg.mxu0
    %508 = vst [vmem:[#allocation2] sm:$0xff] %v397
    %509 = vst [vmem:[#allocation2 + $0x8] sm:$0xff] %v399
    %510 = vst [vmem:[#allocation2 + $0x10] sm:$0xff] %v470
    %511 = vst [vmem:[#allocation2 + $0x18] sm:$0xff] %v472
    %512 = vst [vmem:[#allocation2 + $0x20] sm:$0xff] %v401
    %513 = vst [vmem:[#allocation2 + $0x28] sm:$0xff] %v403
    %514 = vst [vmem:[#allocation2 + $0x30] sm:$0xff] %v474
    %515 = vst [vmem:[#allocation2 + $0x38] sm:$0xff] %v476
    %516 = vst [vmem:[#allocation2 + $0x40] sm:$0xff] %v407
    %517 = vst [vmem:[#allocation2 + $0x48] sm:$0xff] %v409
    %518 = vst [vmem:[#allocation2 + $0x50] sm:$0xff] %v480
    %519 = vst [vmem:[#allocation2 + $0x58] sm:$0xff] %v482
    %520 = vst [vmem:[#allocation2 + $0x60] sm:$0xff] %v411
    %521 = vst [vmem:[#allocation2 + $0x68] sm:$0xff] %v413
    %522 = vst [vmem:[#allocation2 + $0x70] sm:$0xff] %v484
    %523 = vst [vmem:[#allocation2 + $0x78] sm:$0xff] %v486
    %524 = vst [vmem:[#allocation2 + $0x80] sm:$0xff] %v417
    %525 = vst [vmem:[#allocation2 + $0x88] sm:$0xff] %v419
    %526 = vst [vmem:[#allocation2 + $0x90] sm:$0xff] %v490
    %527 = vst [vmem:[#allocation2 + $0x98] sm:$0xff] %v492
    %528 = vst [vmem:[#allocation2 + $0xa0] sm:$0xff] %v421
    %529 = vst [vmem:[#allocation2 + $0xa8] sm:$0xff] %v423
    %530 = vst [vmem:[#allocation2 + $0xb0] sm:$0xff] %v494
    %531 = vst [vmem:[#allocation2 + $0xb8] sm:$0xff] %v496
    %532 = vst [vmem:[#allocation2 + $0xc0] sm:$0xff] %v427
    %533 = vst [vmem:[#allocation2 + $0xc8] sm:$0xff] %v429
    %534 = vst [vmem:[#allocation2 + $0xd0] sm:$0xff] %v500
    %535 = vst [vmem:[#allocation2 + $0xd8] sm:$0xff] %v502
    %536 = vst [vmem:[#allocation2 + $0xe0] sm:$0xff] %v431
    %537 = vst [vmem:[#allocation2 + $0xe8] sm:$0xff] %v433
    %538 = vst [vmem:[#allocation2 + $0xf0] sm:$0xff] %v504
    %539 = vst [vmem:[#allocation2 + $0xf8] sm:$0xff] %v506
    %v540 = vld [vmem:[#allocation8] sm:$0xff]
    %v541 = vld [vmem:[#allocation8 + $0x8] sm:$0xff]
    %v542 = vld [vmem:[#allocation8 + $0x10] sm:$0xff]
    %v543 = vld [vmem:[#allocation8 + $0x18] sm:$0xff]
    %v544 = vld [vmem:[#allocation8 + $0x20] sm:$0xff]
    %v545 = vld [vmem:[#allocation8 + $0x28] sm:$0xff]
    %v546 = vld [vmem:[#allocation8 + $0x30] sm:$0xff]
    %v547 = vld [vmem:[#allocation8 + $0x38] sm:$0xff]
    %v548 = vld [vmem:[#allocation8 + $0x40] sm:$0xff]
    %v549 = vld [vmem:[#allocation8 + $0x48] sm:$0xff]
    %v550 = vld [vmem:[#allocation8 + $0x50] sm:$0xff]
    %v551 = vld [vmem:[#allocation8 + $0x58] sm:$0xff]
    %v552 = vld [vmem:[#allocation8 + $0x60] sm:$0xff]
    %v553 = vld [vmem:[#allocation8 + $0x68] sm:$0xff]
    %v554 = vld [vmem:[#allocation8 + $0x70] sm:$0xff]
    %v555 = vld [vmem:[#allocation8 + $0x78] sm:$0xff]
    %v556 = vld [vmem:[#allocation8 + $0x80] sm:$0xff]
    %v557 = vld [vmem:[#allocation8 + $0x88] sm:$0xff]
    %v558 = vld [vmem:[#allocation8 + $0x90] sm:$0xff]
    %v559 = vld [vmem:[#allocation8 + $0x98] sm:$0xff]
    %v560 = vld [vmem:[#allocation8 + $0xa0] sm:$0xff]
    %v561 = vld [vmem:[#allocation8 + $0xa8] sm:$0xff]
    %v562 = vld [vmem:[#allocation8 + $0xb0] sm:$0xff]
    %v563 = vld [vmem:[#allocation8 + $0xb8] sm:$0xff]
    %v564 = vld [vmem:[#allocation8 + $0xc0] sm:$0xff]
    %v565 = vld [vmem:[#allocation8 + $0xc8] sm:$0xff]
    %v566 = vld [vmem:[#allocation8 + $0xd0] sm:$0xff]
    %v567 = vld [vmem:[#allocation8 + $0xd8] sm:$0xff]
    %v568 = vld [vmem:[#allocation8 + $0xe0] sm:$0xff]
    %v569 = vld [vmem:[#allocation8 + $0xe8] sm:$0xff]
    %v570 = vld [vmem:[#allocation8 + $0xf0] sm:$0xff]
    %v571 = vld [vmem:[#allocation8 + $0xf8] sm:$0xff]
    %v572 = vld [vmem:[#allocation9] sm:$0xff]
    %v573 = vld [vmem:[#allocation9 + $0x8] sm:$0xff]
    %v574 = vld [vmem:[#allocation9 + $0x10] sm:$0xff]
    %v575 = vld [vmem:[#allocation9 + $0x18] sm:$0xff]
    %v576 = vld [vmem:[#allocation9 + $0x20] sm:$0xff]
    %v577 = vld [vmem:[#allocation9 + $0x28] sm:$0xff]
    %v578 = vld [vmem:[#allocation9 + $0x30] sm:$0xff]
    %v579 = vld [vmem:[#allocation9 + $0x38] sm:$0xff]
    %v580 = vld [vmem:[#allocation9 + $0x40] sm:$0xff]
    %v581 = vld [vmem:[#allocation9 + $0x48] sm:$0xff]
    %v582 = vld [vmem:[#allocation9 + $0x50] sm:$0xff]
    %v583 = vld [vmem:[#allocation9 + $0x58] sm:$0xff]
    %v584 = vld [vmem:[#allocation9 + $0x60] sm:$0xff]
    %v585 = vld [vmem:[#allocation9 + $0x68] sm:$0xff]
    %v586 = vld [vmem:[#allocation9 + $0x70] sm:$0xff]
    %v587 = vld [vmem:[#allocation9 + $0x78] sm:$0xff]
    %v588 = vld [vmem:[#allocation9 + $0x80] sm:$0xff]
    %v589 = vld [vmem:[#allocation9 + $0x88] sm:$0xff]
    %v590 = vld [vmem:[#allocation9 + $0x90] sm:$0xff]
    %v591 = vld [vmem:[#allocation9 + $0x98] sm:$0xff]
    %v592 = vld [vmem:[#allocation9 + $0xa0] sm:$0xff]
    %v593 = vld [vmem:[#allocation9 + $0xa8] sm:$0xff]
    %v594 = vld [vmem:[#allocation9 + $0xb0] sm:$0xff]
    %v595 = vld [vmem:[#allocation9 + $0xb8] sm:$0xff]
    %v596 = vld [vmem:[#allocation9 + $0xc0] sm:$0xff]
    %v597 = vld [vmem:[#allocation9 + $0xc8] sm:$0xff]
    %v598 = vld [vmem:[#allocation9 + $0xd0] sm:$0xff]
    %v599 = vld [vmem:[#allocation9 + $0xd8] sm:$0xff]
    %v600 = vld [vmem:[#allocation9 + $0xe0] sm:$0xff]
    %v601 = vld [vmem:[#allocation9 + $0xe8] sm:$0xff]
    %v602 = vld [vmem:[#allocation9 + $0xf0] sm:$0xff]
    %v603 = vld [vmem:[#allocation9 + $0xf8] sm:$0xff]
    %v604 = vld [vmem:[#allocation11] sm:$0xff]
    %v605 = vld [vmem:[#allocation11 + $0x8] sm:$0xff]
    %v606 = vld [vmem:[#allocation11 + $0x10] sm:$0xff]
    %v607 = vld [vmem:[#allocation11 + $0x18] sm:$0xff]
    %v608 = vld [vmem:[#allocation11 + $0x20] sm:$0xff]
    %v609 = vld [vmem:[#allocation11 + $0x28] sm:$0xff]
    %v610 = vld [vmem:[#allocation11 + $0x30] sm:$0xff]
    %v611 = vld [vmem:[#allocation11 + $0x38] sm:$0xff]
    %v612 = vld [vmem:[#allocation11 + $0x40] sm:$0xff]
    %v613 = vld [vmem:[#allocation11 + $0x48] sm:$0xff]
    %v614 = vld [vmem:[#allocation11 + $0x50] sm:$0xff]
    %v615 = vld [vmem:[#allocation11 + $0x58] sm:$0xff]
    %v616 = vld [vmem:[#allocation11 + $0x60] sm:$0xff]
    %v617 = vld [vmem:[#allocation11 + $0x68] sm:$0xff]
    %v618 = vld [vmem:[#allocation11 + $0x70] sm:$0xff]
    %v619 = vld [vmem:[#allocation11 + $0x78] sm:$0xff]
    %v620 = vld [vmem:[#allocation11 + $0x80] sm:$0xff]
    %v621 = vld [vmem:[#allocation11 + $0x88] sm:$0xff]
    %v622 = vld [vmem:[#allocation11 + $0x90] sm:$0xff]
    %v623 = vld [vmem:[#allocation11 + $0x98] sm:$0xff]
    %v624 = vld [vmem:[#allocation11 + $0xa0] sm:$0xff]
    %v625 = vld [vmem:[#allocation11 + $0xa8] sm:$0xff]
    %v626 = vld [vmem:[#allocation11 + $0xb0] sm:$0xff]
    %v627 = vld [vmem:[#allocation11 + $0xb8] sm:$0xff]
    %v628 = vld [vmem:[#allocation11 + $0xc0] sm:$0xff]
    %v629 = vld [vmem:[#allocation11 + $0xc8] sm:$0xff]
    %v630 = vld [vmem:[#allocation11 + $0xd0] sm:$0xff]
    %v631 = vld [vmem:[#allocation11 + $0xd8] sm:$0xff]
    %v632 = vld [vmem:[#allocation11 + $0xe0] sm:$0xff]
    %v633 = vld [vmem:[#allocation11 + $0xe8] sm:$0xff]
    %v634 = vld [vmem:[#allocation11 + $0xf0] sm:$0xff]
    %v635 = vld [vmem:[#allocation11 + $0xf8] sm:$0xff]
    %v636 = vld [vmem:[%s6] sm:$0xf]
    %v638 = vlaneseq
    %v639 = vshrl.u32 %v638, 7
    %v640 = vsub.s32 0, %v639
    %v641 = vrot.slane %v636, %v640
    %v642 = vlaneseq
    %v643 = vshrl.u32 %v642, 7
    %v644 = vsub.s32 1, %v643
    %v645 = vrot.slane %v636, %v644
    %v646 = vlaneseq
    %v647 = vshrl.u32 %v646, 7
    %v648 = vsub.s32 2, %v647
    %v649 = vrot.slane %v636, %v648
    %v650 = vlaneseq
    %v651 = vshrl.u32 %v650, 7
    %v652 = vsub.s32 3, %v651
    %v653 = vrot.slane %v636, %v652
    %v658 = vld [vmem:[#allocation2] sm:$0xff]
    %v659 = vld [vmem:[#allocation2 + $0x8] sm:$0xff]
    %v660 = vld [vmem:[#allocation2 + $0x10] sm:$0xff]
    %v661 = vld [vmem:[#allocation2 + $0x18] sm:$0xff]
    %v662 = vxor.u32 %v658, 2147483648
    %v663 = vxor.u32 %v659, 2147483648
    %v664 = vxor.u32 %v660, 2147483648
    %v665 = vmul.f32 %v662, 1.442695
    %v666 = vpow.pop %v665
    %v667 = vmul.f32 %v663, 1.442695
    %v668 = vpow.pop %v667
    %v669 = vmul.f32 %v664, 1.442695
    %v670 = vpow.pop %v669
    %v671 = vadd.f32 %v666, 1.0
    %v672 = vadd.f32 %v668, 1.0
    %v673 = vadd.f32 %v670, 1.0
    %v674 = vrcp.pop %v671
    %v675 = vmul.f32 1.0, %v674
    %v676 = vrcp.pop %v672
    %v677 = vmul.f32 1.0, %v676
    %v678 = vrcp.pop %v673
    %v679 = vmul.f32 1.0, %v678
    %v680 = vtanh.pop %v661
    %v681 = vmul.f32 %v677, 0.0
    %v682 = vmul.f32 %v675, %v680
    %v683 = vadd.f32 %v681, %v682
    %v684 = vtanh.pop %v683
    %v685 = vmul.f32 %v679, %v684
    %v686 = vpack.c.bf16 %v685, %v685
    %v719 = vunpack.c.l.b16 %v572
    %v720 = vunpack.c.h.b16 %v572
    %v721 = vunpack.c.l.b16 %v573
    %v722 = vunpack.c.h.b16 %v573
    %v723 = vunpack.c.l.b16 %v574
    %v724 = vunpack.c.h.b16 %v574
    %v725 = vunpack.c.l.b16 %v575
    %v726 = vunpack.c.h.b16 %v575
    %v727 = vunpack.c.l.b16 %v576
    %v728 = vunpack.c.h.b16 %v576
    %v729 = vunpack.c.l.b16 %v577
    %v730 = vunpack.c.h.b16 %v577
    %v731 = vunpack.c.l.b16 %v578
    %v732 = vunpack.c.h.b16 %v578
    %v733 = vunpack.c.l.b16 %v579
    %v734 = vunpack.c.h.b16 %v579
    %v735 = vunpack.c.l.b16 %v580
    %v736 = vunpack.c.h.b16 %v580
    %v737 = vunpack.c.l.b16 %v581
    %v738 = vunpack.c.h.b16 %v581
    %v739 = vunpack.c.l.b16 %v582
    %v740 = vunpack.c.h.b16 %v582
    %v741 = vunpack.c.l.b16 %v583
    %v742 = vunpack.c.h.b16 %v583
    %v743 = vunpack.c.l.b16 %v584
    %v744 = vunpack.c.h.b16 %v584
    %v745 = vunpack.c.l.b16 %v585
    %v746 = vunpack.c.h.b16 %v585
    %v747 = vunpack.c.l.b16 %v586
    %v748 = vunpack.c.h.b16 %v586
    %v749 = vunpack.c.l.b16 %v587
    %v750 = vunpack.c.h.b16 %v587
    %v751 = vunpack.c.l.b16 %v588
    %v752 = vunpack.c.h.b16 %v588
    %v753 = vunpack.c.l.b16 %v589
    %v754 = vunpack.c.h.b16 %v589
    %v755 = vunpack.c.l.b16 %v590
    %v756 = vunpack.c.h.b16 %v590
    %v757 = vunpack.c.l.b16 %v591
    %v758 = vunpack.c.h.b16 %v591
    %v759 = vunpack.c.l.b16 %v592
    %v760 = vunpack.c.h.b16 %v592
    %v761 = vunpack.c.l.b16 %v593
    %v762 = vunpack.c.h.b16 %v593
    %v763 = vunpack.c.l.b16 %v594
    %v764 = vunpack.c.h.b16 %v594
    %v765 = vunpack.c.l.b16 %v595
    %v766 = vunpack.c.h.b16 %v595
    %v767 = vunpack.c.l.b16 %v596
    %v768 = vunpack.c.h.b16 %v596
    %v769 = vunpack.c.l.b16 %v597
    %v770 = vunpack.c.h.b16 %v597
    %v771 = vunpack.c.l.b16 %v598
    %v772 = vunpack.c.h.b16 %v598
    %v773 = vunpack.c.l.b16 %v599
    %v774 = vunpack.c.h.b16 %v599
    %v775 = vunpack.c.l.b16 %v600
    %v776 = vunpack.c.h.b16 %v600
    %v777 = vunpack.c.l.b16 %v601
    %v778 = vunpack.c.h.b16 %v601
    %v779 = vunpack.c.l.b16 %v602
    %v780 = vunpack.c.h.b16 %v602
    %v781 = vunpack.c.l.b16 %v603
    %v782 = vunpack.c.h.b16 %v603
    %v783 = vpack.c.b16 %v723, %v719
    %v784 = vpack.c.b16 %v724, %v720
    %v785 = vpack.c.b16 %v725, %v721
    %v786 = vpack.c.b16 %v726, %v722
    %v787 = vpack.c.b16 %v731, %v727
    %v788 = vpack.c.b16 %v732, %v728
    %v789 = vpack.c.b16 %v733, %v729
    %v790 = vpack.c.b16 %v734, %v730
    %v791 = vpack.c.b16 %v739, %v735
    %v792 = vpack.c.b16 %v740, %v736
    %v793 = vpack.c.b16 %v741, %v737
    %v794 = vpack.c.b16 %v742, %v738
    %v795 = vpack.c.b16 %v747, %v743
    %v796 = vpack.c.b16 %v748, %v744
    %v797 = vpack.c.b16 %v749, %v745
    %v798 = vpack.c.b16 %v750, %v746
    %v799 = vpack.c.b16 %v755, %v751
    %v800 = vpack.c.b16 %v756, %v752
    %v801 = vpack.c.b16 %v757, %v753
    %v802 = vpack.c.b16 %v758, %v754
    %v803 = vpack.c.b16 %v763, %v759
    %v804 = vpack.c.b16 %v764, %v760
    %v805 = vpack.c.b16 %v765, %v761
    %v806 = vpack.c.b16 %v766, %v762
    %v807 = vpack.c.b16 %v771, %v767
    %v808 = vpack.c.b16 %v772, %v768
    %v809 = vpack.c.b16 %v773, %v769
    %v810 = vpack.c.b16 %v774, %v770
    %v811 = vpack.c.b16 %v779, %v775
    %v812 = vpack.c.b16 %v780, %v776
    %v813 = vpack.c.b16 %v781, %v777
    %v814 = vpack.c.b16 %v782, %v778
    %847 = vmatprep.subr.bf16.mxu0 %v784
    %848 = vmatpush1.bf16.msra.mxu0 %v783
    %849 = vmatprep.subr.bf16.mxu0 %v788
    %850 = vmatpush1.bf16.msra.mxu0 %v787
    %851 = vmatprep.subr.bf16.mxu0 %v792
    %852 = vmatpush1.bf16.msra.mxu0 %v791
    %853 = vmatprep.subr.bf16.mxu0 %v796
    %854 = vmatpush1.bf16.msra.mxu0 %v795
    %855 = vmatprep.subr.bf16.mxu0 %v800
    %856 = vmatpush1.bf16.msra.mxu0 %v799
    %857 = vmatprep.subr.bf16.mxu0 %v804
    %858 = vmatpush1.bf16.msra.mxu0 %v803
    %859 = vmatprep.subr.bf16.mxu0 %v808
    %860 = vmatpush1.bf16.msra.mxu0 %v807
    %861 = vmatprep.subr.bf16.mxu0 %v812
    %862 = vmatpush1.bf16.msra.mxu0 %v811
    %863 = vmatprep.subr.bf16.mxu0 0
    %864 = vmatpush1.bf16.msra.mxu0 0
    %865 = vmatprep.subr.bf16.mxu0 0
    %866 = vmatpush1.bf16.msra.mxu0 0
    %867 = vmatprep.subr.bf16.mxu0 0
    %868 = vmatpush1.bf16.msra.mxu0 0
    %869 = vmatprep.subr.bf16.mxu0 0
    %870 = vmatpush1.bf16.msra.mxu0 0
    %871 = vmatprep.subr.bf16.mxu0 0
    %872 = vmatpush1.bf16.msra.mxu0 0
    %873 = vmatprep.subr.bf16.mxu0 0
    %874 = vmatpush1.bf16.msra.mxu0 0
    %875 = vmatprep.subr.bf16.mxu0 0
    %876 = vmatpush1.bf16.msra.mxu0 0
    %877 = vmatprep.subr.bf16.mxu0 0
    %878 = vmatpush1.bf16.msra.mxu0 0
    %879 = vmatprep.mubr.bf16.mxu0 0
    %880 = vmatmul.mubr.bf16.gmra.mrb[0].mxu0 %v686
    %v881 = vpop.f32.mrb[0].mxu0
    %v882 = vadd.f32 %v641, %v881
    %v883 = vpop.f32.mrb[0].mxu0
    %v884 = vadd.f32 %v645, %v883
    %v885 = vpop.f32.mrb[0].mxu0
    %v886 = vpop.f32.mrb[0].mxu0
    %887 = vdwg.mxu0
    %888 = vmatprep.subr.bf16.mxu0 %v786
    %889 = vmatpush1.bf16.msra.mxu0 %v785
    %890 = vmatprep.subr.bf16.mxu0 %v790
    %891 = vmatpush1.bf16.msra.mxu0 %v789
    %892 = vmatprep.subr.bf16.mxu0 %v794
    %893 = vmatpush1.bf16.msra.mxu0 %v793
    %894 = vmatprep.subr.bf16.mxu0 %v798
    %895 = vmatpush1.bf16.msra.mxu0 %v797
    %896 = vmatprep.subr.bf16.mxu0 %v802
    %897 = vmatpush1.bf16.msra.mxu0 %v801
    %898 = vmatprep.subr.bf16.mxu0 %v806
    %899 = vmatpush1.bf16.msra.mxu0 %v805
    %900 = vmatprep.subr.bf16.mxu0 %v810
    %901 = vmatpush1.bf16.msra.mxu0 %v809
    %902 = vmatprep.subr.bf16.mxu0 %v814
    %903 = vmatpush1.bf16.msra.mxu0 %v813
    %904 = vmatprep.subr.bf16.mxu0 0
    %905 = vmatpush1.bf16.msra.mxu0 0
    %906 = vmatprep.subr.bf16.mxu0 0
    %907 = vmatpush1.bf16.msra.mxu0 0
    %908 = vmatprep.subr.bf16.mxu0 0
    %909 = vmatpush1.bf16.msra.mxu0 0
    %910 = vmatprep.subr.bf16.mxu0 0
    %911 = vmatpush1.bf16.msra.mxu0 0
    %912 = vmatprep.subr.bf16.mxu0 0
    %913 = vmatpush1.bf16.msra.mxu0 0
    %914 = vmatprep.subr.bf16.mxu0 0
    %915 = vmatpush1.bf16.msra.mxu0 0
    %916 = vmatprep.subr.bf16.mxu0 0
    %917 = vmatpush1.bf16.msra.mxu0 0
    %918 = vmatprep.subr.bf16.mxu0 0
    %919 = vmatpush1.bf16.msra.mxu0 0
    %920 = vmatprep.mubr.bf16.mxu0 0
    %921 = vmatmul.mubr.bf16.gmra.mrb[0].mxu0 %v686
    %v922 = vpop.f32.mrb[0].mxu0
    %v923 = vadd.f32 %v649, %v922
    %v924 = vpop.f32.mrb[0].mxu0
    %v925 = vadd.f32 %v653, %v924
    %v926 = vpop.f32.mrb[0].mxu0
    %v927 = vpop.f32.mrb[0].mxu0
    %928 = vdwg.mxu0
    %v929 = vxor.u32 %v882, 2147483648
    %v930 = vxor.u32 %v884, 2147483648
    %v931 = vxor.u32 %v923, 2147483648
    %v932 = vmul.f32 %v929, 1.442695
    %v933 = vpow.pop %v932
    %v934 = vmul.f32 %v930, 1.442695
    %v935 = vpow.pop %v934
    %v936 = vmul.f32 %v931, 1.442695
    %v937 = vpow.pop %v936
    %v938 = vadd.f32 %v933, 1.0
    %v939 = vadd.f32 %v935, 1.0
    %v940 = vadd.f32 %v937, 1.0
    %v941 = vrcp.pop %v938
    %v942 = vmul.f32 1.0, %v941
    %v943 = vrcp.pop %v939
    %v944 = vmul.f32 1.0, %v943
    %v945 = vrcp.pop %v940
    %v946 = vmul.f32 1.0, %v945
    %v947 = vtanh.pop %v925
    %v948 = vmul.f32 %v944, 0.0
    %v949 = vmul.f32 %v942, %v947
    %v950 = vadd.f32 %v948, %v949
    %v951 = vtanh.pop %v950
    %v952 = vmul.f32 %v946, %v951
    %v953 = vpack.c.bf16 %v952, %v952
    %v986 = vunpack.c.l.b16 %v604
    %v987 = vunpack.c.h.b16 %v604
    %v988 = vunpack.c.l.b16 %v605
    %v989 = vunpack.c.h.b16 %v605
    %v990 = vunpack.c.l.b16 %v606
    %v991 = vunpack.c.h.b16 %v606
    %v992 = vunpack.c.l.b16 %v607
    %v993 = vunpack.c.h.b16 %v607
    %v994 = vunpack.c.l.b16 %v608
    %v995 = vunpack.c.h.b16 %v608
    %v996 = vunpack.c.l.b16 %v609
    %v997 = vunpack.c.h.b16 %v609
    %v998 = vunpack.c.l.b16 %v610
    %v999 = vunpack.c.h.b16 %v610
    %v1000 = vunpack.c.l.b16 %v611
    %v1001 = vunpack.c.h.b16 %v611
    %v1002 = vunpack.c.l.b16 %v612
    %v1003 = vunpack.c.h.b16 %v612
    %v1004 = vunpack.c.l.b16 %v613
    %v1005 = vunpack.c.h.b16 %v613
    %v1006 = vunpack.c.l.b16 %v614
    %v1007 = vunpack.c.h.b16 %v614
    %v1008 = vunpack.c.l.b16 %v615
    %v1009 = vunpack.c.h.b16 %v615
    %v1010 = vunpack.c.l.b16 %v616
    %v1011 = vunpack.c.h.b16 %v616
    %v1012 = vunpack.c.l.b16 %v617
    %v1013 = vunpack.c.h.b16 %v617
    %v1014 = vunpack.c.l.b16 %v618
    %v1015 = vunpack.c.h.b16 %v618
    %v1016 = vunpack.c.l.b16 %v619
    %v1017 = vunpack.c.h.b16 %v619
    %v1018 = vunpack.c.l.b16 %v620
    %v1019 = vunpack.c.h.b16 %v620
    %v1020 = vunpack.c.l.b16 %v621
    %v1021 = vunpack.c.h.b16 %v621
    %v1022 = vunpack.c.l.b16 %v622
    %v1023 = vunpack.c.h.b16 %v622
    %v1024 = vunpack.c.l.b16 %v623
    %v1025 = vunpack.c.h.b16 %v623
    %v1026 = vunpack.c.l.b16 %v624
    %v1027 = vunpack.c.h.b16 %v624
    %v1028 = vunpack.c.l.b16 %v625
    %v1029 = vunpack.c.h.b16 %v625
    %v1030 = vunpack.c.l.b16 %v626
    %v1031 = vunpack.c.h.b16 %v626
    %v1032 = vunpack.c.l.b16 %v627
    %v1033 = vunpack.c.h.b16 %v627
    %v1034 = vunpack.c.l.b16 %v628
    %v1035 = vunpack.c.h.b16 %v628
    %v1036 = vunpack.c.l.b16 %v629
    %v1037 = vunpack.c.h.b16 %v629
    %v1038 = vunpack.c.l.b16 %v630
    %v1039 = vunpack.c.h.b16 %v630
    %v1040 = vunpack.c.l.b16 %v631
    %v1041 = vunpack.c.h.b16 %v631
    %v1042 = vunpack.c.l.b16 %v632
    %v1043 = vunpack.c.h.b16 %v632
    %v1044 = vunpack.c.l.b16 %v633
    %v1045 = vunpack.c.h.b16 %v633
    %v1046 = vunpack.c.l.b16 %v634
    %v1047 = vunpack.c.h.b16 %v634
    %v1048 = vunpack.c.l.b16 %v635
    %v1049 = vunpack.c.h.b16 %v635
    %v1050 = vpack.c.b16 %v990, %v986
    %v1051 = vpack.c.b16 %v991, %v987
    %v1052 = vpack.c.b16 %v992, %v988
    %v1053 = vpack.c.b16 %v993, %v989
    %v1054 = vpack.c.b16 %v998, %v994
    %v1055 = vpack.c.b16 %v999, %v995
    %v1056 = vpack.c.b16 %v1000, %v996
    %v1057 = vpack.c.b16 %v1001, %v997
    %v1058 = vpack.c.b16 %v1006, %v1002
    %v1059 = vpack.c.b16 %v1007, %v1003
    %v1060 = vpack.c.b16 %v1008, %v1004
    %v1061 = vpack.c.b16 %v1009, %v1005
    %v1062 = vpack.c.b16 %v1014, %v1010
    %v1063 = vpack.c.b16 %v1015, %v1011
    %v1064 = vpack.c.b16 %v1016, %v1012
    %v1065 = vpack.c.b16 %v1017, %v1013
    %v1066 = vpack.c.b16 %v1022, %v1018
    %v1067 = vpack.c.b16 %v1023, %v1019
    %v1068 = vpack.c.b16 %v1024, %v1020
    %v1069 = vpack.c.b16 %v1025, %v1021
    %v1070 = vpack.c.b16 %v1030, %v1026
    %v1071 = vpack.c.b16 %v1031, %v1027
    %v1072 = vpack.c.b16 %v1032, %v1028
    %v1073 = vpack.c.b16 %v1033, %v1029
    %v1074 = vpack.c.b16 %v1038, %v1034
    %v1075 = vpack.c.b16 %v1039, %v1035
    %v1076 = vpack.c.b16 %v1040, %v1036
    %v1077 = vpack.c.b16 %v1041, %v1037
    %v1078 = vpack.c.b16 %v1046, %v1042
    %v1079 = vpack.c.b16 %v1047, %v1043
    %v1080 = vpack.c.b16 %v1048, %v1044
    %v1081 = vpack.c.b16 %v1049, %v1045
    %1114 = vmatprep.subr.bf16.mxu0 %v1051
    %1115 = vmatpush1.bf16.msra.mxu0 %v1050
    %1116 = vmatprep.subr.bf16.mxu0 %v1055
    %1117 = vmatpush1.bf16.msra.mxu0 %v1054
    %1118 = vmatprep.subr.bf16.mxu0 %v1059
    %1119 = vmatpush1.bf16.msra.mxu0 %v1058
    %1120 = vmatprep.subr.bf16.mxu0 %v1063
    %1121 = vmatpush1.bf16.msra.mxu0 %v1062
    %1122 = vmatprep.subr.bf16.mxu0 %v1067
    %1123 = vmatpush1.bf16.msra.mxu0 %v1066
    %1124 = vmatprep.subr.bf16.mxu0 %v1071
    %1125 = vmatpush1.bf16.msra.mxu0 %v1070
    %1126 = vmatprep.subr.bf16.mxu0 %v1075
    %1127 = vmatpush1.bf16.msra.mxu0 %v1074
    %1128 = vmatprep.subr.bf16.mxu0 %v1079
    %1129 = vmatpush1.bf16.msra.mxu0 %v1078
    %1130 = vmatprep.subr.bf16.mxu0 0
    %1131 = vmatpush1.bf16.msra.mxu0 0
    %1132 = vmatprep.subr.bf16.mxu0 0
    %1133 = vmatpush1.bf16.msra.mxu0 0
    %1134 = vmatprep.subr.bf16.mxu0 0
    %1135 = vmatpush1.bf16.msra.mxu0 0
    %1136 = vmatprep.subr.bf16.mxu0 0
    %1137 = vmatpush1.bf16.msra.mxu0 0
    %1138 = vmatprep.subr.bf16.mxu0 0
    %1139 = vmatpush1.bf16.msra.mxu0 0
    %1140 = vmatprep.subr.bf16.mxu0 0
    %1141 = vmatpush1.bf16.msra.mxu0 0
    %1142 = vmatprep.subr.bf16.mxu0 0
    %1143 = vmatpush1.bf16.msra.mxu0 0
    %1144 = vmatprep.subr.bf16.mxu0 0
    %1145 = vmatpush1.bf16.msra.mxu0 0
    %1146 = vmatprep.mubr.bf16.mxu0 0
    %1147 = vmatmul.mubr.bf16.gmra.mrb[0].mxu0 %v953
    %v1148 = vpop.f32.mrb[0].mxu0
    %v1149 = vadd.f32 %v641, %v1148
    %v1150 = vpop.f32.mrb[0].mxu0
    %v1151 = vadd.f32 %v645, %v1150
    %v1152 = vpop.f32.mrb[0].mxu0
    %v1153 = vpop.f32.mrb[0].mxu0
    %1154 = vdwg.mxu0
    %1155 = vmatprep.subr.bf16.mxu0 %v1053
    %1156 = vmatpush1.bf16.msra.mxu0 %v1052
    %1157 = vmatprep.subr.bf16.mxu0 %v1057
    %1158 = vmatpush1.bf16.msra.mxu0 %v1056
    %1159 = vmatprep.subr.bf16.mxu0 %v1061
    %1160 = vmatpush1.bf16.msra.mxu0 %v1060
    %1161 = vmatprep.subr.bf16.mxu0 %v1065
    %1162 = vmatpush1.bf16.msra.mxu0 %v1064
    %1163 = vmatprep.subr.bf16.mxu0 %v1069
    %1164 = vmatpush1.bf16.msra.mxu0 %v1068
    %1165 = vmatprep.subr.bf16.mxu0 %v1073
    %1166 = vmatpush1.bf16.msra.mxu0 %v1072
    %1167 = vmatprep.subr.bf16.mxu0 %v1077
    %1168 = vmatpush1.bf16.msra.mxu0 %v1076
    %1169 = vmatprep.subr.bf16.mxu0 %v1081
    %1170 = vmatpush1.bf16.msra.mxu0 %v1080
    %1171 = vmatprep.subr.bf16.mxu0 0
    %1172 = vmatpush1.bf16.msra.mxu0 0
    %1173 = vmatprep.subr.bf16.mxu0 0
    %1174 = vmatpush1.bf16.msra.mxu0 0
    %1175 = vmatprep.subr.bf16.mxu0 0
    %1176 = vmatpush1.bf16.msra.mxu0 0
    %1177 = vmatprep.subr.bf16.mxu0 0
    %1178 = vmatpush1.bf16.msra.mxu0 0
    %1179 = vmatprep.subr.bf16.mxu0 0
    %1180 = vmatpush1.bf16.msra.mxu0 0
    %1181 = vmatprep.subr.bf16.mxu0 0
    %1182 = vmatpush1.bf16.msra.mxu0 0
    %1183 = vmatprep.subr.bf16.mxu0 0
    %1184 = vmatpush1.bf16.msra.mxu0 0
    %1185 = vmatprep.subr.bf16.mxu0 0
    %1186 = vmatpush1.bf16.msra.mxu0 0
    %1187 = vmatprep.mubr.bf16.mxu0 0
    %1188 = vmatmul.mubr.bf16.gmra.mrb[0].mxu0 %v953
    %v1189 = vpop.f32.mrb[0].mxu0
    %v1190 = vadd.f32 %v649, %v1189
    %v1191 = vpop.f32.mrb[0].mxu0
    %v1192 = vadd.f32 %v653, %v1191
    %v1193 = vpop.f32.mrb[0].mxu0
    %v1194 = vpop.f32.mrb[0].mxu0
    %1195 = vdwg.mxu0
    %s1196 = smul.u32 1, 4
    %s1197 = smul.addr %s1196, 8
    %s1198 = scalar_lea.vmem [#allocation2], %s1197
    %v1199 = vld [vmem:[%s1198] sm:$0xff]
    %v1200 = vld [vmem:[%s1198 + $0x8] sm:$0xff]
    %v1201 = vld [vmem:[%s1198 + $0x10] sm:$0xff]
    %v1202 = vld [vmem:[%s1198 + $0x18] sm:$0xff]
    %v1235 = vunpack.c.l.b16 %v540
    %v1236 = vunpack.c.h.b16 %v540
    %v1237 = vunpack.c.l.b16 %v541
    %v1238 = vunpack.c.h.b16 %v541
    %v1239 = vunpack.c.l.b16 %v542
    %v1240 = vunpack.c.h.b16 %v542
    %v1241 = vunpack.c.l.b16 %v543
    %v1242 = vunpack.c.h.b16 %v543
    %v1243 = vunpack.c.l.b16 %v544
    %v1244 = vunpack.c.h.b16 %v544
    %v1245 = vunpack.c.l.b16 %v545
    %v1246 = vunpack.c.h.b16 %v545
    %v1247 = vunpack.c.l.b16 %v546
    %v1248 = vunpack.c.h.b16 %v546
    %v1249 = vunpack.c.l.b16 %v547
    %v1250 = vunpack.c.h.b16 %v547
    %v1251 = vunpack.c.l.b16 %v548
    %v1252 = vunpack.c.h.b16 %v548
    %v1253 = vunpack.c.l.b16 %v549
    %v1254 = vunpack.c.h.b16 %v549
    %v1255 = vunpack.c.l.b16 %v550
    %v1256 = vunpack.c.h.b16 %v550
    %v1257 = vunpack.c.l.b16 %v551
    %v1258 = vunpack.c.h.b16 %v551
    %v1259 = vunpack.c.l.b16 %v552
    %v1260 = vunpack.c.h.b16 %v552
    %v1261 = vunpack.c.l.b16 %v553
    %v1262 = vunpack.c.h.b16 %v553
    %v1263 = vunpack.c.l.b16 %v554
    %v1264 = vunpack.c.h.b16 %v554
    %v1265 = vunpack.c.l.b16 %v555
    %v1266 = vunpack.c.h.b16 %v555
    %v1267 = vunpack.c.l.b16 %v556
    %v1268 = vunpack.c.h.b16 %v556
    %v1269 = vunpack.c.l.b16 %v557
    %v1270 = vunpack.c.h.b16 %v557
    %v1271 = vunpack.c.l.b16 %v558
    %v1272 = vunpack.c.h.b16 %v558
    %v1273 = vunpack.c.l.b16 %v559
    %v1274 = vunpack.c.h.b16 %v559
    %v1275 = vunpack.c.l.b16 %v560
    %v1276 = vunpack.c.h.b16 %v560
    %v1277 = vunpack.c.l.b16 %v561
    %v1278 = vunpack.c.h.b16 %v561
    %v1279 = vunpack.c.l.b16 %v562
    %v1280 = vunpack.c.h.b16 %v562
    %v1281 = vunpack.c.l.b16 %v563
    %v1282 = vunpack.c.h.b16 %v563
    %v1283 = vunpack.c.l.b16 %v564
    %v1284 = vunpack.c.h.b16 %v564
    %v1285 = vunpack.c.l.b16 %v565
    %v1286 = vunpack.c.h.b16 %v565
    %v1287 = vunpack.c.l.b16 %v566
    %v1288 = vunpack.c.h.b16 %v566
    %v1289 = vunpack.c.l.b16 %v567
    %v1290 = vunpack.c.h.b16 %v567
    %v1291 = vunpack.c.l.b16 %v568
    %v1292 = vunpack.c.h.b16 %v568
    %v1293 = vunpack.c.l.b16 %v569
    %v1294 = vunpack.c.h.b16 %v569
    %v1295 = vunpack.c.l.b16 %v570
    %v1296 = vunpack.c.h.b16 %v570
    %v1297 = vunpack.c.l.b16 %v571
    %v1298 = vunpack.c.h.b16 %v571
    %v1299 = vpack.c.b16 %v1239, %v1235
    %v1300 = vpack.c.b16 %v1240, %v1236
    %v1301 = vpack.c.b16 %v1241, %v1237
    %v1302 = vpack.c.b16 %v1242, %v1238
    %v1303 = vpack.c.b16 %v1247, %v1243
    %v1304 = vpack.c.b16 %v1248, %v1244
    %v1305 = vpack.c.b16 %v1249, %v1245
    %v1306 = vpack.c.b16 %v1250, %v1246
    %v1307 = vpack.c.b16 %v1255, %v1251
    %v1308 = vpack.c.b16 %v1256, %v1252
    %v1309 = vpack.c.b16 %v1257, %v1253
    %v1310 = vpack.c.b16 %v1258, %v1254
    %v1311 = vpack.c.b16 %v1263, %v1259
    %v1312 = vpack.c.b16 %v1264, %v1260
    %v1313 = vpack.c.b16 %v1265, %v1261
    %v1314 = vpack.c.b16 %v1266, %v1262
    %v1315 = vpack.c.b16 %v1271, %v1267
    %v1316 = vpack.c.b16 %v1272, %v1268
    %v1317 = vpack.c.b16 %v1273, %v1269
    %v1318 = vpack.c.b16 %v1274, %v1270
    %v1319 = vpack.c.b16 %v1279, %v1275
    %v1320 = vpack.c.b16 %v1280, %v1276
    %v1321 = vpack.c.b16 %v1281, %v1277
    %v1322 = vpack.c.b16 %v1282, %v1278
    %v1323 = vpack.c.b16 %v1287, %v1283
    %v1324 = vpack.c.b16 %v1288, %v1284
    %v1325 = vpack.c.b16 %v1289, %v1285
    %v1326 = vpack.c.b16 %v1290, %v1286
    %v1327 = vpack.c.b16 %v1295, %v1291
    %v1328 = vpack.c.b16 %v1296, %v1292
    %v1329 = vpack.c.b16 %v1297, %v1293
    %v1330 = vpack.c.b16 %v1298, %v1294
    %1363 = vmatprep.subr.bf16.mxu0 %v1300
    %1364 = vmatpush1.bf16.msra.mxu0 %v1299
    %1365 = vmatprep.subr.bf16.mxu0 %v1304
    %1366 = vmatpush1.bf16.msra.mxu0 %v1303
    %1367 = vmatprep.subr.bf16.mxu0 %v1308
    %1368 = vmatpush1.bf16.msra.mxu0 %v1307
    %1369 = vmatprep.subr.bf16.mxu0 %v1312
    %1370 = vmatpush1.bf16.msra.mxu0 %v1311
    %1371 = vmatprep.subr.bf16.mxu0 %v1316
    %1372 = vmatpush1.bf16.msra.mxu0 %v1315
    %1373 = vmatprep.subr.bf16.mxu0 %v1320
    %1374 = vmatpush1.bf16.msra.mxu0 %v1319
    %1375 = vmatprep.subr.bf16.mxu0 %v1324
    %1376 = vmatpush1.bf16.msra.mxu0 %v1323
    %1377 = vmatprep.subr.bf16.mxu0 %v1328
    %1378 = vmatpush1.bf16.msra.mxu0 %v1327
    %1379 = vmatprep.subr.bf16.mxu0 0
    %1380 = vmatpush1.bf16.msra.mxu0 0
    %1381 = vmatprep.subr.bf16.mxu0 0
    %1382 = vmatpush1.bf16.msra.mxu0 0
    %1383 = vmatprep.subr.bf16.mxu0 0
    %1384 = vmatpush1.bf16.msra.mxu0 0
    %1385 = vmatprep.subr.bf16.mxu0 0
    %1386 = vmatpush1.bf16.msra.mxu0 0
    %1387 = vmatprep.subr.bf16.mxu0 0
    %1388 = vmatpush1.bf16.msra.mxu0 0
    %1389 = vmatprep.subr.bf16.mxu0 0
    %1390 = vmatpush1.bf16.msra.mxu0 0
    %1391 = vmatprep.subr.bf16.mxu0 0
    %1392 = vmatpush1.bf16.msra.mxu0 0
    %1393 = vmatprep.subr.bf16.mxu0 0
    %1394 = vmatpush1.bf16.msra.mxu0 0
    %1395 = vmatprep.mubr.bf16.mxu0 0
    %1396 = vmatmul.mubr.bf16.gmra.mrb[0].mxu0 %v686
    %v1397 = vpop.f32.mrb[0].mxu0
    %v1398 = vadd.f32 0.0, %v1397
    %v1399 = vpop.f32.mrb[0].mxu0
    %v1400 = vadd.f32 0.0, %v1399
    %v1401 = vpop.f32.mrb[0].mxu0
    %v1402 = vpop.f32.mrb[0].mxu0
    %1403 = vdwg.mxu0
    %1404 = vmatprep.subr.bf16.mxu0 %v1302
    %1405 = vmatpush1.bf16.msra.mxu0 %v1301
    %1406 = vmatprep.subr.bf16.mxu0 %v1306
    %1407 = vmatpush1.bf16.msra.mxu0 %v1305
    %1408 = vmatprep.subr.bf16.mxu0 %v1310
    %1409 = vmatpush1.bf16.msra.mxu0 %v1309
    %1410 = vmatprep.subr.bf16.mxu0 %v1314
    %1411 = vmatpush1.bf16.msra.mxu0 %v1313
    %1412 = vmatprep.subr.bf16.mxu0 %v1318
    %1413 = vmatpush1.bf16.msra.mxu0 %v1317
    %1414 = vmatprep.subr.bf16.mxu0 %v1322
    %1415 = vmatpush1.bf16.msra.mxu0 %v1321
    %1416 = vmatprep.subr.bf16.mxu0 %v1326
    %1417 = vmatpush1.bf16.msra.mxu0 %v1325
    %1418 = vmatprep.subr.bf16.mxu0 %v1330
    %1419 = vmatpush1.bf16.msra.mxu0 %v1329
    %1420 = vmatprep.subr.bf16.mxu0 0
    %1421 = vmatpush1.bf16.msra.mxu0 0
    %1422 = vmatprep.subr.bf16.mxu0 0
    %1423 = vmatpush1.bf16.msra.mxu0 0
    %1424 = vmatprep.subr.bf16.mxu0 0
    %1425 = vmatpush1.bf16.msra.mxu0 0
    %1426 = vmatprep.subr.bf16.mxu0 0
    %1427 = vmatpush1.bf16.msra.mxu0 0
    %1428 = vmatprep.subr.bf16.mxu0 0
    %1429 = vmatpush1.bf16.msra.mxu0 0
    %1430 = vmatprep.subr.bf16.mxu0 0
    %1431 = vmatpush1.bf16.msra.mxu0 0
    %1432 = vmatprep.subr.bf16.mxu0 0
    %1433 = vmatpush1.bf16.msra.mxu0 0
    %1434 = vmatprep.subr.bf16.mxu0 0
    %1435 = vmatpush1.bf16.msra.mxu0 0
    %1436 = vmatprep.mubr.bf16.mxu0 0
    %1437 = vmatmul.mubr.bf16.gmra.mrb[0].mxu0 %v686
    %v1438 = vpop.f32.mrb[0].mxu0
    %v1439 = vadd.f32 0.0, %v1438
    %v1440 = vpop.f32.mrb[0].mxu0
    %v1441 = vadd.f32 0.0, %v1440
    %v1442 = vpop.f32.mrb[0].mxu0
    %v1443 = vpop.f32.mrb[0].mxu0
    %1444 = vdwg.mxu0
    %v1445 = vadd.f32 %v1199, %v1398
    %v1446 = vadd.f32 %v1200, %v1400
    %v1447 = vadd.f32 %v1201, %v1439
    %v1448 = vadd.f32 %v1202, %v1441
    %v1449 = vxor.u32 %v1445, 2147483648
    %v1450 = vxor.u32 %v1446, 2147483648
    %v1451 = vxor.u32 %v1447, 2147483648
    %v1452 = vmul.f32 %v1449, 1.442695
    %v1453 = vpow.pop %v1452
    %v1454 = vmul.f32 %v1450, 1.442695
    %v1455 = vpow.pop %v1454
    %v1456 = vmul.f32 %v1451, 1.442695
    %v1457 = vpow.pop %v1456
    %v1458 = vadd.f32 %v1453, 1.0
    %v1459 = vadd.f32 %v1455, 1.0
    %v1460 = vadd.f32 %v1457, 1.0
    %v1461 = vrcp.pop %v1458
    %v1462 = vmul.f32 1.0, %v1461
    %v1463 = vrcp.pop %v1459
    %v1464 = vmul.f32 1.0, %v1463
    %v1465 = vrcp.pop %v1460
    %v1466 = vmul.f32 1.0, %v1465
    %v1467 = vtanh.pop %v1448
    %v1468 = vmul.f32 %v1464, %v683
    %v1469 = vmul.f32 %v1462, %v1467
    %v1470 = vadd.f32 %v1468, %v1469
    %v1471 = vtanh.pop %v1470
    %v1472 = vmul.f32 %v1466, %v1471
    %v1473 = vpack.c.bf16 %v1472, %v1472
    %1474 = vmatprep.subr.bf16.mxu0 %v784
    %1475 = vmatpush1.bf16.msra.mxu0 %v783
    %1476 = vmatprep.subr.bf16.mxu0 %v788
    %1477 = vmatpush1.bf16.msra.mxu0 %v787
    %1478 = vmatprep.subr.bf16.mxu0 %v792
    %1479 = vmatpush1.bf16.msra.mxu0 %v791
    %1480 = vmatprep.subr.bf16.mxu0 %v796
    %1481 = vmatpush1.bf16.msra.mxu0 %v795
    %1482 = vmatprep.subr.bf16.mxu0 %v800
    %1483 = vmatpush1.bf16.msra.mxu0 %v799
    %1484 = vmatprep.subr.bf16.mxu0 %v804
    %1485 = vmatpush1.bf16.msra.mxu0 %v803
    %1486 = vmatprep.subr.bf16.mxu0 %v808
    %1487 = vmatpush1.bf16.msra.mxu0 %v807
    %1488 = vmatprep.subr.bf16.mxu0 %v812
    %1489 = vmatpush1.bf16.msra.mxu0 %v811
    %1490 = vmatprep.subr.bf16.mxu0 0
    %1491 = vmatpush1.bf16.msra.mxu0 0
    %1492 = vmatprep.subr.bf16.mxu0 0
    %1493 = vmatpush1.bf16.msra.mxu0 0
    %1494 = vmatprep.subr.bf16.mxu0 0
    %1495 = vmatpush1.bf16.msra.mxu0 0
    %1496 = vmatprep.subr.bf16.mxu0 0
    %1497 = vmatpush1.bf16.msra.mxu0 0
    %1498 = vmatprep.subr.bf16.mxu0 0
    %1499 = vmatpush1.bf16.msra.mxu0 0
    %1500 = vmatprep.subr.bf16.mxu0 0
    %1501 = vmatpush1.bf16.msra.mxu0 0
    %1502 = vmatprep.subr.bf16.mxu0 0
    %1503 = vmatpush1.bf16.msra.mxu0 0
    %1504 = vmatprep.subr.bf16.mxu0 0
    %1505 = vmatpush1.bf16.msra.mxu0 0
    %1506 = vmatprep.mubr.bf16.mxu0 0
    %1507 = vmatmul.mubr.bf16.gmra.mrb[0].mxu0 %v1473
    %v1508 = vpop.f32.mrb[0].mxu0
    %v1509 = vadd.f32 %v1149, %v1508
    %v1510 = vpop.f32.mrb[0].mxu0
    %v1511 = vadd.f32 %v1151, %v1510
    %v1512 = vpop.f32.mrb[0].mxu0
    %v1513 = vpop.f32.mrb[0].mxu0
    %1514 = vdwg.mxu0
    %1515 = vmatprep.subr.bf16.mxu0 %v786
    %1516 = vmatpush1.bf16.msra.mxu0 %v785
    %1517 = vmatprep.subr.bf16.mxu0 %v790
    %1518 = vmatpush1.bf16.msra.mxu0 %v789
    %1519 = vmatprep.subr.bf16.mxu0 %v794
    %1520 = vmatpush1.bf16.msra.mxu0 %v793
    %1521 = vmatprep.subr.bf16.mxu0 %v798
    %1522 = vmatpush1.bf16.msra.mxu0 %v797
    %1523 = vmatprep.subr.bf16.mxu0 %v802
    %1524 = vmatpush1.bf16.msra.mxu0 %v801
    %1525 = vmatprep.subr.bf16.mxu0 %v806
    %1526 = vmatpush1.bf16.msra.mxu0 %v805
    %1527 = vmatprep.subr.bf16.mxu0 %v810
    %1528 = vmatpush1.bf16.msra.mxu0 %v809
    %1529 = vmatprep.subr.bf16.mxu0 %v814
    %1530 = vmatpush1.bf16.msra.mxu0 %v813
    %1531 = vmatprep.subr.bf16.mxu0 0
    %1532 = vmatpush1.bf16.msra.mxu0 0
    %1533 = vmatprep.subr.bf16.mxu0 0
    %1534 = vmatpush1.bf16.msra.mxu0 0
    %1535 = vmatprep.subr.bf16.mxu0 0
    %1536 = vmatpush1.bf16.msra.mxu0 0
    %1537 = vmatprep.subr.bf16.mxu0 0
    %1538 = vmatpush1.bf16.msra.mxu0 0
    %1539 = vmatprep.subr.bf16.mxu0 0
    %1540 = vmatpush1.bf16.msra.mxu0 0
    %1541 = vmatprep.subr.bf16.mxu0 0
    %1542 = vmatpush1.bf16.msra.mxu0 0
    %1543 = vmatprep.subr.bf16.mxu0 0
    %1544 = vmatpush1.bf16.msra.mxu0 0
    %1545 = vmatprep.subr.bf16.mxu0 0
    %1546 = vmatpush1.bf16.msra.mxu0 0
    %1547 = vmatprep.mubr.bf16.mxu0 0
    %1548 = vmatmul.mubr.bf16.gmra.mrb[0].mxu0 %v1473
    %v1549 = vpop.f32.mrb[0].mxu0
    %v1550 = vadd.f32 %v1190, %v1549
    %v1551 = vpop.f32.mrb[0].mxu0
    %v1552 = vadd.f32 %v1192, %v1551
    %v1553 = vpop.f32.mrb[0].mxu0
    %v1554 = vpop.f32.mrb[0].mxu0
    %1555 = vdwg.mxu0
    %v1556 = vxor.u32 %v1509, 2147483648
    %v1557 = vxor.u32 %v1511, 2147483648
    %v1558 = vxor.u32 %v1550, 2147483648
    %v1559 = vmul.f32 %v1556, 1.442695
    %v1560 = vpow.pop %v1559
    %v1561 = vmul.f32 %v1557, 1.442695
    %v1562 = vpow.pop %v1561
    %v1563 = vmul.f32 %v1558, 1.442695
    %v1564 = vpow.pop %v1563
    %v1565 = vadd.f32 %v1560, 1.0
    %v1566 = vadd.f32 %v1562, 1.0
    %v1567 = vadd.f32 %v1564, 1.0
    %v1568 = vrcp.pop %v1565
    %v1569 = vmul.f32 1.0, %v1568
    %v1570 = vrcp.pop %v1566
    %v1571 = vmul.f32 1.0, %v1570
    %v1572 = vrcp.pop %v1567
    %v1573 = vmul.f32 1.0, %v1572
    %v1574 = vtanh.pop %v1552
    %v1575 = vmul.f32 %v1571, %v950
    %v1576 = vmul.f32 %v1569, %v1574
    %v1577 = vadd.f32 %v1575, %v1576
    %v1578 = vtanh.pop %v1577
    %v1579 = vmul.f32 %v1573, %v1578
    %v1580 = vpack.c.bf16 %v1579, %v1579
    %1581 = vmatprep.subr.bf16.mxu0 %v1051
    %1582 = vmatpush1.bf16.msra.mxu0 %v1050
    %1583 = vmatprep.subr.bf16.mxu0 %v1055
    %1584 = vmatpush1.bf16.msra.mxu0 %v1054
    %1585 = vmatprep.subr.bf16.mxu0 %v1059
    %1586 = vmatpush1.bf16.msra.mxu0 %v1058
    %1587 = vmatprep.subr.bf16.mxu0 %v1063
    %1588 = vmatpush1.bf16.msra.mxu0 %v1062
    %1589 = vmatprep.subr.bf16.mxu0 %v1067
    %1590 = vmatpush1.bf16.msra.mxu0 %v1066
    %1591 = vmatprep.subr.bf16.mxu0 %v1071
    %1592 = vmatpush1.bf16.msra.mxu0 %v1070
    %1593 = vmatprep.subr.bf16.mxu0 %v1075
    %1594 = vmatpush1.bf16.msra.mxu0 %v1074
    %1595 = vmatprep.subr.bf16.mxu0 %v1079
    %1596 = vmatpush1.bf16.msra.mxu0 %v1078
    %1597 = vmatprep.subr.bf16.mxu0 0
    %1598 = vmatpush1.bf16.msra.mxu0 0
    %1599 = vmatprep.subr.bf16.mxu0 0
    %1600 = vmatpush1.bf16.msra.mxu0 0
    %1601 = vmatprep.subr.bf16.mxu0 0
    %1602 = vmatpush1.bf16.msra.mxu0 0
    %1603 = vmatprep.subr.bf16.mxu0 0
    %1604 = vmatpush1.bf16.msra.mxu0 0
    %1605 = vmatprep.subr.bf16.mxu0 0
    %1606 = vmatpush1.bf16.msra.mxu0 0
    %1607 = vmatprep.subr.bf16.mxu0 0
    %1608 = vmatpush1.bf16.msra.mxu0 0
    %1609 = vmatprep.subr.bf16.mxu0 0
    %1610 = vmatpush1.bf16.msra.mxu0 0
    %1611 = vmatprep.subr.bf16.mxu0 0
    %1612 = vmatpush1.bf16.msra.mxu0 0
    %1613 = vmatprep.mubr.bf16.mxu0 0
    %1614 = vmatmul.mubr.bf16.gmra.mrb[0].mxu0 %v1580
    %v1615 = vpop.f32.mrb[0].mxu0
    %v1616 = vadd.f32 %v641, %v1615
    %v1617 = vpop.f32.mrb[0].mxu0
    %v1618 = vadd.f32 %v645, %v1617
    %v1619 = vpop.f32.mrb[0].mxu0
    %v1620 = vpop.f32.mrb[0].mxu0
    %1621 = vdwg.mxu0
    %1622 = vmatprep.subr.bf16.mxu0 %v1053
    %1623 = vmatpush1.bf16.msra.mxu0 %v1052
    %1624 = vmatprep.subr.bf16.mxu0 %v1057
    %1625 = vmatpush1.bf16.msra.mxu0 %v1056
    %1626 = vmatprep.subr.bf16.mxu0 %v1061
    %1627 = vmatpush1.bf16.msra.mxu0 %v1060
    %1628 = vmatprep.subr.bf16.mxu0 %v1065
    %1629 = vmatpush1.bf16.msra.mxu0 %v1064
    %1630 = vmatprep.subr.bf16.mxu0 %v1069
    %1631 = vmatpush1.bf16.msra.mxu0 %v1068
    %1632 = vmatprep.subr.bf16.mxu0 %v1073
    %1633 = vmatpush1.bf16.msra.mxu0 %v1072
    %1634 = vmatprep.subr.bf16.mxu0 %v1077
    %1635 = vmatpush1.bf16.msra.mxu0 %v1076
    %1636 = vmatprep.subr.bf16.mxu0 %v1081
    %1637 = vmatpush1.bf16.msra.mxu0 %v1080
    %1638 = vmatprep.subr.bf16.mxu0 0
    %1639 = vmatpush1.bf16.msra.mxu0 0
    %1640 = vmatprep.subr.bf16.mxu0 0
    %1641 = vmatpush1.bf16.msra.mxu0 0
    %1642 = vmatprep.subr.bf16.mxu0 0
    %1643 = vmatpush1.bf16.msra.mxu0 0
    %1644 = vmatprep.subr.bf16.mxu0 0
    %1645 = vmatpush1.bf16.msra.mxu0 0
    %1646 = vmatprep.subr.bf16.mxu0 0
    %1647 = vmatpush1.bf16.msra.mxu0 0
    %1648 = vmatprep.subr.bf16.mxu0 0
    %1649 = vmatpush1.bf16.msra.mxu0 0
    %1650 = vmatprep.subr.bf16.mxu0 0
    %1651 = vmatpush1.bf16.msra.mxu0 0
    %1652 = vmatprep.subr.bf16.mxu0 0
    %1653 = vmatpush1.bf16.msra.mxu0 0
    %1654 = vmatprep.mubr.bf16.mxu0 0
    %1655 = vmatmul.mubr.bf16.gmra.mrb[0].mxu0 %v1580
    %v1656 = vpop.f32.mrb[0].mxu0
    %v1657 = vadd.f32 %v649, %v1656
    %v1658 = vpop.f32.mrb[0].mxu0
    %v1659 = vadd.f32 %v653, %v1658
    %v1660 = vpop.f32.mrb[0].mxu0
    %v1661 = vpop.f32.mrb[0].mxu0
    %1662 = vdwg.mxu0
    %s1663 = smul.u32 2, 4
    %s1664 = smul.addr %s1663, 8
    %s1665 = scalar_lea.vmem [#allocation2], %s1664
    %v1666 = vld [vmem:[%s1665] sm:$0xff]
    %v1667 = vld [vmem:[%s1665 + $0x8] sm:$0xff]
    %v1668 = vld [vmem:[%s1665 + $0x10] sm:$0xff]
    %v1669 = vld [vmem:[%s1665 + $0x18] sm:$0xff]
    %1670 = vmatprep.subr.bf16.mxu0 %v1300
    %1671 = vmatpush1.bf16.msra.mxu0 %v1299
    %1672 = vmatprep.subr.bf16.mxu0 %v1304
    %1673 = vmatpush1.bf16.msra.mxu0 %v1303
    %1674 = vmatprep.subr.bf16.mxu0 %v1308
    %1675 = vmatpush1.bf16.msra.mxu0 %v1307
    %1676 = vmatprep.subr.bf16.mxu0 %v1312
    %1677 = vmatpush1.bf16.msra.mxu0 %v1311
    %1678 = vmatprep.subr.bf16.mxu0 %v1316
    %1679 = vmatpush1.bf16.msra.mxu0 %v1315
    %1680 = vmatprep.subr.bf16.mxu0 %v1320
    %1681 = vmatpush1.bf16.msra.mxu0 %v1319
    %1682 = vmatprep.subr.bf16.mxu0 %v1324
    %1683 = vmatpush1.bf16.msra.mxu0 %v1323
    %1684 = vmatprep.subr.bf16.mxu0 %v1328
    %1685 = vmatpush1.bf16.msra.mxu0 %v1327
    %1686 = vmatprep.subr.bf16.mxu0 0
    %1687 = vmatpush1.bf16.msra.mxu0 0
    %1688 = vmatprep.subr.bf16.mxu0 0
    %1689 = vmatpush1.bf16.msra.mxu0 0
    %1690 = vmatprep.subr.bf16.mxu0 0
    %1691 = vmatpush1.bf16.msra.mxu0 0
    %1692 = vmatprep.subr.bf16.mxu0 0
    %1693 = vmatpush1.bf16.msra.mxu0 0
    %1694 = vmatprep.subr.bf16.mxu0 0
    %1695 = vmatpush1.bf16.msra.mxu0 0
    %1696 = vmatprep.subr.bf16.mxu0 0
    %1697 = vmatpush1.bf16.msra.mxu0 0
    %1698 = vmatprep.subr.bf16.mxu0 0
    %1699 = vmatpush1.bf16.msra.mxu0 0
    %1700 = vmatprep.subr.bf16.mxu0 0
    %1701 = vmatpush1.bf16.msra.mxu0 0
    %1702 = vmatprep.mubr.bf16.mxu0 0
    %1703 = vmatmul.mubr.bf16.gmra.mrb[0].mxu0 %v1473
    %v1704 = vpop.f32.mrb[0].mxu0
    %v1705 = vadd.f32 0.0, %v1704
    %v1706 = vpop.f32.mrb[0].mxu0
    %v1707 = vadd.f32 0.0, %v1706
    %v1708 = vpop.f32.mrb[0].mxu0
    %v1709 = vpop.f32.mrb[0].mxu0
    %1710 = vdwg.mxu0
    %1711 = vmatprep.subr.bf16.mxu0 %v1302
    %1712 = vmatpush1.bf16.msra.mxu0 %v1301
    %1713 = vmatprep.subr.bf16.mxu0 %v1306
    %1714 = vmatpush1.bf16.msra.mxu0 %v1305
    %1715 = vmatprep.subr.bf16.mxu0 %v1310
    %1716 = vmatpush1.bf16.msra.mxu0 %v1309
    %1717 = vmatprep.subr.bf16.mxu0 %v1314
    %1718 = vmatpush1.bf16.msra.mxu0 %v1313
    %1719 = vmatprep.subr.bf16.mxu0 %v1318
    %1720 = vmatpush1.bf16.msra.mxu0 %v1317
    %1721 = vmatprep.subr.bf16.mxu0 %v1322
    %1722 = vmatpush1.bf16.msra.mxu0 %v1321
    %1723 = vmatprep.subr.bf16.mxu0 %v1326
    %1724 = vmatpush1.bf16.msra.mxu0 %v1325
    %1725 = vmatprep.subr.bf16.mxu0 %v1330
    %1726 = vmatpush1.bf16.msra.mxu0 %v1329
    %1727 = vmatprep.subr.bf16.mxu0 0
    %1728 = vmatpush1.bf16.msra.mxu0 0
    %1729 = vmatprep.subr.bf16.mxu0 0
    %1730 = vmatpush1.bf16.msra.mxu0 0
    %1731 = vmatprep.subr.bf16.mxu0 0
    %1732 = vmatpush1.bf16.msra.mxu0 0
    %1733 = vmatprep.subr.bf16.mxu0 0
    %1734 = vmatpush1.bf16.msra.mxu0 0
    %1735 = vmatprep.subr.bf16.mxu0 0
    %1736 = vmatpush1.bf16.msra.mxu0 0
    %1737 = vmatprep.subr.bf16.mxu0 0
    %1738 = vmatpush1.bf16.msra.mxu0 0
    %1739 = vmatprep.subr.bf16.mxu0 0
    %1740 = vmatpush1.bf16.msra.mxu0 0
    %1741 = vmatprep.subr.bf16.mxu0 0
    %1742 = vmatpush1.bf16.msra.mxu0 0
    %1743 = vmatprep.mubr.bf16.mxu0 0
    %1744 = vmatmul.mubr.bf16.gmra.mrb[0].mxu0 %v1473
    %v1745 = vpop.f32.mrb[0].mxu0
    %v1746 = vadd.f32 0.0, %v1745
    %v1747 = vpop.f32.mrb[0].mxu0
    %v1748 = vadd.f32 0.0, %v1747
    %v1749 = vpop.f32.mrb[0].mxu0
    %v1750 = vpop.f32.mrb[0].mxu0
    %1751 = vdwg.mxu0
    %v1752 = vadd.f32 %v1666, %v1705
    %v1753 = vadd.f32 %v1667, %v1707
    %v1754 = vadd.f32 %v1668, %v1746
    %v1755 = vadd.f32 %v1669, %v1748
    %v1756 = vxor.u32 %v1752, 2147483648
    %v1757 = vxor.u32 %v1753, 2147483648
    %v1758 = vxor.u32 %v1754, 2147483648
    %v1759 = vmul.f32 %v1756, 1.442695
    %v1760 = vpow.pop %v1759
    %v1761 = vmul.f32 %v1757, 1.442695
    %v1762 = vpow.pop %v1761
    %v1763 = vmul.f32 %v1758, 1.442695
    %v1764 = vpow.pop %v1763
    %v1765 = vadd.f32 %v1760, 1.0
    %v1766 = vadd.f32 %v1762, 1.0
    %v1767 = vadd.f32 %v1764, 1.0
    %v1768 = vrcp.pop %v1765
    %v1769 = vmul.f32 1.0, %v1768
    %v1770 = vrcp.pop %v1766
    %v1771 = vmul.f32 1.0, %v1770
    %v1772 = vrcp.pop %v1767
    %v1773 = vmul.f32 1.0, %v1772
    %v1774 = vtanh.pop %v1755
    %v1775 = vmul.f32 %v1771, %v1470
    %v1776 = vmul.f32 %v1769, %v1774
    %v1777 = vadd.f32 %v1775, %v1776
    %v1778 = vtanh.pop %v1777
    %v1779 = vmul.f32 %v1773, %v1778
    %v1780 = vpack.c.bf16 %v1779, %v1779
    %1781 = vmatprep.subr.bf16.mxu0 %v784
    %1782 = vmatpush1.bf16.msra.mxu0 %v783
    %1783 = vmatprep.subr.bf16.mxu0 %v788
    %1784 = vmatpush1.bf16.msra.mxu0 %v787
    %1785 = vmatprep.subr.bf16.mxu0 %v792
    %1786 = vmatpush1.bf16.msra.mxu0 %v791
    %1787 = vmatprep.subr.bf16.mxu0 %v796
    %1788 = vmatpush1.bf16.msra.mxu0 %v795
    %1789 = vmatprep.subr.bf16.mxu0 %v800
    %1790 = vmatpush1.bf16.msra.mxu0 %v799
    %1791 = vmatprep.subr.bf16.mxu0 %v804
    %1792 = vmatpush1.bf16.msra.mxu0 %v803
    %1793 = vmatprep.subr.bf16.mxu0 %v808
    %1794 = vmatpush1.bf16.msra.mxu0 %v807
    %1795 = vmatprep.subr.bf16.mxu0 %v812
    %1796 = vmatpush1.bf16.msra.mxu0 %v811
    %1797 = vmatprep.subr.bf16.mxu0 0
    %1798 = vmatpush1.bf16.msra.mxu0 0
    %1799 = vmatprep.subr.bf16.mxu0 0
    %1800 = vmatpush1.bf16.msra.mxu0 0
    %1801 = vmatprep.subr.bf16.mxu0 0
    %1802 = vmatpush1.bf16.msra.mxu0 0
    %1803 = vmatprep.subr.bf16.mxu0 0
    %1804 = vmatpush1.bf16.msra.mxu0 0
    %1805 = vmatprep.subr.bf16.mxu0 0
    %1806 = vmatpush1.bf16.msra.mxu0 0
    %1807 = vmatprep.subr.bf16.mxu0 0
    %1808 = vmatpush1.bf16.msra.mxu0 0
    %1809 = vmatprep.subr.bf16.mxu0 0
    %1810 = vmatpush1.bf16.msra.mxu0 0
    %1811 = vmatprep.subr.bf16.mxu0 0
    %1812 = vmatpush1.bf16.msra.mxu0 0
    %1813 = vmatprep.mubr.bf16.mxu0 0
    %1814 = vmatmul.mubr.bf16.gmra.mrb[0].mxu0 %v1780
    %v1815 = vpop.f32.mrb[0].mxu0
    %v1816 = vadd.f32 %v1616, %v1815
    %v1817 = vpop.f32.mrb[0].mxu0
    %v1818 = vadd.f32 %v1618, %v1817
    %v1819 = vpop.f32.mrb[0].mxu0
    %v1820 = vpop.f32.mrb[0].mxu0
    %1821 = vdwg.mxu0
    %1822 = vmatprep.subr.bf16.mxu0 %v786
    %1823 = vmatpush1.bf16.msra.mxu0 %v785
    %1824 = vmatprep.subr.bf16.mxu0 %v790
    %1825 = vmatpush1.bf16.msra.mxu0 %v789
    %1826 = vmatprep.subr.bf16.mxu0 %v794
    %1827 = vmatpush1.bf16.msra.mxu0 %v793
    %1828 = vmatprep.subr.bf16.mxu0 %v798
    %1829 = vmatpush1.bf16.msra.mxu0 %v797
    %1830 = vmatprep.subr.bf16.mxu0 %v802
    %1831 = vmatpush1.bf16.msra.mxu0 %v801
    %1832 = vmatprep.subr.bf16.mxu0 %v806
    %1833 = vmatpush1.bf16.msra.mxu0 %v805
    %1834 = vmatprep.subr.bf16.mxu0 %v810
    %1835 = vmatpush1.bf16.msra.mxu0 %v809
    %1836 = vmatprep.subr.bf16.mxu0 %v814
    %1837 = vmatpush1.bf16.msra.mxu0 %v813
    %1838 = vmatprep.subr.bf16.mxu0 0
    %1839 = vmatpush1.bf16.msra.mxu0 0
    %1840 = vmatprep.subr.bf16.mxu0 0
    %1841 = vmatpush1.bf16.msra.mxu0 0
    %1842 = vmatprep.subr.bf16.mxu0 0
    %1843 = vmatpush1.bf16.msra.mxu0 0
    %1844 = vmatprep.subr.bf16.mxu0 0
    %1845 = vmatpush1.bf16.msra.mxu0 0
    %1846 = vmatprep.subr.bf16.mxu0 0
    %1847 = vmatpush1.bf16.msra.mxu0 0
    %1848 = vmatprep.subr.bf16.mxu0 0
    %1849 = vmatpush1.bf16.msra.mxu0 0
    %1850 = vmatprep.subr.bf16.mxu0 0
    %1851 = vmatpush1.bf16.msra.mxu0 0
    %1852 = vmatprep.subr.bf16.mxu0 0
    %1853 = vmatpush1.bf16.msra.mxu0 0
    %1854 = vmatprep.mubr.bf16.mxu0 0
    %1855 = vmatmul.mubr.bf16.gmra.mrb[0].mxu0 %v1780
    %v1856 = vpop.f32.mrb[0].mxu0
    %v1857 = vadd.f32 %v1657, %v1856
    %v1858 = vpop.f32.mrb[0].mxu0
    %v1859 = vadd.f32 %v1659, %v1858
    %v1860 = vpop.f32.mrb[0].mxu0
    %v1861 = vpop.f32.mrb[0].mxu0
    %1862 = vdwg.mxu0
    %v1863 = vxor.u32 %v1816, 2147483648
    %v1864 = vxor.u32 %v1818, 2147483648
    %v1865 = vxor.u32 %v1857, 2147483648
    %v1866 = vmul.f32 %v1863, 1.442695
    %v1867 = vpow.pop %v1866
    %v1868 = vmul.f32 %v1864, 1.442695
    %v1869 = vpow.pop %v1868
    %v1870 = vmul.f32 %v1865, 1.442695
    %v1871 = vpow.pop %v1870
    %v1872 = vadd.f32 %v1867, 1.0
    %v1873 = vadd.f32 %v1869, 1.0
    %v1874 = vadd.f32 %v1871, 1.0
    %v1875 = vrcp.pop %v1872
    %v1876 = vmul.f32 1.0, %v1875
    %v1877 = vrcp.pop %v1873
    %v1878 = vmul.f32 1.0, %v1877
    %v1879 = vrcp.pop %v1874
    %v1880 = vmul.f32 1.0, %v1879
    %v1881 = vtanh.pop %v1859
    %v1882 = vmul.f32 %v1878, %v1577
    %v1883 = vmul.f32 %v1876, %v1881
    %v1884 = vadd.f32 %v1882, %v1883
    %v1885 = vtanh.pop %v1884
    %v1886 = vmul.f32 %v1880, %v1885
    %v1887 = vpack.c.bf16 %v1886, %v1886
    %1888 = vmatprep.subr.bf16.mxu0 %v1051
    %1889 = vmatpush1.bf16.msra.mxu0 %v1050
    %1890 = vmatprep.subr.bf16.mxu0 %v1055
    %1891 = vmatpush1.bf16.msra.mxu0 %v1054
    %1892 = vmatprep.subr.bf16.mxu0 %v1059
    %1893 = vmatpush1.bf16.msra.mxu0 %v1058
    %1894 = vmatprep.subr.bf16.mxu0 %v1063
    %1895 = vmatpush1.bf16.msra.mxu0 %v1062
    %1896 = vmatprep.subr.bf16.mxu0 %v1067
    %1897 = vmatpush1.bf16.msra.mxu0 %v1066
    %1898 = vmatprep.subr.bf16.mxu0 %v1071
    %1899 = vmatpush1.bf16.msra.mxu0 %v1070
    %1900 = vmatprep.subr.bf16.mxu0 %v1075
    %1901 = vmatpush1.bf16.msra.mxu0 %v1074
    %1902 = vmatprep.subr.bf16.mxu0 %v1079
    %1903 = vmatpush1.bf16.msra.mxu0 %v1078
    %1904 = vmatprep.subr.bf16.mxu0 0
    %1905 = vmatpush1.bf16.msra.mxu0 0
    %1906 = vmatprep.subr.bf16.mxu0 0
    %1907 = vmatpush1.bf16.msra.mxu0 0
    %1908 = vmatprep.subr.bf16.mxu0 0
    %1909 = vmatpush1.bf16.msra.mxu0 0
    %1910 = vmatprep.subr.bf16.mxu0 0
    %1911 = vmatpush1.bf16.msra.mxu0 0
    %1912 = vmatprep.subr.bf16.mxu0 0
    %1913 = vmatpush1.bf16.msra.mxu0 0
    %1914 = vmatprep.subr.bf16.mxu0 0
    %1915 = vmatpush1.bf16.msra.mxu0 0
    %1916 = vmatprep.subr.bf16.mxu0 0
    %1917 = vmatpush1.bf16.msra.mxu0 0
    %1918 = vmatprep.subr.bf16.mxu0 0
    %1919 = vmatpush1.bf16.msra.mxu0 0
    %1920 = vmatprep.mubr.bf16.mxu0 0
    %1921 = vmatmul.mubr.bf16.gmra.mrb[0].mxu0 %v1887
    %v1922 = vpop.f32.mrb[0].mxu0
    %v1923 = vadd.f32 %v641, %v1922
    %v1924 = vpop.f32.mrb[0].mxu0
    %v1925 = vadd.f32 %v645, %v1924
    %v1926 = vpop.f32.mrb[0].mxu0
    %v1927 = vpop.f32.mrb[0].mxu0
    %1928 = vdwg.mxu0
    %1929 = vmatprep.subr.bf16.mxu0 %v1053
    %1930 = vmatpush1.bf16.msra.mxu0 %v1052
    %1931 = vmatprep.subr.bf16.mxu0 %v1057
    %1932 = vmatpush1.bf16.msra.mxu0 %v1056
    %1933 = vmatprep.subr.bf16.mxu0 %v1061
    %1934 = vmatpush1.bf16.msra.mxu0 %v1060
    %1935 = vmatprep.subr.bf16.mxu0 %v1065
    %1936 = vmatpush1.bf16.msra.mxu0 %v1064
    %1937 = vmatprep.subr.bf16.mxu0 %v1069
    %1938 = vmatpush1.bf16.msra.mxu0 %v1068
    %1939 = vmatprep.subr.bf16.mxu0 %v1073
    %1940 = vmatpush1.bf16.msra.mxu0 %v1072
    %1941 = vmatprep.subr.bf16.mxu0 %v1077
    %1942 = vmatpush1.bf16.msra.mxu0 %v1076
    %1943 = vmatprep.subr.bf16.mxu0 %v1081
    %1944 = vmatpush1.bf16.msra.mxu0 %v1080
    %1945 = vmatprep.subr.bf16.mxu0 0
    %1946 = vmatpush1.bf16.msra.mxu0 0
    %1947 = vmatprep.subr.bf16.mxu0 0
    %1948 = vmatpush1.bf16.msra.mxu0 0
    %1949 = vmatprep.subr.bf16.mxu0 0
    %1950 = vmatpush1.bf16.msra.mxu0 0
    %1951 = vmatprep.subr.bf16.mxu0 0
    %1952 = vmatpush1.bf16.msra.mxu0 0
    %1953 = vmatprep.subr.bf16.mxu0 0
    %1954 = vmatpush1.bf16.msra.mxu0 0
    %1955 = vmatprep.subr.bf16.mxu0 0
    %1956 = vmatpush1.bf16.msra.mxu0 0
    %1957 = vmatprep.subr.bf16.mxu0 0
    %1958 = vmatpush1.bf16.msra.mxu0 0
    %1959 = vmatprep.subr.bf16.mxu0 0
    %1960 = vmatpush1.bf16.msra.mxu0 0
    %1961 = vmatprep.mubr.bf16.mxu0 0
    %1962 = vmatmul.mubr.bf16.gmra.mrb[0].mxu0 %v1887
    %v1963 = vpop.f32.mrb[0].mxu0
    %v1964 = vadd.f32 %v649, %v1963
    %v1965 = vpop.f32.mrb[0].mxu0
    %v1966 = vadd.f32 %v653, %v1965
    %v1967 = vpop.f32.mrb[0].mxu0
    %v1968 = vpop.f32.mrb[0].mxu0
    %1969 = vdwg.mxu0
    %s1970 = smul.u32 3, 4
    %s1971 = smul.addr %s1970, 8
    %s1972 = scalar_lea.vmem [#allocation2], %s1971
    %v1973 = vld [vmem:[%s1972] sm:$0xff]
    %v1974 = vld [vmem:[%s1972 + $0x8] sm:$0xff]
    %v1975 = vld [vmem:[%s1972 + $0x10] sm:$0xff]
    %v1976 = vld [vmem:[%s1972 + $0x18] sm:$0xff]
    %1977 = vmatprep.subr.bf16.mxu0 %v1300
    %1978 = vmatpush1.bf16.msra.mxu0 %v1299
    %1979 = vmatprep.subr.bf16.mxu0 %v1304
    %1980 = vmatpush1.bf16.msra.mxu0 %v1303
    %1981 = vmatprep.subr.bf16.mxu0 %v1308
    %1982 = vmatpush1.bf16.msra.mxu0 %v1307
    %1983 = vmatprep.subr.bf16.mxu0 %v1312
    %1984 = vmatpush1.bf16.msra.mxu0 %v1311
    %1985 = vmatprep.subr.bf16.mxu0 %v1316
    %1986 = vmatpush1.bf16.msra.mxu0 %v1315
    %1987 = vmatprep.subr.bf16.mxu0 %v1320
    %1988 = vmatpush1.bf16.msra.mxu0 %v1319
    %1989 = vmatprep.subr.bf16.mxu0 %v1324
    %1990 = vmatpush1.bf16.msra.mxu0 %v1323
    %1991 = vmatprep.subr.bf16.mxu0 %v1328
    %1992 = vmatpush1.bf16.msra.mxu0 %v1327
    %1993 = vmatprep.subr.bf16.mxu0 0
    %1994 = vmatpush1.bf16.msra.mxu0 0
    %1995 = vmatprep.subr.bf16.mxu0 0
    %1996 = vmatpush1.bf16.msra.mxu0 0
    %1997 = vmatprep.subr.bf16.mxu0 0
    %1998 = vmatpush1.bf16.msra.mxu0 0
    %1999 = vmatprep.subr.bf16.mxu0 0
    %2000 = vmatpush1.bf16.msra.mxu0 0
    %2001 = vmatprep.subr.bf16.mxu0 0
    %2002 = vmatpush1.bf16.msra.mxu0 0
    %2003 = vmatprep.subr.bf16.mxu0 0
    %2004 = vmatpush1.bf16.msra.mxu0 0
    %2005 = vmatprep.subr.bf16.mxu0 0
    %2006 = vmatpush1.bf16.msra.mxu0 0
    %2007 = vmatprep.subr.bf16.mxu0 0
    %2008 = vmatpush1.bf16.msra.mxu0 0
    %2009 = vmatprep.mubr.bf16.mxu0 0
    %2010 = vmatmul.mubr.bf16.gmra.mrb[0].mxu0 %v1780
    %v2011 = vpop.f32.mrb[0].mxu0
    %v2012 = vadd.f32 0.0, %v2011
    %v2013 = vpop.f32.mrb[0].mxu0
    %v2014 = vadd.f32 0.0, %v2013
    %v2015 = vpop.f32.mrb[0].mxu0
    %v2016 = vpop.f32.mrb[0].mxu0
    %2017 = vdwg.mxu0
    %2018 = vmatprep.subr.bf16.mxu0 %v1302
    %2019 = vmatpush1.bf16.msra.mxu0 %v1301
    %2020 = vmatprep.subr.bf16.mxu0 %v1306
    %2021 = vmatpush1.bf16.msra.mxu0 %v1305
    %2022 = vmatprep.subr.bf16.mxu0 %v1310
    %2023 = vmatpush1.bf16.msra.mxu0 %v1309
    %2024 = vmatprep.subr.bf16.mxu0 %v1314
    %2025 = vmatpush1.bf16.msra.mxu0 %v1313
    %2026 = vmatprep.subr.bf16.mxu0 %v1318
    %2027 = vmatpush1.bf16.msra.mxu0 %v1317
    %2028 = vmatprep.subr.bf16.mxu0 %v1322
    %2029 = vmatpush1.bf16.msra.mxu0 %v1321
    %2030 = vmatprep.subr.bf16.mxu0 %v1326
    %2031 = vmatpush1.bf16.msra.mxu0 %v1325
    %2032 = vmatprep.subr.bf16.mxu0 %v1330
    %2033 = vmatpush1.bf16.msra.mxu0 %v1329
    %2034 = vmatprep.subr.bf16.mxu0 0
    %2035 = vmatpush1.bf16.msra.mxu0 0
    %2036 = vmatprep.subr.bf16.mxu0 0
    %2037 = vmatpush1.bf16.msra.mxu0 0
    %2038 = vmatprep.subr.bf16.mxu0 0
    %2039 = vmatpush1.bf16.msra.mxu0 0
    %2040 = vmatprep.subr.bf16.mxu0 0
    %2041 = vmatpush1.bf16.msra.mxu0 0
    %2042 = vmatprep.subr.bf16.mxu0 0
    %2043 = vmatpush1.bf16.msra.mxu0 0
    %2044 = vmatprep.subr.bf16.mxu0 0
    %2045 = vmatpush1.bf16.msra.mxu0 0
    %2046 = vmatprep.subr.bf16.mxu0 0
    %2047 = vmatpush1.bf16.msra.mxu0 0
    %2048 = vmatprep.subr.bf16.mxu0 0
    %2049 = vmatpush1.bf16.msra.mxu0 0
    %2050 = vmatprep.mubr.bf16.mxu0 0
    %2051 = vmatmul.mubr.bf16.gmra.mrb[0].mxu0 %v1780
    %v2052 = vpop.f32.mrb[0].mxu0
    %v2053 = vadd.f32 0.0, %v2052
    %v2054 = vpop.f32.mrb[0].mxu0
    %v2055 = vadd.f32 0.0, %v2054
    %v2056 = vpop.f32.mrb[0].mxu0
    %v2057 = vpop.f32.mrb[0].mxu0
    %2058 = vdwg.mxu0
    %v2059 = vadd.f32 %v1973, %v2012
    %v2060 = vadd.f32 %v1974, %v2014
    %v2061 = vadd.f32 %v1975, %v2053
    %v2062 = vadd.f32 %v1976, %v2055
    %v2063 = vxor.u32 %v2059, 2147483648
    %v2064 = vxor.u32 %v2060, 2147483648
    %v2065 = vxor.u32 %v2061, 2147483648
    %v2066 = vmul.f32 %v2063, 1.442695
    %v2067 = vpow.pop %v2066
    %v2068 = vmul.f32 %v2064, 1.442695
    %v2069 = vpow.pop %v2068
    %v2070 = vmul.f32 %v2065, 1.442695
    %v2071 = vpow.pop %v2070
    %v2072 = vadd.f32 %v2067, 1.0
    %v2073 = vadd.f32 %v2069, 1.0
    %v2074 = vadd.f32 %v2071, 1.0
    %v2075 = vrcp.pop %v2072
    %v2076 = vmul.f32 1.0, %v2075
    %v2077 = vrcp.pop %v2073
    %v2078 = vmul.f32 1.0, %v2077
    %v2079 = vrcp.pop %v2074
    %v2080 = vmul.f32 1.0, %v2079
    %v2081 = vtanh.pop %v2062
    %v2082 = vmul.f32 %v2078, %v1777
    %v2083 = vmul.f32 %v2076, %v2081
    %v2084 = vadd.f32 %v2082, %v2083
    %v2085 = vtanh.pop %v2084
    %v2086 = vmul.f32 %v2080, %v2085
    %v2087 = vpack.c.bf16 %v2086, %v2086
    %2088 = vmatprep.subr.bf16.mxu0 %v784
    %2089 = vmatpush1.bf16.msra.mxu0 %v783
    %2090 = vmatprep.subr.bf16.mxu0 %v788
    %2091 = vmatpush1.bf16.msra.mxu0 %v787
    %2092 = vmatprep.subr.bf16.mxu0 %v792
    %2093 = vmatpush1.bf16.msra.mxu0 %v791
    %2094 = vmatprep.subr.bf16.mxu0 %v796
    %2095 = vmatpush1.bf16.msra.mxu0 %v795
    %2096 = vmatprep.subr.bf16.mxu0 %v800
    %2097 = vmatpush1.bf16.msra.mxu0 %v799
    %2098 = vmatprep.subr.bf16.mxu0 %v804
    %2099 = vmatpush1.bf16.msra.mxu0 %v803
    %2100 = vmatprep.subr.bf16.mxu0 %v808
    %2101 = vmatpush1.bf16.msra.mxu0 %v807
    %2102 = vmatprep.subr.bf16.mxu0 %v812
    %2103 = vmatpush1.bf16.msra.mxu0 %v811
    %2104 = vmatprep.subr.bf16.mxu0 0
    %2105 = vmatpush1.bf16.msra.mxu0 0
    %2106 = vmatprep.subr.bf16.mxu0 0
    %2107 = vmatpush1.bf16.msra.mxu0 0
    %2108 = vmatprep.subr.bf16.mxu0 0
    %2109 = vmatpush1.bf16.msra.mxu0 0
    %2110 = vmatprep.subr.bf16.mxu0 0
    %2111 = vmatpush1.bf16.msra.mxu0 0
    %2112 = vmatprep.subr.bf16.mxu0 0
    %2113 = vmatpush1.bf16.msra.mxu0 0
    %2114 = vmatprep.subr.bf16.mxu0 0
    %2115 = vmatpush1.bf16.msra.mxu0 0
    %2116 = vmatprep.subr.bf16.mxu0 0
    %2117 = vmatpush1.bf16.msra.mxu0 0
    %2118 = vmatprep.subr.bf16.mxu0 0
    %2119 = vmatpush1.bf16.msra.mxu0 0
    %2120 = vmatprep.mubr.bf16.mxu0 0
    %2121 = vmatmul.mubr.bf16.gmra.mrb[0].mxu0 %v2087
    %v2122 = vpop.f32.mrb[0].mxu0
    %v2123 = vadd.f32 %v1923, %v2122
    %v2124 = vpop.f32.mrb[0].mxu0
    %v2125 = vadd.f32 %v1925, %v2124
    %v2126 = vpop.f32.mrb[0].mxu0
    %v2127 = vpop.f32.mrb[0].mxu0
    %2128 = vdwg.mxu0
    %2129 = vmatprep.subr.bf16.mxu0 %v786
    %2130 = vmatpush1.bf16.msra.mxu0 %v785
    %2131 = vmatprep.subr.bf16.mxu0 %v790
    %2132 = vmatpush1.bf16.msra.mxu0 %v789
    %2133 = vmatprep.subr.bf16.mxu0 %v794
    %2134 = vmatpush1.bf16.msra.mxu0 %v793
    %2135 = vmatprep.subr.bf16.mxu0 %v798
    %2136 = vmatpush1.bf16.msra.mxu0 %v797
    %2137 = vmatprep.subr.bf16.mxu0 %v802
    %2138 = vmatpush1.bf16.msra.mxu0 %v801
    %2139 = vmatprep.subr.bf16.mxu0 %v806
    %2140 = vmatpush1.bf16.msra.mxu0 %v805
    %2141 = vmatprep.subr.bf16.mxu0 %v810
    %2142 = vmatpush1.bf16.msra.mxu0 %v809
    %2143 = vmatprep.subr.bf16.mxu0 %v814
    %2144 = vmatpush1.bf16.msra.mxu0 %v813
    %2145 = vmatprep.subr.bf16.mxu0 0
    %2146 = vmatpush1.bf16.msra.mxu0 0
    %2147 = vmatprep.subr.bf16.mxu0 0
    %2148 = vmatpush1.bf16.msra.mxu0 0
    %2149 = vmatprep.subr.bf16.mxu0 0
    %2150 = vmatpush1.bf16.msra.mxu0 0
    %2151 = vmatprep.subr.bf16.mxu0 0
    %2152 = vmatpush1.bf16.msra.mxu0 0
    %2153 = vmatprep.subr.bf16.mxu0 0
    %2154 = vmatpush1.bf16.msra.mxu0 0
    %2155 = vmatprep.subr.bf16.mxu0 0
    %2156 = vmatpush1.bf16.msra.mxu0 0
    %2157 = vmatprep.subr.bf16.mxu0 0
    %2158 = vmatpush1.bf16.msra.mxu0 0
    %2159 = vmatprep.subr.bf16.mxu0 0
    %2160 = vmatpush1.bf16.msra.mxu0 0
    %2161 = vmatprep.mubr.bf16.mxu0 0
    %2162 = vmatmul.mubr.bf16.gmra.mrb[0].mxu0 %v2087
    %v2163 = vpop.f32.mrb[0].mxu0
    %v2164 = vadd.f32 %v1964, %v2163
    %v2165 = vpop.f32.mrb[0].mxu0
    %v2166 = vadd.f32 %v1966, %v2165
    %v2167 = vpop.f32.mrb[0].mxu0
    %v2168 = vpop.f32.mrb[0].mxu0
    %2169 = vdwg.mxu0
    %v2170 = vxor.u32 %v2123, 2147483648
    %v2171 = vxor.u32 %v2125, 2147483648
    %v2172 = vxor.u32 %v2164, 2147483648
    %v2173 = vmul.f32 %v2170, 1.442695
    %v2174 = vpow.pop %v2173
    %v2175 = vmul.f32 %v2171, 1.442695
    %v2176 = vpow.pop %v2175
    %v2177 = vmul.f32 %v2172, 1.442695
    %v2178 = vpow.pop %v2177
    %v2179 = vadd.f32 %v2174, 1.0
    %v2180 = vadd.f32 %v2176, 1.0
    %v2181 = vadd.f32 %v2178, 1.0
    %v2182 = vrcp.pop %v2179
    %v2183 = vmul.f32 1.0, %v2182
    %v2184 = vrcp.pop %v2180
    %v2185 = vmul.f32 1.0, %v2184
    %v2186 = vrcp.pop %v2181
    %v2187 = vmul.f32 1.0, %v2186
    %v2188 = vtanh.pop %v2166
    %v2189 = vmul.f32 %v2185, %v1884
    %v2190 = vmul.f32 %v2183, %v2188
    %v2191 = vadd.f32 %v2189, %v2190
    %v2192 = vtanh.pop %v2191
    %v2193 = vmul.f32 %v2187, %v2192
    %v2194 = vpack.c.bf16 %v2193, %v2193
    %2195 = vmatprep.subr.bf16.mxu0 %v1051
    %2196 = vmatpush1.bf16.msra.mxu0 %v1050
    %2197 = vmatprep.subr.bf16.mxu0 %v1055
    %2198 = vmatpush1.bf16.msra.mxu0 %v1054
    %2199 = vmatprep.subr.bf16.mxu0 %v1059
    %2200 = vmatpush1.bf16.msra.mxu0 %v1058
    %2201 = vmatprep.subr.bf16.mxu0 %v1063
    %2202 = vmatpush1.bf16.msra.mxu0 %v1062
    %2203 = vmatprep.subr.bf16.mxu0 %v1067
    %2204 = vmatpush1.bf16.msra.mxu0 %v1066
    %2205 = vmatprep.subr.bf16.mxu0 %v1071
    %2206 = vmatpush1.bf16.msra.mxu0 %v1070
    %2207 = vmatprep.subr.bf16.mxu0 %v1075
    %2208 = vmatpush1.bf16.msra.mxu0 %v1074
    %2209 = vmatprep.subr.bf16.mxu0 %v1079
    %2210 = vmatpush1.bf16.msra.mxu0 %v1078
    %2211 = vmatprep.subr.bf16.mxu0 0
    %2212 = vmatpush1.bf16.msra.mxu0 0
    %2213 = vmatprep.subr.bf16.mxu0 0
    %2214 = vmatpush1.bf16.msra.mxu0 0
    %2215 = vmatprep.subr.bf16.mxu0 0
    %2216 = vmatpush1.bf16.msra.mxu0 0
    %2217 = vmatprep.subr.bf16.mxu0 0
    %2218 = vmatpush1.bf16.msra.mxu0 0
    %2219 = vmatprep.subr.bf16.mxu0 0
    %2220 = vmatpush1.bf16.msra.mxu0 0
    %2221 = vmatprep.subr.bf16.mxu0 0
    %2222 = vmatpush1.bf16.msra.mxu0 0
    %2223 = vmatprep.subr.bf16.mxu0 0
    %2224 = vmatpush1.bf16.msra.mxu0 0
    %2225 = vmatprep.subr.bf16.mxu0 0
    %2226 = vmatpush1.bf16.msra.mxu0 0
    %2227 = vmatprep.mubr.bf16.mxu0 0
    %2228 = vmatmul.mubr.bf16.gmra.mrb[0].mxu0 %v2194
    %v2229 = vpop.f32.mrb[0].mxu0
    %v2230 = vadd.f32 %v641, %v2229
    %v2231 = vpop.f32.mrb[0].mxu0
    %v2232 = vadd.f32 %v645, %v2231
    %v2233 = vpop.f32.mrb[0].mxu0
    %v2234 = vpop.f32.mrb[0].mxu0
    %2235 = vdwg.mxu0
    %2236 = vmatprep.subr.bf16.mxu0 %v1053
    %2237 = vmatpush1.bf16.msra.mxu0 %v1052
    %2238 = vmatprep.subr.bf16.mxu0 %v1057
    %2239 = vmatpush1.bf16.msra.mxu0 %v1056
    %2240 = vmatprep.subr.bf16.mxu0 %v1061
    %2241 = vmatpush1.bf16.msra.mxu0 %v1060
    %2242 = vmatprep.subr.bf16.mxu0 %v1065
    %2243 = vmatpush1.bf16.msra.mxu0 %v1064
    %2244 = vmatprep.subr.bf16.mxu0 %v1069
    %2245 = vmatpush1.bf16.msra.mxu0 %v1068
    %2246 = vmatprep.subr.bf16.mxu0 %v1073
    %2247 = vmatpush1.bf16.msra.mxu0 %v1072
    %2248 = vmatprep.subr.bf16.mxu0 %v1077
    %2249 = vmatpush1.bf16.msra.mxu0 %v1076
    %2250 = vmatprep.subr.bf16.mxu0 %v1081
    %2251 = vmatpush1.bf16.msra.mxu0 %v1080
    %2252 = vmatprep.subr.bf16.mxu0 0
    %2253 = vmatpush1.bf16.msra.mxu0 0
    %2254 = vmatprep.subr.bf16.mxu0 0
    %2255 = vmatpush1.bf16.msra.mxu0 0
    %2256 = vmatprep.subr.bf16.mxu0 0
    %2257 = vmatpush1.bf16.msra.mxu0 0
    %2258 = vmatprep.subr.bf16.mxu0 0
    %2259 = vmatpush1.bf16.msra.mxu0 0
    %2260 = vmatprep.subr.bf16.mxu0 0
    %2261 = vmatpush1.bf16.msra.mxu0 0
    %2262 = vmatprep.subr.bf16.mxu0 0
    %2263 = vmatpush1.bf16.msra.mxu0 0
    %2264 = vmatprep.subr.bf16.mxu0 0
    %2265 = vmatpush1.bf16.msra.mxu0 0
    %2266 = vmatprep.subr.bf16.mxu0 0
    %2267 = vmatpush1.bf16.msra.mxu0 0
    %2268 = vmatprep.mubr.bf16.mxu0 0
    %2269 = vmatmul.mubr.bf16.gmra.mrb[0].mxu0 %v2194
    %v2270 = vpop.f32.mrb[0].mxu0
    %v2271 = vadd.f32 %v649, %v2270
    %v2272 = vpop.f32.mrb[0].mxu0
    %v2273 = vadd.f32 %v653, %v2272
    %v2274 = vpop.f32.mrb[0].mxu0
    %v2275 = vpop.f32.mrb[0].mxu0
    %2276 = vdwg.mxu0
    %s2277 = smul.u32 4, 4
    %s2278 = smul.addr %s2277, 8
    %s2279 = scalar_lea.vmem [#allocation2], %s2278
    %v2280 = vld [vmem:[%s2279] sm:$0xff]
    %v2281 = vld [vmem:[%s2279 + $0x8] sm:$0xff]
    %v2282 = vld [vmem:[%s2279 + $0x10] sm:$0xff]
    %v2283 = vld [vmem:[%s2279 + $0x18] sm:$0xff]
    %2284 = vmatprep.subr.bf16.mxu0 %v1300
    %2285 = vmatpush1.bf16.msra.mxu0 %v1299
    %2286 = vmatprep.subr.bf16.mxu0 %v1304
    %2287 = vmatpush1.bf16.msra.mxu0 %v1303
    %2288 = vmatprep.subr.bf16.mxu0 %v1308
    %2289 = vmatpush1.bf16.msra.mxu0 %v1307
    %2290 = vmatprep.subr.bf16.mxu0 %v1312
    %2291 = vmatpush1.bf16.msra.mxu0 %v1311
    %2292 = vmatprep.subr.bf16.mxu0 %v1316
    %2293 = vmatpush1.bf16.msra.mxu0 %v1315
    %2294 = vmatprep.subr.bf16.mxu0 %v1320
    %2295 = vmatpush1.bf16.msra.mxu0 %v1319
    %2296 = vmatprep.subr.bf16.mxu0 %v1324
    %2297 = vmatpush1.bf16.msra.mxu0 %v1323
    %2298 = vmatprep.subr.bf16.mxu0 %v1328
    %2299 = vmatpush1.bf16.msra.mxu0 %v1327
    %2300 = vmatprep.subr.bf16.mxu0 0
    %2301 = vmatpush1.bf16.msra.mxu0 0
    %2302 = vmatprep.subr.bf16.mxu0 0
    %2303 = vmatpush1.bf16.msra.mxu0 0
    %2304 = vmatprep.subr.bf16.mxu0 0
    %2305 = vmatpush1.bf16.msra.mxu0 0
    %2306 = vmatprep.subr.bf16.mxu0 0
    %2307 = vmatpush1.bf16.msra.mxu0 0
    %2308 = vmatprep.subr.bf16.mxu0 0
    %2309 = vmatpush1.bf16.msra.mxu0 0
    %2310 = vmatprep.subr.bf16.mxu0 0
    %2311 = vmatpush1.bf16.msra.mxu0 0
    %2312 = vmatprep.subr.bf16.mxu0 0
    %2313 = vmatpush1.bf16.msra.mxu0 0
    %2314 = vmatprep.subr.bf16.mxu0 0
    %2315 = vmatpush1.bf16.msra.mxu0 0
    %2316 = vmatprep.mubr.bf16.mxu0 0
    %2317 = vmatmul.mubr.bf16.gmra.mrb[0].mxu0 %v2087
    %v2318 = vpop.f32.mrb[0].mxu0
    %v2319 = vadd.f32 0.0, %v2318
    %v2320 = vpop.f32.mrb[0].mxu0
    %v2321 = vadd.f32 0.0, %v2320
    %v2322 = vpop.f32.mrb[0].mxu0
    %v2323 = vpop.f32.mrb[0].mxu0
    %2324 = vdwg.mxu0
    %2325 = vmatprep.subr.bf16.mxu0 %v1302
    %2326 = vmatpush1.bf16.msra.mxu0 %v1301
    %2327 = vmatprep.subr.bf16.mxu0 %v1306
    %2328 = vmatpush1.bf16.msra.mxu0 %v1305
    %2329 = vmatprep.subr.bf16.mxu0 %v1310
    %2330 = vmatpush1.bf16.msra.mxu0 %v1309
    %2331 = vmatprep.subr.bf16.mxu0 %v1314
    %2332 = vmatpush1.bf16.msra.mxu0 %v1313
    %2333 = vmatprep.subr.bf16.mxu0 %v1318
    %2334 = vmatpush1.bf16.msra.mxu0 %v1317
    %2335 = vmatprep.subr.bf16.mxu0 %v1322
    %2336 = vmatpush1.bf16.msra.mxu0 %v1321
    %2337 = vmatprep.subr.bf16.mxu0 %v1326
    %2338 = vmatpush1.bf16.msra.mxu0 %v1325
    %2339 = vmatprep.subr.bf16.mxu0 %v1330
    %2340 = vmatpush1.bf16.msra.mxu0 %v1329
    %2341 = vmatprep.subr.bf16.mxu0 0
    %2342 = vmatpush1.bf16.msra.mxu0 0
    %2343 = vmatprep.subr.bf16.mxu0 0
    %2344 = vmatpush1.bf16.msra.mxu0 0
    %2345 = vmatprep.subr.bf16.mxu0 0
    %2346 = vmatpush1.bf16.msra.mxu0 0
    %2347 = vmatprep.subr.bf16.mxu0 0
    %2348 = vmatpush1.bf16.msra.mxu0 0
    %2349 = vmatprep.subr.bf16.mxu0 0
    %2350 = vmatpush1.bf16.msra.mxu0 0
    %2351 = vmatprep.subr.bf16.mxu0 0
    %2352 = vmatpush1.bf16.msra.mxu0 0
    %2353 = vmatprep.subr.bf16.mxu0 0
    %2354 = vmatpush1.bf16.msra.mxu0 0
    %2355 = vmatprep.subr.bf16.mxu0 0
    %2356 = vmatpush1.bf16.msra.mxu0 0
    %2357 = vmatprep.mubr.bf16.mxu0 0
    %2358 = vmatmul.mubr.bf16.gmra.mrb[0].mxu0 %v2087
    %v2359 = vpop.f32.mrb[0].mxu0
    %v2360 = vadd.f32 0.0, %v2359
    %v2361 = vpop.f32.mrb[0].mxu0
    %v2362 = vadd.f32 0.0, %v2361
    %v2363 = vpop.f32.mrb[0].mxu0
    %v2364 = vpop.f32.mrb[0].mxu0
    %2365 = vdwg.mxu0
    %v2366 = vadd.f32 %v2280, %v2319
    %v2367 = vadd.f32 %v2281, %v2321
    %v2368 = vadd.f32 %v2282, %v2360
    %v2369 = vadd.f32 %v2283, %v2362
    %v2370 = vxor.u32 %v2366, 2147483648
    %v2371 = vxor.u32 %v2367, 2147483648
    %v2372 = vxor.u32 %v2368, 2147483648
    %v2373 = vmul.f32 %v2370, 1.442695
    %v2374 = vpow.pop %v2373
    %v2375 = vmul.f32 %v2371, 1.442695
    %v2376 = vpow.pop %v2375
    %v2377 = vmul.f32 %v2372, 1.442695
    %v2378 = vpow.pop %v2377
    %v2379 = vadd.f32 %v2374, 1.0
    %v2380 = vadd.f32 %v2376, 1.0
    %v2381 = vadd.f32 %v2378, 1.0
    %v2382 = vrcp.pop %v2379
    %v2383 = vmul.f32 1.0, %v2382
    %v2384 = vrcp.pop %v2380
    %v2385 = vmul.f32 1.0, %v2384
    %v2386 = vrcp.pop %v2381
    %v2387 = vmul.f32 1.0, %v2386
    %v2388 = vtanh.pop %v2369
    %v2389 = vmul.f32 %v2385, %v2084
    %v2390 = vmul.f32 %v2383, %v2388
    %v2391 = vadd.f32 %v2389, %v2390
    %v2392 = vtanh.pop %v2391
    %v2393 = vmul.f32 %v2387, %v2392
    %v2394 = vpack.c.bf16 %v2393, %v2393
    %2395 = vmatprep.subr.bf16.mxu0 %v784
    %2396 = vmatpush1.bf16.msra.mxu0 %v783
    %2397 = vmatprep.subr.bf16.mxu0 %v788
    %2398 = vmatpush1.bf16.msra.mxu0 %v787
    %2399 = vmatprep.subr.bf16.mxu0 %v792
    %2400 = vmatpush1.bf16.msra.mxu0 %v791
    %2401 = vmatprep.subr.bf16.mxu0 %v796
    %2402 = vmatpush1.bf16.msra.mxu0 %v795
    %2403 = vmatprep.subr.bf16.mxu0 %v800
    %2404 = vmatpush1.bf16.msra.mxu0 %v799
    %2405 = vmatprep.subr.bf16.mxu0 %v804
    %2406 = vmatpush1.bf16.msra.mxu0 %v803
    %2407 = vmatprep.subr.bf16.mxu0 %v808
    %2408 = vmatpush1.bf16.msra.mxu0 %v807
    %2409 = vmatprep.subr.bf16.mxu0 %v812
    %2410 = vmatpush1.bf16.msra.mxu0 %v811
    %2411 = vmatprep.subr.bf16.mxu0 0
    %2412 = vmatpush1.bf16.msra.mxu0 0
    %2413 = vmatprep.subr.bf16.mxu0 0
    %2414 = vmatpush1.bf16.msra.mxu0 0
    %2415 = vmatprep.subr.bf16.mxu0 0
    %2416 = vmatpush1.bf16.msra.mxu0 0
    %2417 = vmatprep.subr.bf16.mxu0 0
    %2418 = vmatpush1.bf16.msra.mxu0 0
    %2419 = vmatprep.subr.bf16.mxu0 0
    %2420 = vmatpush1.bf16.msra.mxu0 0
    %2421 = vmatprep.subr.bf16.mxu0 0
    %2422 = vmatpush1.bf16.msra.mxu0 0
    %2423 = vmatprep.subr.bf16.mxu0 0
    %2424 = vmatpush1.bf16.msra.mxu0 0
    %2425 = vmatprep.subr.bf16.mxu0 0
    %2426 = vmatpush1.bf16.msra.mxu0 0
    %2427 = vmatprep.mubr.bf16.mxu0 0
    %2428 = vmatmul.mubr.bf16.gmra.mrb[0].mxu0 %v2394
    %v2429 = vpop.f32.mrb[0].mxu0
    %v2430 = vadd.f32 %v2230, %v2429
    %v2431 = vpop.f32.mrb[0].mxu0
    %v2432 = vadd.f32 %v2232, %v2431
    %v2433 = vpop.f32.mrb[0].mxu0
    %v2434 = vpop.f32.mrb[0].mxu0
    %2435 = vdwg.mxu0
    %2436 = vmatprep.subr.bf16.mxu0 %v786
    %2437 = vmatpush1.bf16.msra.mxu0 %v785
    %2438 = vmatprep.subr.bf16.mxu0 %v790
    %2439 = vmatpush1.bf16.msra.mxu0 %v789
    %2440 = vmatprep.subr.bf16.mxu0 %v794
    %2441 = vmatpush1.bf16.msra.mxu0 %v793
    %2442 = vmatprep.subr.bf16.mxu0 %v798
    %2443 = vmatpush1.bf16.msra.mxu0 %v797
    %2444 = vmatprep.subr.bf16.mxu0 %v802
    %2445 = vmatpush1.bf16.msra.mxu0 %v801
    %2446 = vmatprep.subr.bf16.mxu0 %v806
    %2447 = vmatpush1.bf16.msra.mxu0 %v805
    %2448 = vmatprep.subr.bf16.mxu0 %v810
    %2449 = vmatpush1.bf16.msra.mxu0 %v809
    %2450 = vmatprep.subr.bf16.mxu0 %v814
    %2451 = vmatpush1.bf16.msra.mxu0 %v813
    %2452 = vmatprep.subr.bf16.mxu0 0
    %2453 = vmatpush1.bf16.msra.mxu0 0
    %2454 = vmatprep.subr.bf16.mxu0 0
    %2455 = vmatpush1.bf16.msra.mxu0 0
    %2456 = vmatprep.subr.bf16.mxu0 0
    %2457 = vmatpush1.bf16.msra.mxu0 0
    %2458 = vmatprep.subr.bf16.mxu0 0
    %2459 = vmatpush1.bf16.msra.mxu0 0
    %2460 = vmatprep.subr.bf16.mxu0 0
    %2461 = vmatpush1.bf16.msra.mxu0 0
    %2462 = vmatprep.subr.bf16.mxu0 0
    %2463 = vmatpush1.bf16.msra.mxu0 0
    %2464 = vmatprep.subr.bf16.mxu0 0
    %2465 = vmatpush1.bf16.msra.mxu0 0
    %2466 = vmatprep.subr.bf16.mxu0 0
    %2467 = vmatpush1.bf16.msra.mxu0 0
    %2468 = vmatprep.mubr.bf16.mxu0 0
    %2469 = vmatmul.mubr.bf16.gmra.mrb[0].mxu0 %v2394
    %v2470 = vpop.f32.mrb[0].mxu0
    %v2471 = vadd.f32 %v2271, %v2470
    %v2472 = vpop.f32.mrb[0].mxu0
    %v2473 = vadd.f32 %v2273, %v2472
    %v2474 = vpop.f32.mrb[0].mxu0
    %v2475 = vpop.f32.mrb[0].mxu0
    %2476 = vdwg.mxu0
    %v2477 = vxor.u32 %v2430, 2147483648
    %v2478 = vxor.u32 %v2432, 2147483648
    %v2479 = vxor.u32 %v2471, 2147483648
    %v2480 = vmul.f32 %v2477, 1.442695
    %v2481 = vpow.pop %v2480
    %v2482 = vmul.f32 %v2478, 1.442695
    %v2483 = vpow.pop %v2482
    %v2484 = vmul.f32 %v2479, 1.442695
    %v2485 = vpow.pop %v2484
    %v2486 = vadd.f32 %v2481, 1.0
    %v2487 = vadd.f32 %v2483, 1.0
    %v2488 = vadd.f32 %v2485, 1.0
    %v2489 = vrcp.pop %v2486
    %v2490 = vmul.f32 1.0, %v2489
    %v2491 = vrcp.pop %v2487
    %v2492 = vmul.f32 1.0, %v2491
    %v2493 = vrcp.pop %v2488
    %v2494 = vmul.f32 1.0, %v2493
    %v2495 = vtanh.pop %v2473
    %v2496 = vmul.f32 %v2492, %v2191
    %v2497 = vmul.f32 %v2490, %v2495
    %v2498 = vadd.f32 %v2496, %v2497
    %v2499 = vtanh.pop %v2498
    %v2500 = vmul.f32 %v2494, %v2499
    %v2501 = vpack.c.bf16 %v2500, %v2500
    %2502 = vmatprep.subr.bf16.mxu0 %v1051
    %2503 = vmatpush1.bf16.msra.mxu0 %v1050
    %2504 = vmatprep.subr.bf16.mxu0 %v1055
    %2505 = vmatpush1.bf16.msra.mxu0 %v1054
    %2506 = vmatprep.subr.bf16.mxu0 %v1059
    %2507 = vmatpush1.bf16.msra.mxu0 %v1058
    %2508 = vmatprep.subr.bf16.mxu0 %v1063
    %2509 = vmatpush1.bf16.msra.mxu0 %v1062
    %2510 = vmatprep.subr.bf16.mxu0 %v1067
    %2511 = vmatpush1.bf16.msra.mxu0 %v1066
    %2512 = vmatprep.subr.bf16.mxu0 %v1071
    %2513 = vmatpush1.bf16.msra.mxu0 %v1070
    %2514 = vmatprep.subr.bf16.mxu0 %v1075
    %2515 = vmatpush1.bf16.msra.mxu0 %v1074
    %2516 = vmatprep.subr.bf16.mxu0 %v1079
    %2517 = vmatpush1.bf16.msra.mxu0 %v1078
    %2518 = vmatprep.subr.bf16.mxu0 0
    %2519 = vmatpush1.bf16.msra.mxu0 0
    %2520 = vmatprep.subr.bf16.mxu0 0
    %2521 = vmatpush1.bf16.msra.mxu0 0
    %2522 = vmatprep.subr.bf16.mxu0 0
    %2523 = vmatpush1.bf16.msra.mxu0 0
    %2524 = vmatprep.subr.bf16.mxu0 0
    %2525 = vmatpush1.bf16.msra.mxu0 0
    %2526 = vmatprep.subr.bf16.mxu0 0
    %2527 = vmatpush1.bf16.msra.mxu0 0
    %2528 = vmatprep.subr.bf16.mxu0 0
    %2529 = vmatpush1.bf16.msra.mxu0 0
    %2530 = vmatprep.subr.bf16.mxu0 0
    %2531 = vmatpush1.bf16.msra.mxu0 0
    %2532 = vmatprep.subr.bf16.mxu0 0
    %2533 = vmatpush1.bf16.msra.mxu0 0
    %2534 = vmatprep.mubr.bf16.mxu0 0
    %2535 = vmatmul.mubr.bf16.gmra.mrb[0].mxu0 %v2501
    %v2536 = vpop.f32.mrb[0].mxu0
    %v2537 = vadd.f32 %v641, %v2536
    %v2538 = vpop.f32.mrb[0].mxu0
    %v2539 = vadd.f32 %v645, %v2538
    %v2540 = vpop.f32.mrb[0].mxu0
    %v2541 = vpop.f32.mrb[0].mxu0
    %2542 = vdwg.mxu0
    %2543 = vmatprep.subr.bf16.mxu0 %v1053
    %2544 = vmatpush1.bf16.msra.mxu0 %v1052
    %2545 = vmatprep.subr.bf16.mxu0 %v1057
    %2546 = vmatpush1.bf16.msra.mxu0 %v1056
    %2547 = vmatprep.subr.bf16.mxu0 %v1061
    %2548 = vmatpush1.bf16.msra.mxu0 %v1060
    %2549 = vmatprep.subr.bf16.mxu0 %v1065
    %2550 = vmatpush1.bf16.msra.mxu0 %v1064
    %2551 = vmatprep.subr.bf16.mxu0 %v1069
    %2552 = vmatpush1.bf16.msra.mxu0 %v1068
    %2553 = vmatprep.subr.bf16.mxu0 %v1073
    %2554 = vmatpush1.bf16.msra.mxu0 %v1072
    %2555 = vmatprep.subr.bf16.mxu0 %v1077
    %2556 = vmatpush1.bf16.msra.mxu0 %v1076
    %2557 = vmatprep.subr.bf16.mxu0 %v1081
    %2558 = vmatpush1.bf16.msra.mxu0 %v1080
    %2559 = vmatprep.subr.bf16.mxu0 0
    %2560 = vmatpush1.bf16.msra.mxu0 0
    %2561 = vmatprep.subr.bf16.mxu0 0
    %2562 = vmatpush1.bf16.msra.mxu0 0
    %2563 = vmatprep.subr.bf16.mxu0 0
    %2564 = vmatpush1.bf16.msra.mxu0 0
    %2565 = vmatprep.subr.bf16.mxu0 0
    %2566 = vmatpush1.bf16.msra.mxu0 0
    %2567 = vmatprep.subr.bf16.mxu0 0
    %2568 = vmatpush1.bf16.msra.mxu0 0
    %2569 = vmatprep.subr.bf16.mxu0 0
    %2570 = vmatpush1.bf16.msra.mxu0 0
    %2571 = vmatprep.subr.bf16.mxu0 0
    %2572 = vmatpush1.bf16.msra.mxu0 0
    %2573 = vmatprep.subr.bf16.mxu0 0
    %2574 = vmatpush1.bf16.msra.mxu0 0
    %2575 = vmatprep.mubr.bf16.mxu0 0
    %2576 = vmatmul.mubr.bf16.gmra.mrb[0].mxu0 %v2501
    %v2577 = vpop.f32.mrb[0].mxu0
    %v2578 = vadd.f32 %v649, %v2577
    %v2579 = vpop.f32.mrb[0].mxu0
    %v2580 = vadd.f32 %v653, %v2579
    %v2581 = vpop.f32.mrb[0].mxu0
    %v2582 = vpop.f32.mrb[0].mxu0
    %2583 = vdwg.mxu0
    %s2584 = smul.u32 5, 4
    %s2585 = smul.addr %s2584, 8
    %s2586 = scalar_lea.vmem [#allocation2], %s2585
    %v2587 = vld [vmem:[%s2586] sm:$0xff]
    %v2588 = vld [vmem:[%s2586 + $0x8] sm:$0xff]
    %v2589 = vld [vmem:[%s2586 + $0x10] sm:$0xff]
    %v2590 = vld [vmem:[%s2586 + $0x18] sm:$0xff]
    %2591 = vmatprep.subr.bf16.mxu0 %v1300
    %2592 = vmatpush1.bf16.msra.mxu0 %v1299
    %2593 = vmatprep.subr.bf16.mxu0 %v1304
    %2594 = vmatpush1.bf16.msra.mxu0 %v1303
    %2595 = vmatprep.subr.bf16.mxu0 %v1308
    %2596 = vmatpush1.bf16.msra.mxu0 %v1307
    %2597 = vmatprep.subr.bf16.mxu0 %v1312
    %2598 = vmatpush1.bf16.msra.mxu0 %v1311
    %2599 = vmatprep.subr.bf16.mxu0 %v1316
    %2600 = vmatpush1.bf16.msra.mxu0 %v1315
    %2601 = vmatprep.subr.bf16.mxu0 %v1320
    %2602 = vmatpush1.bf16.msra.mxu0 %v1319
    %2603 = vmatprep.subr.bf16.mxu0 %v1324
    %2604 = vmatpush1.bf16.msra.mxu0 %v1323
    %2605 = vmatprep.subr.bf16.mxu0 %v1328
    %2606 = vmatpush1.bf16.msra.mxu0 %v1327
    %2607 = vmatprep.subr.bf16.mxu0 0
    %2608 = vmatpush1.bf16.msra.mxu0 0
    %2609 = vmatprep.subr.bf16.mxu0 0
    %2610 = vmatpush1.bf16.msra.mxu0 0
    %2611 = vmatprep.subr.bf16.mxu0 0
    %2612 = vmatpush1.bf16.msra.mxu0 0
    %2613 = vmatprep.subr.bf16.mxu0 0
    %2614 = vmatpush1.bf16.msra.mxu0 0
    %2615 = vmatprep.subr.bf16.mxu0 0
    %2616 = vmatpush1.bf16.msra.mxu0 0
    %2617 = vmatprep.subr.bf16.mxu0 0
    %2618 = vmatpush1.bf16.msra.mxu0 0
    %2619 = vmatprep.subr.bf16.mxu0 0
    %2620 = vmatpush1.bf16.msra.mxu0 0
    %2621 = vmatprep.subr.bf16.mxu0 0
    %2622 = vmatpush1.bf16.msra.mxu0 0
    %2623 = vmatprep.mubr.bf16.mxu0 0
    %2624 = vmatmul.mubr.bf16.gmra.mrb[0].mxu0 %v2394
    %v2625 = vpop.f32.mrb[0].mxu0
    %v2626 = vadd.f32 0.0, %v2625
    %v2627 = vpop.f32.mrb[0].mxu0
    %v2628 = vadd.f32 0.0, %v2627
    %v2629 = vpop.f32.mrb[0].mxu0
    %v2630 = vpop.f32.mrb[0].mxu0
    %2631 = vdwg.mxu0
    %2632 = vmatprep.subr.bf16.mxu0 %v1302
    %2633 = vmatpush1.bf16.msra.mxu0 %v1301
    %2634 = vmatprep.subr.bf16.mxu0 %v1306
    %2635 = vmatpush1.bf16.msra.mxu0 %v1305
    %2636 = vmatprep.subr.bf16.mxu0 %v1310
    %2637 = vmatpush1.bf16.msra.mxu0 %v1309
    %2638 = vmatprep.subr.bf16.mxu0 %v1314
    %2639 = vmatpush1.bf16.msra.mxu0 %v1313
    %2640 = vmatprep.subr.bf16.mxu0 %v1318
    %2641 = vmatpush1.bf16.msra.mxu0 %v1317
    %2642 = vmatprep.subr.bf16.mxu0 %v1322
    %2643 = vmatpush1.bf16.msra.mxu0 %v1321
    %2644 = vmatprep.subr.bf16.mxu0 %v1326
    %2645 = vmatpush1.bf16.msra.mxu0 %v1325
    %2646 = vmatprep.subr.bf16.mxu0 %v1330
    %2647 = vmatpush1.bf16.msra.mxu0 %v1329
    %2648 = vmatprep.subr.bf16.mxu0 0
    %2649 = vmatpush1.bf16.msra.mxu0 0
    %2650 = vmatprep.subr.bf16.mxu0 0
    %2651 = vmatpush1.bf16.msra.mxu0 0
    %2652 = vmatprep.subr.bf16.mxu0 0
    %2653 = vmatpush1.bf16.msra.mxu0 0
    %2654 = vmatprep.subr.bf16.mxu0 0
    %2655 = vmatpush1.bf16.msra.mxu0 0
    %2656 = vmatprep.subr.bf16.mxu0 0
    %2657 = vmatpush1.bf16.msra.mxu0 0
    %2658 = vmatprep.subr.bf16.mxu0 0
    %2659 = vmatpush1.bf16.msra.mxu0 0
    %2660 = vmatprep.subr.bf16.mxu0 0
    %2661 = vmatpush1.bf16.msra.mxu0 0
    %2662 = vmatprep.subr.bf16.mxu0 0
    %2663 = vmatpush1.bf16.msra.mxu0 0
    %2664 = vmatprep.mubr.bf16.mxu0 0
    %2665 = vmatmul.mubr.bf16.gmra.mrb[0].mxu0 %v2394
    %v2666 = vpop.f32.mrb[0].mxu0
    %v2667 = vadd.f32 0.0, %v2666
    %v2668 = vpop.f32.mrb[0].mxu0
    %v2669 = vadd.f32 0.0, %v2668
    %v2670 = vpop.f32.mrb[0].mxu0
    %v2671 = vpop.f32.mrb[0].mxu0
    %2672 = vdwg.mxu0
    %v2673 = vadd.f32 %v2587, %v2626
    %v2674 = vadd.f32 %v2588, %v2628
    %v2675 = vadd.f32 %v2589, %v2667
    %v2676 = vadd.f32 %v2590, %v2669
    %v2677 = vxor.u32 %v2673, 2147483648
    %v2678 = vxor.u32 %v2674, 2147483648
    %v2679 = vxor.u32 %v2675, 2147483648
    %v2680 = vmul.f32 %v2677, 1.442695
    %v2681 = vpow.pop %v2680
    %v2682 = vmul.f32 %v2678, 1.442695
    %v2683 = vpow.pop %v2682
    %v2684 = vmul.f32 %v2679, 1.442695
    %v2685 = vpow.pop %v2684
    %v2686 = vadd.f32 %v2681, 1.0
    %v2687 = vadd.f32 %v2683, 1.0
    %v2688 = vadd.f32 %v2685, 1.0
    %v2689 = vrcp.pop %v2686
    %v2690 = vmul.f32 1.0, %v2689
    %v2691 = vrcp.pop %v2687
    %v2692 = vmul.f32 1.0, %v2691
    %v2693 = vrcp.pop %v2688
    %v2694 = vmul.f32 1.0, %v2693
    %v2695 = vtanh.pop %v2676
    %v2696 = vmul.f32 %v2692, %v2391
    %v2697 = vmul.f32 %v2690, %v2695
    %v2698 = vadd.f32 %v2696, %v2697
    %v2699 = vtanh.pop %v2698
    %v2700 = vmul.f32 %v2694, %v2699
    %v2701 = vpack.c.bf16 %v2700, %v2700
    %2702 = vmatprep.subr.bf16.mxu0 %v784
    %2703 = vmatpush1.bf16.msra.mxu0 %v783
    %2704 = vmatprep.subr.bf16.mxu0 %v788
    %2705 = vmatpush1.bf16.msra.mxu0 %v787
    %2706 = vmatprep.subr.bf16.mxu0 %v792
    %2707 = vmatpush1.bf16.msra.mxu0 %v791
    %2708 = vmatprep.subr.bf16.mxu0 %v796
    %2709 = vmatpush1.bf16.msra.mxu0 %v795
    %2710 = vmatprep.subr.bf16.mxu0 %v800
    %2711 = vmatpush1.bf16.msra.mxu0 %v799
    %2712 = vmatprep.subr.bf16.mxu0 %v804
    %2713 = vmatpush1.bf16.msra.mxu0 %v803
    %2714 = vmatprep.subr.bf16.mxu0 %v808
    %2715 = vmatpush1.bf16.msra.mxu0 %v807
    %2716 = vmatprep.subr.bf16.mxu0 %v812
    %2717 = vmatpush1.bf16.msra.mxu0 %v811
    %2718 = vmatprep.subr.bf16.mxu0 0
    %2719 = vmatpush1.bf16.msra.mxu0 0
    %2720 = vmatprep.subr.bf16.mxu0 0
    %2721 = vmatpush1.bf16.msra.mxu0 0
    %2722 = vmatprep.subr.bf16.mxu0 0
    %2723 = vmatpush1.bf16.msra.mxu0 0
    %2724 = vmatprep.subr.bf16.mxu0 0
    %2725 = vmatpush1.bf16.msra.mxu0 0
    %2726 = vmatprep.subr.bf16.mxu0 0
    %2727 = vmatpush1.bf16.msra.mxu0 0
    %2728 = vmatprep.subr.bf16.mxu0 0
    %2729 = vmatpush1.bf16.msra.mxu0 0
    %2730 = vmatprep.subr.bf16.mxu0 0
    %2731 = vmatpush1.bf16.msra.mxu0 0
    %2732 = vmatprep.subr.bf16.mxu0 0
    %2733 = vmatpush1.bf16.msra.mxu0 0
    %2734 = vmatprep.mubr.bf16.mxu0 0
    %2735 = vmatmul.mubr.bf16.gmra.mrb[0].mxu0 %v2701
    %v2736 = vpop.f32.mrb[0].mxu0
    %v2737 = vadd.f32 %v2537, %v2736
    %v2738 = vpop.f32.mrb[0].mxu0
    %v2739 = vadd.f32 %v2539, %v2738
    %v2740 = vpop.f32.mrb[0].mxu0
    %v2741 = vpop.f32.mrb[0].mxu0
    %2742 = vdwg.mxu0
    %2743 = vmatprep.subr.bf16.mxu0 %v786
    %2744 = vmatpush1.bf16.msra.mxu0 %v785
    %2745 = vmatprep.subr.bf16.mxu0 %v790
    %2746 = vmatpush1.bf16.msra.mxu0 %v789
    %2747 = vmatprep.subr.bf16.mxu0 %v794
    %2748 = vmatpush1.bf16.msra.mxu0 %v793
    %2749 = vmatprep.subr.bf16.mxu0 %v798
    %2750 = vmatpush1.bf16.msra.mxu0 %v797
    %2751 = vmatprep.subr.bf16.mxu0 %v802
    %2752 = vmatpush1.bf16.msra.mxu0 %v801
    %2753 = vmatprep.subr.bf16.mxu0 %v806
    %2754 = vmatpush1.bf16.msra.mxu0 %v805
    %2755 = vmatprep.subr.bf16.mxu0 %v810
    %2756 = vmatpush1.bf16.msra.mxu0 %v809
    %2757 = vmatprep.subr.bf16.mxu0 %v814
    %2758 = vmatpush1.bf16.msra.mxu0 %v813
    %2759 = vmatprep.subr.bf16.mxu0 0
    %2760 = vmatpush1.bf16.msra.mxu0 0
    %2761 = vmatprep.subr.bf16.mxu0 0
    %2762 = vmatpush1.bf16.msra.mxu0 0
    %2763 = vmatprep.subr.bf16.mxu0 0
    %2764 = vmatpush1.bf16.msra.mxu0 0
    %2765 = vmatprep.subr.bf16.mxu0 0
    %2766 = vmatpush1.bf16.msra.mxu0 0
    %2767 = vmatprep.subr.bf16.mxu0 0
    %2768 = vmatpush1.bf16.msra.mxu0 0
    %2769 = vmatprep.subr.bf16.mxu0 0
    %2770 = vmatpush1.bf16.msra.mxu0 0
    %2771 = vmatprep.subr.bf16.mxu0 0
    %2772 = vmatpush1.bf16.msra.mxu0 0
    %2773 = vmatprep.subr.bf16.mxu0 0
    %2774 = vmatpush1.bf16.msra.mxu0 0
    %2775 = vmatprep.mubr.bf16.mxu0 0
    %2776 = vmatmul.mubr.bf16.gmra.mrb[0].mxu0 %v2701
    %v2777 = vpop.f32.mrb[0].mxu0
    %v2778 = vadd.f32 %v2578, %v2777
    %v2779 = vpop.f32.mrb[0].mxu0
    %v2780 = vadd.f32 %v2580, %v2779
    %v2781 = vpop.f32.mrb[0].mxu0
    %v2782 = vpop.f32.mrb[0].mxu0
    %2783 = vdwg.mxu0
    %v2784 = vxor.u32 %v2737, 2147483648
    %v2785 = vxor.u32 %v2739, 2147483648
    %v2786 = vxor.u32 %v2778, 2147483648
    %v2787 = vmul.f32 %v2784, 1.442695
    %v2788 = vpow.pop %v2787
    %v2789 = vmul.f32 %v2785, 1.442695
    %v2790 = vpow.pop %v2789
    %v2791 = vmul.f32 %v2786, 1.442695
    %v2792 = vpow.pop %v2791
    %v2793 = vadd.f32 %v2788, 1.0
    %v2794 = vadd.f32 %v2790, 1.0
    %v2795 = vadd.f32 %v2792, 1.0
    %v2796 = vrcp.pop %v2793
    %v2797 = vmul.f32 1.0, %v2796
    %v2798 = vrcp.pop %v2794
    %v2799 = vmul.f32 1.0, %v2798
    %v2800 = vrcp.pop %v2795
    %v2801 = vmul.f32 1.0, %v2800
    %v2802 = vtanh.pop %v2780
    %v2803 = vmul.f32 %v2799, %v2498
    %v2804 = vmul.f32 %v2797, %v2802
    %v2805 = vadd.f32 %v2803, %v2804
    %v2806 = vtanh.pop %v2805
    %v2807 = vmul.f32 %v2801, %v2806
    %v2808 = vpack.c.bf16 %v2807, %v2807
    %2809 = vmatprep.subr.bf16.mxu0 %v1051
    %2810 = vmatpush1.bf16.msra.mxu0 %v1050
    %2811 = vmatprep.subr.bf16.mxu0 %v1055
    %2812 = vmatpush1.bf16.msra.mxu0 %v1054
    %2813 = vmatprep.subr.bf16.mxu0 %v1059
    %2814 = vmatpush1.bf16.msra.mxu0 %v1058
    %2815 = vmatprep.subr.bf16.mxu0 %v1063
    %2816 = vmatpush1.bf16.msra.mxu0 %v1062
    %2817 = vmatprep.subr.bf16.mxu0 %v1067
    %2818 = vmatpush1.bf16.msra.mxu0 %v1066
    %2819 = vmatprep.subr.bf16.mxu0 %v1071
    %2820 = vmatpush1.bf16.msra.mxu0 %v1070
    %2821 = vmatprep.subr.bf16.mxu0 %v1075
    %2822 = vmatpush1.bf16.msra.mxu0 %v1074
    %2823 = vmatprep.subr.bf16.mxu0 %v1079
    %2824 = vmatpush1.bf16.msra.mxu0 %v1078
    %2825 = vmatprep.subr.bf16.mxu0 0
    %2826 = vmatpush1.bf16.msra.mxu0 0
    %2827 = vmatprep.subr.bf16.mxu0 0
    %2828 = vmatpush1.bf16.msra.mxu0 0
    %2829 = vmatprep.subr.bf16.mxu0 0
    %2830 = vmatpush1.bf16.msra.mxu0 0
    %2831 = vmatprep.subr.bf16.mxu0 0
    %2832 = vmatpush1.bf16.msra.mxu0 0
    %2833 = vmatprep.subr.bf16.mxu0 0
    %2834 = vmatpush1.bf16.msra.mxu0 0
    %2835 = vmatprep.subr.bf16.mxu0 0
    %2836 = vmatpush1.bf16.msra.mxu0 0
    %2837 = vmatprep.subr.bf16.mxu0 0
    %2838 = vmatpush1.bf16.msra.mxu0 0
    %2839 = vmatprep.subr.bf16.mxu0 0
    %2840 = vmatpush1.bf16.msra.mxu0 0
    %2841 = vmatprep.mubr.bf16.mxu0 0
    %2842 = vmatmul.mubr.bf16.gmra.mrb[0].mxu0 %v2808
    %v2843 = vpop.f32.mrb[0].mxu0
    %v2844 = vadd.f32 %v641, %v2843
    %v2845 = vpop.f32.mrb[0].mxu0
    %v2846 = vadd.f32 %v645, %v2845
    %v2847 = vpop.f32.mrb[0].mxu0
    %v2848 = vpop.f32.mrb[0].mxu0
    %2849 = vdwg.mxu0
    %2850 = vmatprep.subr.bf16.mxu0 %v1053
    %2851 = vmatpush1.bf16.msra.mxu0 %v1052
    %2852 = vmatprep.subr.bf16.mxu0 %v1057
    %2853 = vmatpush1.bf16.msra.mxu0 %v1056
    %2854 = vmatprep.subr.bf16.mxu0 %v1061
    %2855 = vmatpush1.bf16.msra.mxu0 %v1060
    %2856 = vmatprep.subr.bf16.mxu0 %v1065
    %2857 = vmatpush1.bf16.msra.mxu0 %v1064
    %2858 = vmatprep.subr.bf16.mxu0 %v1069
    %2859 = vmatpush1.bf16.msra.mxu0 %v1068
    %2860 = vmatprep.subr.bf16.mxu0 %v1073
    %2861 = vmatpush1.bf16.msra.mxu0 %v1072
    %2862 = vmatprep.subr.bf16.mxu0 %v1077
    %2863 = vmatpush1.bf16.msra.mxu0 %v1076
    %2864 = vmatprep.subr.bf16.mxu0 %v1081
    %2865 = vmatpush1.bf16.msra.mxu0 %v1080
    %2866 = vmatprep.subr.bf16.mxu0 0
    %2867 = vmatpush1.bf16.msra.mxu0 0
    %2868 = vmatprep.subr.bf16.mxu0 0
    %2869 = vmatpush1.bf16.msra.mxu0 0
    %2870 = vmatprep.subr.bf16.mxu0 0
    %2871 = vmatpush1.bf16.msra.mxu0 0
    %2872 = vmatprep.subr.bf16.mxu0 0
    %2873 = vmatpush1.bf16.msra.mxu0 0
    %2874 = vmatprep.subr.bf16.mxu0 0
    %2875 = vmatpush1.bf16.msra.mxu0 0
    %2876 = vmatprep.subr.bf16.mxu0 0
    %2877 = vmatpush1.bf16.msra.mxu0 0
    %2878 = vmatprep.subr.bf16.mxu0 0
    %2879 = vmatpush1.bf16.msra.mxu0 0
    %2880 = vmatprep.subr.bf16.mxu0 0
    %2881 = vmatpush1.bf16.msra.mxu0 0
    %2882 = vmatprep.mubr.bf16.mxu0 0
    %2883 = vmatmul.mubr.bf16.gmra.mrb[0].mxu0 %v2808
    %v2884 = vpop.f32.mrb[0].mxu0
    %v2885 = vadd.f32 %v649, %v2884
    %v2886 = vpop.f32.mrb[0].mxu0
    %v2887 = vadd.f32 %v653, %v2886
    %v2888 = vpop.f32.mrb[0].mxu0
    %v2889 = vpop.f32.mrb[0].mxu0
    %2890 = vdwg.mxu0
    %s2891 = smul.u32 6, 4
    %s2892 = smul.addr %s2891, 8
    %s2893 = scalar_lea.vmem [#allocation2], %s2892
    %v2894 = vld [vmem:[%s2893] sm:$0xff]
    %v2895 = vld [vmem:[%s2893 + $0x8] sm:$0xff]
    %v2896 = vld [vmem:[%s2893 + $0x10] sm:$0xff]
    %v2897 = vld [vmem:[%s2893 + $0x18] sm:$0xff]
    %2898 = vmatprep.subr.bf16.mxu0 %v1300
    %2899 = vmatpush1.bf16.msra.mxu0 %v1299
    %2900 = vmatprep.subr.bf16.mxu0 %v1304
    %2901 = vmatpush1.bf16.msra.mxu0 %v1303
    %2902 = vmatprep.subr.bf16.mxu0 %v1308
    %2903 = vmatpush1.bf16.msra.mxu0 %v1307
    %2904 = vmatprep.subr.bf16.mxu0 %v1312
    %2905 = vmatpush1.bf16.msra.mxu0 %v1311
    %2906 = vmatprep.subr.bf16.mxu0 %v1316
    %2907 = vmatpush1.bf16.msra.mxu0 %v1315
    %2908 = vmatprep.subr.bf16.mxu0 %v1320
    %2909 = vmatpush1.bf16.msra.mxu0 %v1319
    %2910 = vmatprep.subr.bf16.mxu0 %v1324
    %2911 = vmatpush1.bf16.msra.mxu0 %v1323
    %2912 = vmatprep.subr.bf16.mxu0 %v1328
    %2913 = vmatpush1.bf16.msra.mxu0 %v1327
    %2914 = vmatprep.subr.bf16.mxu0 0
    %2915 = vmatpush1.bf16.msra.mxu0 0
    %2916 = vmatprep.subr.bf16.mxu0 0
    %2917 = vmatpush1.bf16.msra.mxu0 0
    %2918 = vmatprep.subr.bf16.mxu0 0
    %2919 = vmatpush1.bf16.msra.mxu0 0
    %2920 = vmatprep.subr.bf16.mxu0 0
    %2921 = vmatpush1.bf16.msra.mxu0 0
    %2922 = vmatprep.subr.bf16.mxu0 0
    %2923 = vmatpush1.bf16.msra.mxu0 0
    %2924 = vmatprep.subr.bf16.mxu0 0
    %2925 = vmatpush1.bf16.msra.mxu0 0
    %2926 = vmatprep.subr.bf16.mxu0 0
    %2927 = vmatpush1.bf16.msra.mxu0 0
    %2928 = vmatprep.subr.bf16.mxu0 0
    %2929 = vmatpush1.bf16.msra.mxu0 0
    %2930 = vmatprep.mubr.bf16.mxu0 0
    %2931 = vmatmul.mubr.bf16.gmra.mrb[0].mxu0 %v2701
    %v2932 = vpop.f32.mrb[0].mxu0
    %v2933 = vadd.f32 0.0, %v2932
    %v2934 = vpop.f32.mrb[0].mxu0
    %v2935 = vadd.f32 0.0, %v2934
    %v2936 = vpop.f32.mrb[0].mxu0
    %v2937 = vpop.f32.mrb[0].mxu0
    %2938 = vdwg.mxu0
    %2939 = vmatprep.subr.bf16.mxu0 %v1302
    %2940 = vmatpush1.bf16.msra.mxu0 %v1301
    %2941 = vmatprep.subr.bf16.mxu0 %v1306
    %2942 = vmatpush1.bf16.msra.mxu0 %v1305
    %2943 = vmatprep.subr.bf16.mxu0 %v1310
    %2944 = vmatpush1.bf16.msra.mxu0 %v1309
    %2945 = vmatprep.subr.bf16.mxu0 %v1314
    %2946 = vmatpush1.bf16.msra.mxu0 %v1313
    %2947 = vmatprep.subr.bf16.mxu0 %v1318
    %2948 = vmatpush1.bf16.msra.mxu0 %v1317
    %2949 = vmatprep.subr.bf16.mxu0 %v1322
    %2950 = vmatpush1.bf16.msra.mxu0 %v1321
    %2951 = vmatprep.subr.bf16.mxu0 %v1326
    %2952 = vmatpush1.bf16.msra.mxu0 %v1325
    %2953 = vmatprep.subr.bf16.mxu0 %v1330
    %2954 = vmatpush1.bf16.msra.mxu0 %v1329
    %2955 = vmatprep.subr.bf16.mxu0 0
    %2956 = vmatpush1.bf16.msra.mxu0 0
    %2957 = vmatprep.subr.bf16.mxu0 0
    %2958 = vmatpush1.bf16.msra.mxu0 0
    %2959 = vmatprep.subr.bf16.mxu0 0
    %2960 = vmatpush1.bf16.msra.mxu0 0
    %2961 = vmatprep.subr.bf16.mxu0 0
    %2962 = vmatpush1.bf16.msra.mxu0 0
    %2963 = vmatprep.subr.bf16.mxu0 0
    %2964 = vmatpush1.bf16.msra.mxu0 0
    %2965 = vmatprep.subr.bf16.mxu0 0
    %2966 = vmatpush1.bf16.msra.mxu0 0
    %2967 = vmatprep.subr.bf16.mxu0 0
    %2968 = vmatpush1.bf16.msra.mxu0 0
    %2969 = vmatprep.subr.bf16.mxu0 0
    %2970 = vmatpush1.bf16.msra.mxu0 0
    %2971 = vmatprep.mubr.bf16.mxu0 0
    %2972 = vmatmul.mubr.bf16.gmra.mrb[0].mxu0 %v2701
    %v2973 = vpop.f32.mrb[0].mxu0
    %v2974 = vadd.f32 0.0, %v2973
    %v2975 = vpop.f32.mrb[0].mxu0
    %v2976 = vadd.f32 0.0, %v2975
    %v2977 = vpop.f32.mrb[0].mxu0
    %v2978 = vpop.f32.mrb[0].mxu0
    %2979 = vdwg.mxu0
    %v2980 = vadd.f32 %v2894, %v2933
    %v2981 = vadd.f32 %v2895, %v2935
    %v2982 = vadd.f32 %v2896, %v2974
    %v2983 = vadd.f32 %v2897, %v2976
    %v2984 = vxor.u32 %v2980, 2147483648
    %v2985 = vxor.u32 %v2981, 2147483648
    %v2986 = vxor.u32 %v2982, 2147483648
    %v2987 = vmul.f32 %v2984, 1.442695
    %v2988 = vpow.pop %v2987
    %v2989 = vmul.f32 %v2985, 1.442695
    %v2990 = vpow.pop %v2989
    %v2991 = vmul.f32 %v2986, 1.442695
    %v2992 = vpow.pop %v2991
    %v2993 = vadd.f32 %v2988, 1.0
    %v2994 = vadd.f32 %v2990, 1.0
    %v2995 = vadd.f32 %v2992, 1.0
    %v2996 = vrcp.pop %v2993
    %v2997 = vmul.f32 1.0, %v2996
    %v2998 = vrcp.pop %v2994
    %v2999 = vmul.f32 1.0, %v2998
    %v3000 = vrcp.pop %v2995
    %v3001 = vmul.f32 1.0, %v3000
    %v3002 = vtanh.pop %v2983
    %v3003 = vmul.f32 %v2999, %v2698
    %v3004 = vmul.f32 %v2997, %v3002
    %v3005 = vadd.f32 %v3003, %v3004
    %v3006 = vtanh.pop %v3005
    %v3007 = vmul.f32 %v3001, %v3006
    %v3008 = vpack.c.bf16 %v3007, %v3007
    %3009 = vmatprep.subr.bf16.mxu0 %v784
    %3010 = vmatpush1.bf16.msra.mxu0 %v783
    %3011 = vmatprep.subr.bf16.mxu0 %v788
    %3012 = vmatpush1.bf16.msra.mxu0 %v787
    %3013 = vmatprep.subr.bf16.mxu0 %v792
    %3014 = vmatpush1.bf16.msra.mxu0 %v791
    %3015 = vmatprep.subr.bf16.mxu0 %v796
    %3016 = vmatpush1.bf16.msra.mxu0 %v795
    %3017 = vmatprep.subr.bf16.mxu0 %v800
    %3018 = vmatpush1.bf16.msra.mxu0 %v799
    %3019 = vmatprep.subr.bf16.mxu0 %v804
    %3020 = vmatpush1.bf16.msra.mxu0 %v803
    %3021 = vmatprep.subr.bf16.mxu0 %v808
    %3022 = vmatpush1.bf16.msra.mxu0 %v807
    %3023 = vmatprep.subr.bf16.mxu0 %v812
    %3024 = vmatpush1.bf16.msra.mxu0 %v811
    %3025 = vmatprep.subr.bf16.mxu0 0
    %3026 = vmatpush1.bf16.msra.mxu0 0
    %3027 = vmatprep.subr.bf16.mxu0 0
    %3028 = vmatpush1.bf16.msra.mxu0 0
    %3029 = vmatprep.subr.bf16.mxu0 0
    %3030 = vmatpush1.bf16.msra.mxu0 0
    %3031 = vmatprep.subr.bf16.mxu0 0
    %3032 = vmatpush1.bf16.msra.mxu0 0
    %3033 = vmatprep.subr.bf16.mxu0 0
    %3034 = vmatpush1.bf16.msra.mxu0 0
    %3035 = vmatprep.subr.bf16.mxu0 0
    %3036 = vmatpush1.bf16.msra.mxu0 0
    %3037 = vmatprep.subr.bf16.mxu0 0
    %3038 = vmatpush1.bf16.msra.mxu0 0
    %3039 = vmatprep.subr.bf16.mxu0 0
    %3040 = vmatpush1.bf16.msra.mxu0 0
    %3041 = vmatprep.mubr.bf16.mxu0 0
    %3042 = vmatmul.mubr.bf16.gmra.mrb[0].mxu0 %v3008
    %v3043 = vpop.f32.mrb[0].mxu0
    %v3044 = vadd.f32 %v2844, %v3043
    %v3045 = vpop.f32.mrb[0].mxu0
    %v3046 = vadd.f32 %v2846, %v3045
    %v3047 = vpop.f32.mrb[0].mxu0
    %v3048 = vpop.f32.mrb[0].mxu0
    %3049 = vdwg.mxu0
    %3050 = vmatprep.subr.bf16.mxu0 %v786
    %3051 = vmatpush1.bf16.msra.mxu0 %v785
    %3052 = vmatprep.subr.bf16.mxu0 %v790
    %3053 = vmatpush1.bf16.msra.mxu0 %v789
    %3054 = vmatprep.subr.bf16.mxu0 %v794
    %3055 = vmatpush1.bf16.msra.mxu0 %v793
    %3056 = vmatprep.subr.bf16.mxu0 %v798
    %3057 = vmatpush1.bf16.msra.mxu0 %v797
    %3058 = vmatprep.subr.bf16.mxu0 %v802
    %3059 = vmatpush1.bf16.msra.mxu0 %v801
    %3060 = vmatprep.subr.bf16.mxu0 %v806
    %3061 = vmatpush1.bf16.msra.mxu0 %v805
    %3062 = vmatprep.subr.bf16.mxu0 %v810
    %3063 = vmatpush1.bf16.msra.mxu0 %v809
    %3064 = vmatprep.subr.bf16.mxu0 %v814
    %3065 = vmatpush1.bf16.msra.mxu0 %v813
    %3066 = vmatprep.subr.bf16.mxu0 0
    %3067 = vmatpush1.bf16.msra.mxu0 0
    %3068 = vmatprep.subr.bf16.mxu0 0
    %3069 = vmatpush1.bf16.msra.mxu0 0
    %3070 = vmatprep.subr.bf16.mxu0 0
    %3071 = vmatpush1.bf16.msra.mxu0 0
    %3072 = vmatprep.subr.bf16.mxu0 0
    %3073 = vmatpush1.bf16.msra.mxu0 0
    %3074 = vmatprep.subr.bf16.mxu0 0
    %3075 = vmatpush1.bf16.msra.mxu0 0
    %3076 = vmatprep.subr.bf16.mxu0 0
    %3077 = vmatpush1.bf16.msra.mxu0 0
    %3078 = vmatprep.subr.bf16.mxu0 0
    %3079 = vmatpush1.bf16.msra.mxu0 0
    %3080 = vmatprep.subr.bf16.mxu0 0
    %3081 = vmatpush1.bf16.msra.mxu0 0
    %3082 = vmatprep.mubr.bf16.mxu0 0
    %3083 = vmatmul.mubr.bf16.gmra.mrb[0].mxu0 %v3008
    %v3084 = vpop.f32.mrb[0].mxu0
    %v3085 = vadd.f32 %v2885, %v3084
    %v3086 = vpop.f32.mrb[0].mxu0
    %v3087 = vadd.f32 %v2887, %v3086
    %v3088 = vpop.f32.mrb[0].mxu0
    %v3089 = vpop.f32.mrb[0].mxu0
    %3090 = vdwg.mxu0
    %v3091 = vxor.u32 %v3044, 2147483648
    %v3092 = vxor.u32 %v3046, 2147483648
    %v3093 = vxor.u32 %v3085, 2147483648
    %v3094 = vmul.f32 %v3091, 1.442695
    %v3095 = vpow.pop %v3094
    %v3096 = vmul.f32 %v3092, 1.442695
    %v3097 = vpow.pop %v3096
    %v3098 = vmul.f32 %v3093, 1.442695
    %v3099 = vpow.pop %v3098
    %v3100 = vadd.f32 %v3095, 1.0
    %v3101 = vadd.f32 %v3097, 1.0
    %v3102 = vadd.f32 %v3099, 1.0
    %v3103 = vrcp.pop %v3100
    %v3104 = vmul.f32 1.0, %v3103
    %v3105 = vrcp.pop %v3101
    %v3106 = vmul.f32 1.0, %v3105
    %v3107 = vrcp.pop %v3102
    %v3108 = vmul.f32 1.0, %v3107
    %v3109 = vtanh.pop %v3087
    %v3110 = vmul.f32 %v3106, %v2805
    %v3111 = vmul.f32 %v3104, %v3109
    %v3112 = vadd.f32 %v3110, %v3111
    %v3113 = vtanh.pop %v3112
    %v3114 = vmul.f32 %v3108, %v3113
    %v3115 = vpack.c.bf16 %v3114, %v3114
    %3116 = vmatprep.subr.bf16.mxu0 %v1051
    %3117 = vmatpush1.bf16.msra.mxu0 %v1050
    %3118 = vmatprep.subr.bf16.mxu0 %v1055
    %3119 = vmatpush1.bf16.msra.mxu0 %v1054
    %3120 = vmatprep.subr.bf16.mxu0 %v1059
    %3121 = vmatpush1.bf16.msra.mxu0 %v1058
    %3122 = vmatprep.subr.bf16.mxu0 %v1063
    %3123 = vmatpush1.bf16.msra.mxu0 %v1062
    %3124 = vmatprep.subr.bf16.mxu0 %v1067
    %3125 = vmatpush1.bf16.msra.mxu0 %v1066
    %3126 = vmatprep.subr.bf16.mxu0 %v1071
    %3127 = vmatpush1.bf16.msra.mxu0 %v1070
    %3128 = vmatprep.subr.bf16.mxu0 %v1075
    %3129 = vmatpush1.bf16.msra.mxu0 %v1074
    %3130 = vmatprep.subr.bf16.mxu0 %v1079
    %3131 = vmatpush1.bf16.msra.mxu0 %v1078
    %3132 = vmatprep.subr.bf16.mxu0 0
    %3133 = vmatpush1.bf16.msra.mxu0 0
    %3134 = vmatprep.subr.bf16.mxu0 0
    %3135 = vmatpush1.bf16.msra.mxu0 0
    %3136 = vmatprep.subr.bf16.mxu0 0
    %3137 = vmatpush1.bf16.msra.mxu0 0
    %3138 = vmatprep.subr.bf16.mxu0 0
    %3139 = vmatpush1.bf16.msra.mxu0 0
    %3140 = vmatprep.subr.bf16.mxu0 0
    %3141 = vmatpush1.bf16.msra.mxu0 0
    %3142 = vmatprep.subr.bf16.mxu0 0
    %3143 = vmatpush1.bf16.msra.mxu0 0
    %3144 = vmatprep.subr.bf16.mxu0 0
    %3145 = vmatpush1.bf16.msra.mxu0 0
    %3146 = vmatprep.subr.bf16.mxu0 0
    %3147 = vmatpush1.bf16.msra.mxu0 0
    %3148 = vmatprep.mubr.bf16.mxu0 0
    %3149 = vmatmul.mubr.bf16.gmra.mrb[0].mxu0 %v3115
    %v3150 = vpop.f32.mrb[0].mxu0
    %v3151 = vadd.f32 %v641, %v3150
    %v3152 = vpop.f32.mrb[0].mxu0
    %v3153 = vadd.f32 %v645, %v3152
    %v3154 = vpop.f32.mrb[0].mxu0
    %v3155 = vpop.f32.mrb[0].mxu0
    %3156 = vdwg.mxu0
    %3157 = vmatprep.subr.bf16.mxu0 %v1053
    %3158 = vmatpush1.bf16.msra.mxu0 %v1052
    %3159 = vmatprep.subr.bf16.mxu0 %v1057
    %3160 = vmatpush1.bf16.msra.mxu0 %v1056
    %3161 = vmatprep.subr.bf16.mxu0 %v1061
    %3162 = vmatpush1.bf16.msra.mxu0 %v1060
    %3163 = vmatprep.subr.bf16.mxu0 %v1065
    %3164 = vmatpush1.bf16.msra.mxu0 %v1064
    %3165 = vmatprep.subr.bf16.mxu0 %v1069
    %3166 = vmatpush1.bf16.msra.mxu0 %v1068
    %3167 = vmatprep.subr.bf16.mxu0 %v1073
    %3168 = vmatpush1.bf16.msra.mxu0 %v1072
    %3169 = vmatprep.subr.bf16.mxu0 %v1077
    %3170 = vmatpush1.bf16.msra.mxu0 %v1076
    %3171 = vmatprep.subr.bf16.mxu0 %v1081
    %3172 = vmatpush1.bf16.msra.mxu0 %v1080
    %3173 = vmatprep.subr.bf16.mxu0 0
    %3174 = vmatpush1.bf16.msra.mxu0 0
    %3175 = vmatprep.subr.bf16.mxu0 0
    %3176 = vmatpush1.bf16.msra.mxu0 0
    %3177 = vmatprep.subr.bf16.mxu0 0
    %3178 = vmatpush1.bf16.msra.mxu0 0
    %3179 = vmatprep.subr.bf16.mxu0 0
    %3180 = vmatpush1.bf16.msra.mxu0 0
    %3181 = vmatprep.subr.bf16.mxu0 0
    %3182 = vmatpush1.bf16.msra.mxu0 0
    %3183 = vmatprep.subr.bf16.mxu0 0
    %3184 = vmatpush1.bf16.msra.mxu0 0
    %3185 = vmatprep.subr.bf16.mxu0 0
    %3186 = vmatpush1.bf16.msra.mxu0 0
    %3187 = vmatprep.subr.bf16.mxu0 0
    %3188 = vmatpush1.bf16.msra.mxu0 0
    %3189 = vmatprep.mubr.bf16.mxu0 0
    %3190 = vmatmul.mubr.bf16.gmra.mrb[0].mxu0 %v3115
    %v3191 = vpop.f32.mrb[0].mxu0
    %v3192 = vadd.f32 %v649, %v3191
    %v3193 = vpop.f32.mrb[0].mxu0
    %v3194 = vadd.f32 %v653, %v3193
    %v3195 = vpop.f32.mrb[0].mxu0
    %v3196 = vpop.f32.mrb[0].mxu0
    %3197 = vdwg.mxu0
    %s3198 = smul.u32 7, 4
    %s3199 = smul.addr %s3198, 8
    %s3200 = scalar_lea.vmem [#allocation2], %s3199
    %v3201 = vld [vmem:[%s3200] sm:$0xff]
    %v3202 = vld [vmem:[%s3200 + $0x8] sm:$0xff]
    %v3203 = vld [vmem:[%s3200 + $0x10] sm:$0xff]
    %v3204 = vld [vmem:[%s3200 + $0x18] sm:$0xff]
    %3205 = vmatprep.subr.bf16.mxu0 %v1300
    %3206 = vmatpush1.bf16.msra.mxu0 %v1299
    %3207 = vmatprep.subr.bf16.mxu0 %v1304
    %3208 = vmatpush1.bf16.msra.mxu0 %v1303
    %3209 = vmatprep.subr.bf16.mxu0 %v1308
    %3210 = vmatpush1.bf16.msra.mxu0 %v1307
    %3211 = vmatprep.subr.bf16.mxu0 %v1312
    %3212 = vmatpush1.bf16.msra.mxu0 %v1311
    %3213 = vmatprep.subr.bf16.mxu0 %v1316
    %3214 = vmatpush1.bf16.msra.mxu0 %v1315
    %3215 = vmatprep.subr.bf16.mxu0 %v1320
    %3216 = vmatpush1.bf16.msra.mxu0 %v1319
    %3217 = vmatprep.subr.bf16.mxu0 %v1324
    %3218 = vmatpush1.bf16.msra.mxu0 %v1323
    %3219 = vmatprep.subr.bf16.mxu0 %v1328
    %3220 = vmatpush1.bf16.msra.mxu0 %v1327
    %3221 = vmatprep.subr.bf16.mxu0 0
    %3222 = vmatpush1.bf16.msra.mxu0 0
    %3223 = vmatprep.subr.bf16.mxu0 0
    %3224 = vmatpush1.bf16.msra.mxu0 0
    %3225 = vmatprep.subr.bf16.mxu0 0
    %3226 = vmatpush1.bf16.msra.mxu0 0
    %3227 = vmatprep.subr.bf16.mxu0 0
    %3228 = vmatpush1.bf16.msra.mxu0 0
    %3229 = vmatprep.subr.bf16.mxu0 0
    %3230 = vmatpush1.bf16.msra.mxu0 0
    %3231 = vmatprep.subr.bf16.mxu0 0
    %3232 = vmatpush1.bf16.msra.mxu0 0
    %3233 = vmatprep.subr.bf16.mxu0 0
    %3234 = vmatpush1.bf16.msra.mxu0 0
    %3235 = vmatprep.subr.bf16.mxu0 0
    %3236 = vmatpush1.bf16.msra.mxu0 0
    %3237 = vmatprep.mubr.bf16.mxu0 0
    %3238 = vmatmul.mubr.bf16.gmra.mrb[0].mxu0 %v3008
    %v3239 = vpop.f32.mrb[0].mxu0
    %v3240 = vadd.f32 0.0, %v3239
    %v3241 = vpop.f32.mrb[0].mxu0
    %v3242 = vadd.f32 0.0, %v3241
    %v3243 = vpop.f32.mrb[0].mxu0
    %v3244 = vpop.f32.mrb[0].mxu0
    %3245 = vdwg.mxu0
    %3246 = vmatprep.subr.bf16.mxu0 %v1302
    %3247 = vmatpush1.bf16.msra.mxu0 %v1301
    %3248 = vmatprep.subr.bf16.mxu0 %v1306
    %3249 = vmatpush1.bf16.msra.mxu0 %v1305
    %3250 = vmatprep.subr.bf16.mxu0 %v1310
    %3251 = vmatpush1.bf16.msra.mxu0 %v1309
    %3252 = vmatprep.subr.bf16.mxu0 %v1314
    %3253 = vmatpush1.bf16.msra.mxu0 %v1313
    %3254 = vmatprep.subr.bf16.mxu0 %v1318
    %3255 = vmatpush1.bf16.msra.mxu0 %v1317
    %3256 = vmatprep.subr.bf16.mxu0 %v1322
    %3257 = vmatpush1.bf16.msra.mxu0 %v1321
    %3258 = vmatprep.subr.bf16.mxu0 %v1326
    %3259 = vmatpush1.bf16.msra.mxu0 %v1325
    %3260 = vmatprep.subr.bf16.mxu0 %v1330
    %3261 = vmatpush1.bf16.msra.mxu0 %v1329
    %3262 = vmatprep.subr.bf16.mxu0 0
    %3263 = vmatpush1.bf16.msra.mxu0 0
    %3264 = vmatprep.subr.bf16.mxu0 0
    %3265 = vmatpush1.bf16.msra.mxu0 0
    %3266 = vmatprep.subr.bf16.mxu0 0
    %3267 = vmatpush1.bf16.msra.mxu0 0
    %3268 = vmatprep.subr.bf16.mxu0 0
    %3269 = vmatpush1.bf16.msra.mxu0 0
    %3270 = vmatprep.subr.bf16.mxu0 0
    %3271 = vmatpush1.bf16.msra.mxu0 0
    %3272 = vmatprep.subr.bf16.mxu0 0
    %3273 = vmatpush1.bf16.msra.mxu0 0
    %3274 = vmatprep.subr.bf16.mxu0 0
    %3275 = vmatpush1.bf16.msra.mxu0 0
    %3276 = vmatprep.subr.bf16.mxu0 0
    %3277 = vmatpush1.bf16.msra.mxu0 0
    %3278 = vmatprep.mubr.bf16.mxu0 0
    %3279 = vmatmul.mubr.bf16.gmra.mrb[0].mxu0 %v3008
    %v3280 = vpop.f32.mrb[0].mxu0
    %v3281 = vadd.f32 0.0, %v3280
    %v3282 = vpop.f32.mrb[0].mxu0
    %v3283 = vadd.f32 0.0, %v3282
    %v3284 = vpop.f32.mrb[0].mxu0
    %v3285 = vpop.f32.mrb[0].mxu0
    %3286 = vdwg.mxu0
    %v3287 = vadd.f32 %v3201, %v3240
    %v3288 = vadd.f32 %v3202, %v3242
    %v3289 = vadd.f32 %v3203, %v3281
    %v3290 = vadd.f32 %v3204, %v3283
    %v3291 = vxor.u32 %v3287, 2147483648
    %v3292 = vxor.u32 %v3288, 2147483648
    %v3293 = vxor.u32 %v3289, 2147483648
    %v3294 = vmul.f32 %v3291, 1.442695
    %v3295 = vpow.pop %v3294
    %v3296 = vmul.f32 %v3292, 1.442695
    %v3297 = vpow.pop %v3296
    %v3298 = vmul.f32 %v3293, 1.442695
    %v3299 = vpow.pop %v3298
    %v3300 = vadd.f32 %v3295, 1.0
    %v3301 = vadd.f32 %v3297, 1.0
    %v3302 = vadd.f32 %v3299, 1.0
    %v3303 = vrcp.pop %v3300
    %v3304 = vmul.f32 1.0, %v3303
    %v3305 = vrcp.pop %v3301
    %v3306 = vmul.f32 1.0, %v3305
    %v3307 = vrcp.pop %v3302
    %v3308 = vmul.f32 1.0, %v3307
    %v3309 = vtanh.pop %v3290
    %v3310 = vmul.f32 %v3306, %v3005
    %v3311 = vmul.f32 %v3304, %v3309
    %v3312 = vadd.f32 %v3310, %v3311
    %v3313 = vtanh.pop %v3312
    %v3314 = vmul.f32 %v3308, %v3313
    %v3315 = vpack.c.bf16 %v3314, %v3314
    %3316 = vmatprep.subr.bf16.mxu0 %v784
    %3317 = vmatpush1.bf16.msra.mxu0 %v783
    %3318 = vmatprep.subr.bf16.mxu0 %v788
    %3319 = vmatpush1.bf16.msra.mxu0 %v787
    %3320 = vmatprep.subr.bf16.mxu0 %v792
    %3321 = vmatpush1.bf16.msra.mxu0 %v791
    %3322 = vmatprep.subr.bf16.mxu0 %v796
    %3323 = vmatpush1.bf16.msra.mxu0 %v795
    %3324 = vmatprep.subr.bf16.mxu0 %v800
    %3325 = vmatpush1.bf16.msra.mxu0 %v799
    %3326 = vmatprep.subr.bf16.mxu0 %v804
    %3327 = vmatpush1.bf16.msra.mxu0 %v803
    %3328 = vmatprep.subr.bf16.mxu0 %v808
    %3329 = vmatpush1.bf16.msra.mxu0 %v807
    %3330 = vmatprep.subr.bf16.mxu0 %v812
    %3331 = vmatpush1.bf16.msra.mxu0 %v811
    %3332 = vmatprep.subr.bf16.mxu0 0
    %3333 = vmatpush1.bf16.msra.mxu0 0
    %3334 = vmatprep.subr.bf16.mxu0 0
    %3335 = vmatpush1.bf16.msra.mxu0 0
    %3336 = vmatprep.subr.bf16.mxu0 0
    %3337 = vmatpush1.bf16.msra.mxu0 0
    %3338 = vmatprep.subr.bf16.mxu0 0
    %3339 = vmatpush1.bf16.msra.mxu0 0
    %3340 = vmatprep.subr.bf16.mxu0 0
    %3341 = vmatpush1.bf16.msra.mxu0 0
    %3342 = vmatprep.subr.bf16.mxu0 0
    %3343 = vmatpush1.bf16.msra.mxu0 0
    %3344 = vmatprep.subr.bf16.mxu0 0
    %3345 = vmatpush1.bf16.msra.mxu0 0
    %3346 = vmatprep.subr.bf16.mxu0 0
    %3347 = vmatpush1.bf16.msra.mxu0 0
    %3348 = vmatprep.mubr.bf16.mxu0 0
    %3349 = vmatmul.mubr.bf16.gmra.mrb[0].mxu0 %v3315
    %v3350 = vpop.f32.mrb[0].mxu0
    %v3351 = vadd.f32 %v3151, %v3350
    %v3352 = vpop.f32.mrb[0].mxu0
    %v3353 = vadd.f32 %v3153, %v3352
    %v3354 = vpop.f32.mrb[0].mxu0
    %v3355 = vpop.f32.mrb[0].mxu0
    %3356 = vdwg.mxu0
    %3357 = vmatprep.subr.bf16.mxu0 %v786
    %3358 = vmatpush1.bf16.msra.mxu0 %v785
    %3359 = vmatprep.subr.bf16.mxu0 %v790
    %3360 = vmatpush1.bf16.msra.mxu0 %v789
    %3361 = vmatprep.subr.bf16.mxu0 %v794
    %3362 = vmatpush1.bf16.msra.mxu0 %v793
    %3363 = vmatprep.subr.bf16.mxu0 %v798
    %3364 = vmatpush1.bf16.msra.mxu0 %v797
    %3365 = vmatprep.subr.bf16.mxu0 %v802
    %3366 = vmatpush1.bf16.msra.mxu0 %v801
    %3367 = vmatprep.subr.bf16.mxu0 %v806
    %3368 = vmatpush1.bf16.msra.mxu0 %v805
    %3369 = vmatprep.subr.bf16.mxu0 %v810
    %3370 = vmatpush1.bf16.msra.mxu0 %v809
    %3371 = vmatprep.subr.bf16.mxu0 %v814
    %3372 = vmatpush1.bf16.msra.mxu0 %v813
    %3373 = vmatprep.subr.bf16.mxu0 0
    %3374 = vmatpush1.bf16.msra.mxu0 0
    %3375 = vmatprep.subr.bf16.mxu0 0
    %3376 = vmatpush1.bf16.msra.mxu0 0
    %3377 = vmatprep.subr.bf16.mxu0 0
    %3378 = vmatpush1.bf16.msra.mxu0 0
    %3379 = vmatprep.subr.bf16.mxu0 0
    %3380 = vmatpush1.bf16.msra.mxu0 0
    %3381 = vmatprep.subr.bf16.mxu0 0
    %3382 = vmatpush1.bf16.msra.mxu0 0
    %3383 = vmatprep.subr.bf16.mxu0 0
    %3384 = vmatpush1.bf16.msra.mxu0 0
    %3385 = vmatprep.subr.bf16.mxu0 0
    %3386 = vmatpush1.bf16.msra.mxu0 0
    %3387 = vmatprep.subr.bf16.mxu0 0
    %3388 = vmatpush1.bf16.msra.mxu0 0
    %3389 = vmatprep.mubr.bf16.mxu0 0
    %3390 = vmatmul.mubr.bf16.gmra.mrb[0].mxu0 %v3315
    %v3391 = vpop.f32.mrb[0].mxu0
    %v3392 = vadd.f32 %v3192, %v3391
    %v3393 = vpop.f32.mrb[0].mxu0
    %v3394 = vadd.f32 %v3194, %v3393
    %v3395 = vpop.f32.mrb[0].mxu0
    %v3396 = vpop.f32.mrb[0].mxu0
    %3397 = vdwg.mxu0
    %v3398 = vxor.u32 %v3351, 2147483648
    %v3399 = vxor.u32 %v3353, 2147483648
    %v3400 = vxor.u32 %v3392, 2147483648
    %v3401 = vmul.f32 %v3398, 1.442695
    %v3402 = vpow.pop %v3401
    %v3403 = vmul.f32 %v3399, 1.442695
    %v3404 = vpow.pop %v3403
    %v3405 = vmul.f32 %v3400, 1.442695
    %v3406 = vpow.pop %v3405
    %v3407 = vadd.f32 %v3402, 1.0
    %v3408 = vadd.f32 %v3404, 1.0
    %v3409 = vadd.f32 %v3406, 1.0
    %v3410 = vrcp.pop %v3407
    %v3411 = vmul.f32 1.0, %v3410
    %v3412 = vrcp.pop %v3408
    %v3413 = vmul.f32 1.0, %v3412
    %v3414 = vrcp.pop %v3409
    %v3415 = vmul.f32 1.0, %v3414
    %v3416 = vtanh.pop %v3394
    %v3417 = vmul.f32 %v3413, %v3112
    %v3418 = vmul.f32 %v3411, %v3416
    %v3419 = vadd.f32 %v3417, %v3418
    %v3420 = vtanh.pop %v3419
    %v3421 = vmul.f32 %v3415, %v3420
    %v3422 = vpack.c.bf16 %v3421, %v3421
    %v3423 = vld [vmem:[#allocation12] sm:$0xf]
    %v3424 = vld [vmem:[#allocation12 + $0x4] sm:$0xf]
    %v3425 = vld [vmem:[#allocation12 + $0x8] sm:$0xf]
    %v3426 = vld [vmem:[#allocation12 + $0xc] sm:$0xf]
    %v3427 = vld [vmem:[#allocation12 + $0x10] sm:$0xf]
    %v3428 = vld [vmem:[#allocation12 + $0x14] sm:$0xf]
    %v3429 = vld [vmem:[#allocation12 + $0x18] sm:$0xf]
    %v3430 = vld [vmem:[#allocation12 + $0x1c] sm:$0xf]
    %v3431 = vld [vmem:[#allocation12 + $0x20] sm:$0xf]
    %v3432 = vld [vmem:[#allocation12 + $0x24] sm:$0xf]
    %v3433 = vld [vmem:[#allocation12 + $0x28] sm:$0xf]
    %v3434 = vld [vmem:[#allocation12 + $0x2c] sm:$0xf]
    %v3435 = vld [vmem:[#allocation12 + $0x30] sm:$0xf]
    %v3436 = vld [vmem:[#allocation12 + $0x34] sm:$0xf]
    %v3437 = vld [vmem:[#allocation12 + $0x38] sm:$0xf]
    %v3438 = vld [vmem:[#allocation12 + $0x3c] sm:$0xf]
    %v3439 = vld [vmem:[%s8] sm:$0x1]
    %v3441 = vlaneseq
    %v3442 = vshrl.u32 %v3441, 7
    %v3443 = vsub.s32 0, %v3442
    %v3444 = vrot.slane %v3439, %v3443
    %v3462 = vunpack.c.l.b16 %v3423
    %v3463 = vunpack.c.l.b16 %v3424
    %v3464 = vunpack.c.l.b16 %v3425
    %v3465 = vunpack.c.l.b16 %v3426
    %v3466 = vunpack.c.l.b16 %v3427
    %v3467 = vunpack.c.l.b16 %v3428
    %v3468 = vunpack.c.l.b16 %v3429
    %v3469 = vunpack.c.l.b16 %v3430
    %v3470 = vunpack.c.l.b16 %v3431
    %v3471 = vunpack.c.l.b16 %v3432
    %v3472 = vunpack.c.l.b16 %v3433
    %v3473 = vunpack.c.l.b16 %v3434
    %v3474 = vunpack.c.l.b16 %v3435
    %v3475 = vunpack.c.l.b16 %v3436
    %v3476 = vunpack.c.l.b16 %v3437
    %v3477 = vunpack.c.l.b16 %v3438
    %v3478 = vpack.c.b16 %v3463, %v3462
    %v3479 = vpack.c.b16 %v3465, %v3464
    %v3480 = vpack.c.b16 %v3467, %v3466
    %v3481 = vpack.c.b16 %v3469, %v3468
    %v3482 = vpack.c.b16 %v3471, %v3470
    %v3483 = vpack.c.b16 %v3473, %v3472
    %v3484 = vpack.c.b16 %v3475, %v3474
    %v3485 = vpack.c.b16 %v3477, %v3476
    %3494 = vmatprep.subr.bf16.mxu0 0
    %3495 = vmatpush1.bf16.msra.mxu0 %v3478
    %3496 = vmatprep.subr.bf16.mxu0 0
    %3497 = vmatpush1.bf16.msra.mxu0 %v3479
    %3498 = vmatprep.subr.bf16.mxu0 0
    %3499 = vmatpush1.bf16.msra.mxu0 %v3480
    %3500 = vmatprep.subr.bf16.mxu0 0
    %3501 = vmatpush1.bf16.msra.mxu0 %v3481
    %3502 = vmatprep.subr.bf16.mxu0 0
    %3503 = vmatpush1.bf16.msra.mxu0 %v3482
    %3504 = vmatprep.subr.bf16.mxu0 0
    %3505 = vmatpush1.bf16.msra.mxu0 %v3483
    %3506 = vmatprep.subr.bf16.mxu0 0
    %3507 = vmatpush1.bf16.msra.mxu0 %v3484
    %3508 = vmatprep.subr.bf16.mxu0 0
    %3509 = vmatpush1.bf16.msra.mxu0 %v3485
    %3510 = vmatprep.subr.bf16.mxu0 0
    %3511 = vmatpush1.bf16.msra.mxu0 0
    %3512 = vmatprep.subr.bf16.mxu0 0
    %3513 = vmatpush1.bf16.msra.mxu0 0
    %3514 = vmatprep.subr.bf16.mxu0 0
    %3515 = vmatpush1.bf16.msra.mxu0 0
    %3516 = vmatprep.subr.bf16.mxu0 0
    %3517 = vmatpush1.bf16.msra.mxu0 0
    %3518 = vmatprep.subr.bf16.mxu0 0
    %3519 = vmatpush1.bf16.msra.mxu0 0
    %3520 = vmatprep.subr.bf16.mxu0 0
    %3521 = vmatpush1.bf16.msra.mxu0 0
    %3522 = vmatprep.subr.bf16.mxu0 0
    %3523 = vmatpush1.bf16.msra.mxu0 0
    %3524 = vmatprep.subr.bf16.mxu0 0
    %3525 = vmatpush1.bf16.msra.mxu0 0
    %3526 = vmatprep.mubr.bf16.mxu0 0
    %3527 = vmatmul.mubr.bf16.gmra.mrb[0].mxu0 %v3422
    %v3528 = vpop.f32.mrb[0].mxu0
    %v3529 = vadd.f32 %v3444, %v3528
    %v3530 = vpop.f32.mrb[0].mxu0
    %v3531 = vpop.f32.mrb[0].mxu0
    %v3532 = vpop.f32.mrb[0].mxu0
    %3533 = vdwg.mxu0
    %v3534 = vxor.u32 %v3529, 2147483648
    %v3535 = vmul.f32 %v3534, 1.442695
    %v3536 = vpow.pop %v3535
    %v3537 = vadd.f32 %v3536, 1.0
    %v3538 = vrcp.pop %v3537
    %v3539 = vmul.f32 1.0, %v3538
    %3540 = vst [vmem:[#allocation14] sm:$0xff] %v3539
    // Predicated region
    $region62: #{tpu_custom_call.1} parent=1 // pred_check
      _
    $region63: #{tpu_custom_call.1} parent=1 // pred_check_branch
      %3542 = sbr.rel (0) target = $region65
    $region64: #{tpu_custom_call.1} parent=1 // pred_region
      %s3544 = ssub.s32 128, 128
      %3545 = vsyncadd [#allocation5], %s3544
      %s3547 = sshll.u32 [#allocation14], 4
      %s3548 = int_to_ptr.vmem [resolvable:$true] %s3547
      %3550 = dma.vmem_to_hbm [thread:$0]  %s3548, 128, %s9, [#allocation5]
    $region65: #{tpu_custom_call.1} parent=1 // pred_fallthru
      _
    // Predicated region
    $region66: #{tpu_custom_call.1} parent=1 // pred_check
      _
    $region67: #{tpu_custom_call.1} parent=1 // pred_check_branch
      %3552 = sbr.rel (0) target = $region69
    $region68: #{tpu_custom_call.1} parent=1 // pred_region
      %3553 = dma.done [#allocation5], 128
    $region69: #{tpu_custom_call.1} parent=1 // pred_fallthru
      _
    %3554 = vsyncpa [#allocation4], 1
    %3555 = vsyncpa [#allocation7], 1
    %3556 = vsyncpa [#allocation10], 1
    %3557 = vsyncpa [#allocation13], 1
    %3558 = vsyncpa [#allocation5], 1

</llo_original>
